<compile_context>
chip_gen: v7x
topology: tpu7x:2x2x1
jax: 0.10.0
libtpu: 0.0.40
codegen_flags: <defaults>
</compile_context>

<pallas_src>
import numpy as np
import jax
import jax.numpy as jnp
from jax import lax
from jax.experimental import pallas as pl
from jax.experimental.pallas import tpu as pltpu


def _round_up(x, m):
    return ((x + m - 1) // m) * m


def _pick_tk(k_pad, m_pad, d_pad, ms_pad, nway_pad, mq_pad,
             budget_bytes=36 * 1024 * 1024):
    """Largest 128-multiple divisor of k_pad whose double-buffered tiles fit
    the VMEM budget (conservative so it is safe on v7x's 64 MiB VMEM)."""
    n_units = k_pad // 128
    fixed = (2 * ms_pad * nway_pad * 4          # mean weights (f32, dbl-buffered)
             + 2 * mq_pad * nway_pad * 4        # output tile (f32, dbl-buffered)
             + m_pad * d_pad * 4                # resident f32 accumulator
             + mq_pad * nway_pad * d_pad * 4)   # finalize broadcast-diff scratch
    per_k = 2 * (m_pad + d_pad) * 2             # dbl-buffered bf16 x/w tiles per K elem
    avail = max(budget_bytes - fixed, per_k * 128)
    max_units = max(1, min(n_units, avail // (per_k * 128)))
    for u in range(int(max_units), 0, -1):
        if n_units % u == 0:
            return u * 128
    return 128


def _make_proto_kernel(mq_pad, ms_pad):
    """Kernel factory closing over the static row-split of the stacked operand."""

    def kernel(x_ref, w_ref, mw_ref, out_ref, acc_ref):
        # x_ref:   (Mp, tk)            bf16  stacked [query ; support] K-tile
        # w_ref:   (tk, Dp)            bf16  backbone weight K-tile
        # mw_ref:  (Ms_pad, NWp)       f32   one-hot / class counts (lane-dense)
        # out_ref: (Mq_pad, NWp)       f32   -euclidean distances (lane-dense)
        # acc_ref: (Mp, Dp)            f32   embedding accumulator (resident)
        kk = pl.program_id(0)

        @pl.when(kk == 0)
        def _():
            acc_ref[...] = jnp.zeros_like(acc_ref)

        # Single fused MXU matmul for queries + support, f32 accumulation.
        acc_ref[...] += jnp.dot(
            x_ref[...], w_ref[...], preferred_element_type=jnp.float32
        )

        @pl.when(kk == pl.num_programs(0) - 1)
        def _():
            zq = acc_ref[0:mq_pad, :]                     # (Mq_pad, Dp)
            zs = acc_ref[mq_pad:mq_pad + ms_pad, :]       # (Ms_pad, Dp)

            # Class prototypes: weighted mean of support embeddings (weights
            # already include 1/count).  Contract the support-row axis of both
            # operands (trans_a matmul) -> proto is (NWp, Dp).
            proto = lax.dot_general(
                mw_ref[...], zs,
                dimension_numbers=(((0,), (0,)), ((), ())),
                preferred_element_type=jnp.float32)

            # Direct (q - p)^2 reduction: numerically identical in spirit to
            # the reference's cdist, avoids cancellation of the norm expansion.
            diff = zq[:, None, :] - proto[None, :, :]     # (Mq_pad, NWp, Dp)
            d2 = jnp.sum(diff * diff, axis=-1)            # (Mq_pad, NWp)
            out_ref[...] = -jnp.sqrt(d2)

    return kernel


def prototypical_forward(support_images, support_labels, query_images, w, n_way):
    """Wrapper: flatten/pad/cast operands, build mean weights, call the kernel.

    The backbone bias is intentionally NOT passed: it cancels exactly in the
    query-minus-prototype difference, so the scores are unchanged.
    """
    ns = support_images.shape[0]
    nq = query_images.shape[0]
    k_in = int(np.prod(support_images.shape[1:]))
    d = w.shape[1]

    # 16-row padding: bf16 sublane tile is (16, 128); still 8-aligned for f32.
    mq_pad = _round_up(max(nq, 1), 16)
    ms_pad = _round_up(max(ns, 1), 16)
    m_pad = mq_pad + ms_pad
    d_pad = _round_up(d, 128)
    nway_pad = _round_up(n_way, 128)        # lane-dense output (unmasked stores)
    k_pad = _round_up(k_in, 128)            # no tk-multiple padding: no dead HBM traffic

    tk = _pick_tk(k_pad, m_pad, d_pad, ms_pad, nway_pad, mq_pad)
    num_k_tiles = k_pad // tk

    # Stacked [query ; support] operand, zero padded, bf16 for streaming.
    xq = query_images.reshape(nq, k_in).astype(jnp.bfloat16)
    xs = support_images.reshape(ns, k_in).astype(jnp.bfloat16)
    x = jnp.zeros((m_pad, k_pad), jnp.bfloat16)
    x = x.at[:nq, :k_in].set(xq)
    x = x.at[mq_pad:mq_pad + ns, :k_in].set(xs)

    w_p = jnp.zeros((k_pad, d_pad), jnp.bfloat16)
    w_p = w_p.at[:k_in, :d].set(w.astype(jnp.bfloat16))

    # mean_weights = one-hot(labels) / class counts, lane-dense (Ms_pad, NWp).
    onehot = (support_labels[:, None] == jnp.arange(n_way)[None, :]).astype(jnp.float32)
    counts = jnp.maximum(jnp.sum(onehot, axis=0), 1.0)   # guard empty classes
    mw = jnp.zeros((ms_pad, nway_pad), jnp.float32)
    mw = mw.at[:ns, :n_way].set(onehot / counts[None, :])

    kernel = _make_proto_kernel(mq_pad, ms_pad)

    scores_pad = pl.pallas_call(
        kernel,
        out_shape=jax.ShapeDtypeStruct((mq_pad, nway_pad), jnp.float32),
        grid_spec=pltpu.PrefetchScalarGridSpec(
            num_scalar_prefetch=0,
            grid=(num_k_tiles,),
            in_specs=[
                pl.BlockSpec((m_pad, tk), lambda kk: (0, kk)),        # stacked images
                pl.BlockSpec((tk, d_pad), lambda kk: (kk, 0)),        # weight
                pl.BlockSpec((ms_pad, nway_pad), lambda kk: (0, 0)),  # mean weights
            ],
            out_specs=pl.BlockSpec((mq_pad, nway_pad), lambda kk: (0, 0)),
            scratch_shapes=[pltpu.VMEM((m_pad, d_pad), jnp.float32)],
        ),
        compiler_params=pltpu.CompilerParams(
            dimension_semantics=("arbitrary",),          # K is a reduction axis
            # Above v5e's 16 MiB scoped default, below v7x's 64 MiB physical.
            vmem_limit_bytes=48 * 1024 * 1024,
        ),
    )(x, w_p, mw)

    return scores_pad[:nq, :n_way]


def _reference(support_images, support_labels, query_images, w, b, n_way):
    """Plain-JAX reference mirroring the PyTorch forward with the same backbone
    precision policy (bf16 inputs/weights, f32 accumulation, bias included)."""
    ns = support_images.shape[0]
    nq = query_images.shape[0]
    k_in = int(np.prod(support_images.shape[1:]))
    xs = support_images.reshape(ns, k_in).astype(jnp.bfloat16).astype(jnp.float32)
    xq = query_images.reshape(nq, k_in).astype(jnp.bfloat16).astype(jnp.float32)
    wf = w.astype(jnp.bfloat16).astype(jnp.float32)
    zs = xs @ wf + b
    zq = xq @ wf + b
    labels_np = np.asarray(support_labels)
    protos = []
    for c in range(n_way):
        idx = np.nonzero(labels_np == c)[0]
        protos.append(jnp.mean(zs[idx], axis=0, keepdims=True))
    z_proto = jnp.concatenate(protos, axis=0)
    diff = zq[:, None, :] - z_proto[None, :, :]
    dists = jnp.sqrt(jnp.sum(diff * diff, axis=-1))
    return -dists


if __name__ == "__main__":
    key = jax.random.PRNGKey(0)
    k_s, k_q, k_w, k_b = jax.random.split(key, 4)

    # Small few-shot episode: n_way=2, 5 support shots/class, 6 queries.
    C, H, W = 4, 16, 16
    n_way = 2
    Ns, Nq, D = 10, 6, 128
    K = C * H * W                       # 1024 -> single adaptive K tile

    support_images = jax.random.normal(k_s, (Ns, C, H, W), dtype=jnp.float32)
    query_images = jax.random.normal(k_q, (Nq, C, H, W), dtype=jnp.float32)
    support_labels = jnp.array([0, 0, 0, 0, 0, 1, 1, 1, 1, 1], dtype=jnp.int32)

    # Deterministic backbone params (Flatten + Linear(K -> D)); the bias only
    # exists in the reference — it cancels in the distances.
    # TODO(synk): the PyTorch module accepts an arbitrary nn.Module backbone;
    # only the Flatten+Linear backbone is implemented in-kernel here.
    w = jax.random.normal(k_w, (K, D), dtype=jnp.float32) * (1.0 / np.sqrt(K))
    b = jax.random.normal(k_b, (D,), dtype=jnp.float32) * 0.01

    scores = prototypical_forward(support_images, support_labels, query_images,
                                  w, n_way)
    scores = jax.block_until_ready(scores)

    ref = _reference(support_images, support_labels, query_images, w, b, n_way)
    np.testing.assert_allclose(np.asarray(scores), np.asarray(ref),
                               rtol=1e-4, atol=1e-4)

    print("KERNEL_OK")
</pallas_src>

<mosaic_0001>
module attributes {stable_mosaic.version = 11 : i64} {
  func.func @kernel(%arg0: i32, %arg1: memref<32x1024xbf16, #tpu.memory_space<vmem>>, %arg2: memref<1024x128xbf16, #tpu.memory_space<vmem>>, %arg3: memref<16x128xf32, #tpu.memory_space<vmem>>, %arg4: memref<16x128xf32, #tpu.memory_space<vmem>>, %arg5: memref<32x128xf32, #tpu.memory_space<vmem>>) attributes {dimension_semantics = [#tpu.dimension_semantics<arbitrary>], iteration_bounds = array<i64: 1>, scalar_prefetch = 0 : i64, scratch_operands = 1 : i64, tpu.core_type = #tpu.core_type<tc>, window_params = [{transform_indices = @transform_0, window_bounds = array<i64: 32, 1024>}, {transform_indices = @transform_1, window_bounds = array<i64: 1024, 128>}, {pipeline_mode = #tpu.pipeline_mode<synchronous>, transform_indices = @transform_2, window_bounds = array<i64: 16, 128>}, {pipeline_mode = #tpu.pipeline_mode<synchronous>, transform_indices = @transform_3, window_bounds = array<i64: 16, 128>}]} {
    %c0_i32 = arith.constant 0 : i32
    %0 = arith.cmpi eq, %arg0, %c0_i32 : i32
    %1 = arith.extui %0 : i1 to i32
    %c0_i32_0 = arith.constant 0 : i32
    %2 = arith.cmpi ne, %1, %c0_i32_0 : i32
    scf.if %2 {
      %cst_10 = arith.constant 0.000000e+00 : f32
      %12 = vector.broadcast %cst_10 : f32 to vector<32x128xf32>
      %c0_11 = arith.constant 0 : index
      %c0_12 = arith.constant 0 : index
      %13 = vector.load %arg5[%c0_11, %c0_12] : memref<32x128xf32, #tpu.memory_space<vmem>>, vector<32x128xf32>
      tpu.vector_store %arg5[%c0_11, %c0_12], %12 {strides = array<i32>} : memref<32x128xf32, #tpu.memory_space<vmem>>, vector<32x128xf32>,
    } else {
    }
    %c0 = arith.constant 0 : index
    %c0_1 = arith.constant 0 : index
    %3 = vector.load %arg5[%c0, %c0_1] : memref<32x128xf32, #tpu.memory_space<vmem>>, vector<32x128xf32>
    %c0_2 = arith.constant 0 : index
    %c0_3 = arith.constant 0 : index
    %4 = vector.load %arg1[%c0_2, %c0_3] : memref<32x1024xbf16, #tpu.memory_space<vmem>>, vector<32x1024xbf16>
    %c0_4 = arith.constant 0 : index
    %c0_5 = arith.constant 0 : index
    %5 = vector.load %arg2[%c0_4, %c0_5] : memref<1024x128xbf16, #tpu.memory_space<vmem>>, vector<1024x128xbf16>
    %cst = arith.constant dense<0.000000e+00> : vector<32x128xf32>
    %6 = tpu.matmul %4, %5, %cst {dimension_numbers = #tpu.dot_dimension_numbers<[1], [0], [0], [1], [0, 0, 1, 1], [], []>} : vector<32x1024xbf16>, vector<1024x128xbf16>, vector<32x128xf32> -> vector<32x128xf32>
    %7 = arith.addf %3, %6 : vector<32x128xf32>
    %c0_6 = arith.constant 0 : index
    %c0_7 = arith.constant 0 : index
    %8 = vector.load %arg5[%c0_6, %c0_7] : memref<32x128xf32, #tpu.memory_space<vmem>>, vector<32x128xf32>
    tpu.vector_store %arg5[%c0_6, %c0_7], %7 {strides = array<i32>} : memref<32x128xf32, #tpu.memory_space<vmem>>, vector<32x128xf32>,
    %c0_i32_8 = arith.constant 0 : i32
    %9 = arith.cmpi eq, %arg0, %c0_i32_8 : i32
    %10 = arith.extui %9 : i1 to i32
    %c0_i32_9 = arith.constant 0 : i32
    %11 = arith.cmpi ne, %10, %c0_i32_9 : i32
    scf.if %11 {
      %c0_10 = arith.constant 0 : index
      %c0_11 = arith.constant 0 : index
      %12 = vector.load %arg5[%c0_10, %c0_11] : memref<32x128xf32, #tpu.memory_space<vmem>>, vector<16x128xf32>
      %c16 = arith.constant 16 : index
      %c0_12 = arith.constant 0 : index
      %13 = vector.load %arg5[%c16, %c0_12] : memref<32x128xf32, #tpu.memory_space<vmem>>, vector<16x128xf32>
      %c0_13 = arith.constant 0 : index
      %c0_14 = arith.constant 0 : index
      %14 = vector.load %arg3[%c0_13, %c0_14] : memref<16x128xf32, #tpu.memory_space<vmem>>, vector<16x128xf32>
      %cst_15 = arith.constant dense<0.000000e+00> : vector<128x128xf32>
      %15 = tpu.matmul %14, %13, %cst_15 {dimension_numbers = #tpu.dot_dimension_numbers<[0], [0], [1], [1], [0, 1, 1, 1], [], []>} : vector<16x128xf32>, vector<16x128xf32>, vector<128x128xf32> -> vector<128x128xf32>
      %16 = vector.shape_cast %12 : vector<16x128xf32> to vector<16x1x128xf32>
      %17 = vector.shape_cast %15 : vector<128x128xf32> to vector<1x128x128xf32>
      %18 = vector.broadcast %16 : vector<16x1x128xf32> to vector<16x128x128xf32>
      %19 = vector.broadcast %17 : vector<1x128x128xf32> to vector<16x128x128xf32>
      %20 = arith.subf %18, %19 : vector<16x128x128xf32>
      %21 = arith.mulf %20, %20 : vector<16x128x128xf32>
      %cst_16 = arith.constant dense<0.000000e+00> : vector<16x128xf32>
      %22 = vector.multi_reduction <add>, %21, %cst_16 [2] : vector<16x128x128xf32> to vector<16x128xf32>
      %23 = math.sqrt %22 : vector<16x128xf32>
      %cst_17 = arith.constant 0.000000e+00 : f32
      %24 = vector.broadcast %cst_17 : f32 to vector<16x128xf32>
      %25 = arith.subf %24, %23 : vector<16x128xf32>
      %c0_18 = arith.constant 0 : index
      %c0_19 = arith.constant 0 : index
      %26 = vector.load %arg4[%c0_18, %c0_19] : memref<16x128xf32, #tpu.memory_space<vmem>>, vector<16x128xf32>
      tpu.vector_store %arg4[%c0_18, %c0_19], %25 {strides = array<i32>} : memref<16x128xf32, #tpu.memory_space<vmem>>, vector<16x128xf32>,
    } else {
    }
    return
  }
  func.func @transform_0(%arg0: i32) -> (i32, i32) {
    %c0_i32 = arith.constant 0 : i32
    %c0_i32_0 = arith.constant 0 : i32
    return %c0_i32, %arg0 : i32, i32
  }
  func.func @transform_1(%arg0: i32) -> (i32, i32) {
    %c0_i32 = arith.constant 0 : i32
    %c0_i32_0 = arith.constant 0 : i32
    return %arg0, %c0_i32 : i32, i32
  }
  func.func @transform_2(%arg0: i32) -> (i32, i32) {
    %c0_i32 = arith.constant 0 : i32
    %c0_i32_0 = arith.constant 0 : i32
    %c0_i32_1 = arith.constant 0 : i32
    return %c0_i32, %c0_i32_0 : i32, i32
  }
  func.func @transform_3(%arg0: i32) -> (i32, i32) {
    %c0_i32 = arith.constant 0 : i32
    %c0_i32_0 = arith.constant 0 : i32
    %c0_i32_1 = arith.constant 0 : i32
    return %c0_i32, %c0_i32_0 : i32, i32
  }
}

</mosaic_0001>

<llo_original>
// kernel: tpu_custom_call.1
$region0: #{tpu_custom_call.1}
  #allocation0 [shape = 'u32[]', space=smem, size = 0x4, offset = 0x4, fixed_abs, tag = 'smem constant byte address 0x4 - core index']
  #allocation1 [shape = 'u32[144,128]{1,0:T(1,128)}', space=vmem, size = 0x12000, scoped, tag = 'internal scratch']
  #allocation2 [shape = 'f32[32,128]{1,0:T(8,128)}', space=vmem, size = 0x4000, scoped, tag = 'scratch operand']
  %s0 = inlined_call_operand.hbm [shape: bf16[32,1024], index: 0, kind: input, shape index: {}]
  %s1 = inlined_call_operand.hbm [shape: bf16[1024,128], index: 1, kind: input, shape index: {}]
  %s2 = inlined_call_operand.hbm [shape: f32[16,128], index: 2, kind: input, shape index: {}]
  %s3 = inlined_call_operand.hbm [shape: f32[16,128], index: 3, kind: output, shape index: {}]
  %s4 = sld [smem:[#allocation0]]
  $region42: #{tpu_custom_call.1} parent=0
    _
  %s6 = ssub.s32 1, %s4
  %s7 = scalar_select 0, %s6, %s4
  $region1: #{tpu_custom_call.1} parent=0
    #allocation3 [shape = 'u8[65536]{0}', space=vmem, size = 0x10000, scoped, tag = 'input window, operand 0, single buffered']
    #allocation4 [shape = 's32[1]{0}', space=sflag, size = 0x4, scoped, tag = 'scoped memory for tpu_custom_call.1']
    #allocation5 [shape = 's32[1]{0}', space=sflag, size = 0x4, scoped, tag = 'scoped memory for tpu_custom_call.1']
    #allocation6 [shape = 'u8[262144]{0}', space=vmem, size = 0x40000, scoped, tag = 'input window, operand 1, single buffered']
    #allocation7 [shape = 's32[1]{0}', space=sflag, size = 0x4, scoped, tag = 'scoped memory for tpu_custom_call.1']
    #allocation8 [shape = 'u8[8192]{0}', space=vmem, size = 0x2000, scoped, tag = 'input window, operand 2, single buffered']
    #allocation9 [shape = 'u8[8192]{0}', space=vmem, size = 0x2000, scoped, tag = 'output window, operand 0, single buffered']
    %8 = vsyncpa [#allocation4], 0
    %9 = vsyncpa [#allocation7], 0
    %10 = vsyncpa [#allocation5], 0
    // Predicated region
    $region2: #{tpu_custom_call.1} parent=1 // pred_check
      _
    $region3: #{tpu_custom_call.1} parent=1 // pred_check_branch
      %12 = sbr.rel (0) target = $region5
    $region4: #{tpu_custom_call.1} parent=1 // pred_region
      %s14 = ssub.s32 2048, 2048
      %15 = vsyncadd [#allocation4], %s14
      %s16 = sshll.u32 [#allocation3], 4
      %s17 = int_to_ptr.vmem [resolvable:$true] %s16
      %22 = dma.hbm_to_vmem [thread:$0]  %s0, 2048, %s17, [#allocation4], 512, 512, 32
    $region5: #{tpu_custom_call.1} parent=1 // pred_fallthru
      _
    // Predicated region
    $region6: #{tpu_custom_call.1} parent=1 // pred_check
      _
    $region7: #{tpu_custom_call.1} parent=1 // pred_check_branch
      %24 = sbr.rel (0) target = $region9
    $region8: #{tpu_custom_call.1} parent=1 // pred_region
      %s26 = ssub.s32 8192, 8192
      %27 = vsyncadd [#allocation7], %s26
      %s28 = sshll.u32 [#allocation6], 4
      %s29 = int_to_ptr.vmem [resolvable:$true] %s28
      %34 = dma.hbm_to_vmem [thread:$0]  %s1, 8192, %s29, [#allocation7], 64, 64, 4
    $region9: #{tpu_custom_call.1} parent=1 // pred_fallthru
      _
    // Predicated region
    $region10: #{tpu_custom_call.1} parent=1 // pred_check
      _
    $region11: #{tpu_custom_call.1} parent=1 // pred_check_branch
      %36 = sbr.rel (0) target = $region13
    $region12: #{tpu_custom_call.1} parent=1 // pred_region
      %s38 = ssub.s32 256, 256
      %39 = vsyncadd [#allocation7], %s38
      %s40 = sshll.u32 [#allocation8], 4
      %s41 = int_to_ptr.vmem [resolvable:$true] %s40
      %46 = dma.hbm_to_vmem [thread:$0]  %s2, 256, %s41, [#allocation7], 128, 128, 8
    $region13: #{tpu_custom_call.1} parent=1 // pred_fallthru
      _
    // Predicated region
    $region14: #{tpu_custom_call.1} parent=1 // pred_check
      _
    $region15: #{tpu_custom_call.1} parent=1 // pred_check_branch
      %48 = sbr.rel (0) target = $region17
    $region16: #{tpu_custom_call.1} parent=1 // pred_region
      %49 = dma.done [#allocation4], 2048
    $region17: #{tpu_custom_call.1} parent=1 // pred_fallthru
      _
    // Predicated region
    $region18: #{tpu_custom_call.1} parent=1 // pred_check
      _
    $region19: #{tpu_custom_call.1} parent=1 // pred_check_branch
      %51 = sbr.rel (0) target = $region21
    $region20: #{tpu_custom_call.1} parent=1 // pred_region
      %52 = dma.done [#allocation7], 8192
    $region21: #{tpu_custom_call.1} parent=1 // pred_fallthru
      _
    // Predicated region
    $region22: #{tpu_custom_call.1} parent=1 // pred_check
      _
    $region23: #{tpu_custom_call.1} parent=1 // pred_check_branch
      %54 = sbr.rel (0) target = $region25
    $region24: #{tpu_custom_call.1} parent=1 // pred_region
      %55 = dma.done [#allocation7], 256
    $region25: #{tpu_custom_call.1} parent=1 // pred_fallthru
      _
    %p57 = scmp.eq.s32.totalorder 0, 0
    // Predicated region
    $region26: #{tpu_custom_call.1} parent=1 // pred_check
      %p58 = pneg %p57
    $region27: #{tpu_custom_call.1} parent=1 // pred_check_branch
      %60 = sbr.rel (%p58) target = $region29
    $region28: #{tpu_custom_call.1} parent=1 // pred_region
      %61 = vst [vmem:[#allocation2] sm:$0xff] 0.0
      %62 = vst [vmem:[#allocation2 + $0x8] sm:$0xff] 0.0
      %63 = vst [vmem:[#allocation2 + $0x10] sm:$0xff] 0.0
      %64 = vst [vmem:[#allocation2 + $0x18] sm:$0xff] 0.0
    $region29: #{tpu_custom_call.1} parent=1 // pred_fallthru
      _
    %v65 = vld [vmem:[#allocation2] sm:$0xff]
    %v66 = vld [vmem:[#allocation2 + $0x8] sm:$0xff]
    %v67 = vld [vmem:[#allocation2 + $0x10] sm:$0xff]
    %v68 = vld [vmem:[#allocation2 + $0x18] sm:$0xff]
    %v69 = vld [vmem:[#allocation3] sm:$0xff]
    %v70 = vld [vmem:[#allocation3 + $0x8] sm:$0xff]
    %v71 = vld [vmem:[#allocation3 + $0x10] sm:$0xff]
    %v72 = vld [vmem:[#allocation3 + $0x18] sm:$0xff]
    %v73 = vld [vmem:[#allocation3 + $0x20] sm:$0xff]
    %v74 = vld [vmem:[#allocation3 + $0x28] sm:$0xff]
    %v75 = vld [vmem:[#allocation3 + $0x30] sm:$0xff]
    %v76 = vld [vmem:[#allocation3 + $0x38] sm:$0xff]
    %v77 = vld [vmem:[#allocation3 + $0x40] sm:$0xff]
    %v78 = vld [vmem:[#allocation3 + $0x48] sm:$0xff]
    %v79 = vld [vmem:[#allocation3 + $0x50] sm:$0xff]
    %v80 = vld [vmem:[#allocation3 + $0x58] sm:$0xff]
    %v81 = vld [vmem:[#allocation3 + $0x60] sm:$0xff]
    %v82 = vld [vmem:[#allocation3 + $0x68] sm:$0xff]
    %v83 = vld [vmem:[#allocation3 + $0x70] sm:$0xff]
    %v84 = vld [vmem:[#allocation3 + $0x78] sm:$0xff]
    %v85 = vld [vmem:[#allocation6] sm:$0xf]
    %v86 = vld [vmem:[#allocation6 + $0x4] sm:$0xf]
    %v87 = vld [vmem:[#allocation6 + $0x8] sm:$0xf]
    %v88 = vld [vmem:[#allocation6 + $0xc] sm:$0xf]
    %v89 = vld [vmem:[#allocation6 + $0x10] sm:$0xf]
    %v90 = vld [vmem:[#allocation6 + $0x14] sm:$0xf]
    %v91 = vld [vmem:[#allocation6 + $0x18] sm:$0xf]
    %v92 = vld [vmem:[#allocation6 + $0x1c] sm:$0xf]
    %v93 = vld [vmem:[#allocation6 + $0x20] sm:$0xf]
    %v94 = vld [vmem:[#allocation6 + $0x24] sm:$0xf]
    %v95 = vld [vmem:[#allocation6 + $0x28] sm:$0xf]
    %v96 = vld [vmem:[#allocation6 + $0x2c] sm:$0xf]
    %v97 = vld [vmem:[#allocation6 + $0x30] sm:$0xf]
    %v98 = vld [vmem:[#allocation6 + $0x34] sm:$0xf]
    %v99 = vld [vmem:[#allocation6 + $0x38] sm:$0xf]
    %v100 = vld [vmem:[#allocation6 + $0x3c] sm:$0xf]
    %v101 = vld [vmem:[#allocation6 + $0x40] sm:$0xf]
    %v102 = vld [vmem:[#allocation6 + $0x44] sm:$0xf]
    %v103 = vld [vmem:[#allocation6 + $0x48] sm:$0xf]
    %v104 = vld [vmem:[#allocation6 + $0x4c] sm:$0xf]
    %v105 = vld [vmem:[#allocation6 + $0x50] sm:$0xf]
    %v106 = vld [vmem:[#allocation6 + $0x54] sm:$0xf]
    %v107 = vld [vmem:[#allocation6 + $0x58] sm:$0xf]
    %v108 = vld [vmem:[#allocation6 + $0x5c] sm:$0xf]
    %v109 = vld [vmem:[#allocation6 + $0x60] sm:$0xf]
    %v110 = vld [vmem:[#allocation6 + $0x64] sm:$0xf]
    %v111 = vld [vmem:[#allocation6 + $0x68] sm:$0xf]
    %v112 = vld [vmem:[#allocation6 + $0x6c] sm:$0xf]
    %v113 = vld [vmem:[#allocation6 + $0x70] sm:$0xf]
    %v114 = vld [vmem:[#allocation6 + $0x74] sm:$0xf]
    %v115 = vld [vmem:[#allocation6 + $0x78] sm:$0xf]
    %v116 = vld [vmem:[#allocation6 + $0x7c] sm:$0xf]
    %v117 = vld [vmem:[#allocation6 + $0x80] sm:$0xf]
    %v118 = vld [vmem:[#allocation6 + $0x84] sm:$0xf]
    %v119 = vld [vmem:[#allocation6 + $0x88] sm:$0xf]
    %v120 = vld [vmem:[#allocation6 + $0x8c] sm:$0xf]
    %v121 = vld [vmem:[#allocation6 + $0x90] sm:$0xf]
    %v122 = vld [vmem:[#allocation6 + $0x94] sm:$0xf]
    %v123 = vld [vmem:[#allocation6 + $0x98] sm:$0xf]
    %v124 = vld [vmem:[#allocation6 + $0x9c] sm:$0xf]
    %v125 = vld [vmem:[#allocation6 + $0xa0] sm:$0xf]
    %v126 = vld [vmem:[#allocation6 + $0xa4] sm:$0xf]
    %v127 = vld [vmem:[#allocation6 + $0xa8] sm:$0xf]
    %v128 = vld [vmem:[#allocation6 + $0xac] sm:$0xf]
    %v129 = vld [vmem:[#allocation6 + $0xb0] sm:$0xf]
    %v130 = vld [vmem:[#allocation6 + $0xb4] sm:$0xf]
    %v131 = vld [vmem:[#allocation6 + $0xb8] sm:$0xf]
    %v132 = vld [vmem:[#allocation6 + $0xbc] sm:$0xf]
    %v133 = vld [vmem:[#allocation6 + $0xc0] sm:$0xf]
    %v134 = vld [vmem:[#allocation6 + $0xc4] sm:$0xf]
    %v135 = vld [vmem:[#allocation6 + $0xc8] sm:$0xf]
    %v136 = vld [vmem:[#allocation6 + $0xcc] sm:$0xf]
    %v137 = vld [vmem:[#allocation6 + $0xd0] sm:$0xf]
    %v138 = vld [vmem:[#allocation6 + $0xd4] sm:$0xf]
    %v139 = vld [vmem:[#allocation6 + $0xd8] sm:$0xf]
    %v140 = vld [vmem:[#allocation6 + $0xdc] sm:$0xf]
    %v141 = vld [vmem:[#allocation6 + $0xe0] sm:$0xf]
    %v142 = vld [vmem:[#allocation6 + $0xe4] sm:$0xf]
    %v143 = vld [vmem:[#allocation6 + $0xe8] sm:$0xf]
    %v144 = vld [vmem:[#allocation6 + $0xec] sm:$0xf]
    %v145 = vld [vmem:[#allocation6 + $0xf0] sm:$0xf]
    %v146 = vld [vmem:[#allocation6 + $0xf4] sm:$0xf]
    %v147 = vld [vmem:[#allocation6 + $0xf8] sm:$0xf]
    %v148 = vld [vmem:[#allocation6 + $0xfc] sm:$0xf]
    %v149 = vld [vmem:[#allocation6 + $0x100] sm:$0xf]
    %v150 = vld [vmem:[#allocation6 + $0x104] sm:$0xf]
    %v151 = vld [vmem:[#allocation6 + $0x108] sm:$0xf]
    %v152 = vld [vmem:[#allocation6 + $0x10c] sm:$0xf]
    %v153 = vld [vmem:[#allocation6 + $0x110] sm:$0xf]
    %v154 = vld [vmem:[#allocation6 + $0x114] sm:$0xf]
    %v155 = vld [vmem:[#allocation6 + $0x118] sm:$0xf]
    %v156 = vld [vmem:[#allocation6 + $0x11c] sm:$0xf]
    %v157 = vld [vmem:[#allocation6 + $0x120] sm:$0xf]
    %v158 = vld [vmem:[#allocation6 + $0x124] sm:$0xf]
    %v159 = vld [vmem:[#allocation6 + $0x128] sm:$0xf]
    %v160 = vld [vmem:[#allocation6 + $0x12c] sm:$0xf]
    %v161 = vld [vmem:[#allocation6 + $0x130] sm:$0xf]
    %v162 = vld [vmem:[#allocation6 + $0x134] sm:$0xf]
    %v163 = vld [vmem:[#allocation6 + $0x138] sm:$0xf]
    %v164 = vld [vmem:[#allocation6 + $0x13c] sm:$0xf]
    %v165 = vld [vmem:[#allocation6 + $0x140] sm:$0xf]
    %v166 = vld [vmem:[#allocation6 + $0x144] sm:$0xf]
    %v167 = vld [vmem:[#allocation6 + $0x148] sm:$0xf]
    %v168 = vld [vmem:[#allocation6 + $0x14c] sm:$0xf]
    %v169 = vld [vmem:[#allocation6 + $0x150] sm:$0xf]
    %v170 = vld [vmem:[#allocation6 + $0x154] sm:$0xf]
    %v171 = vld [vmem:[#allocation6 + $0x158] sm:$0xf]
    %v172 = vld [vmem:[#allocation6 + $0x15c] sm:$0xf]
    %v173 = vld [vmem:[#allocation6 + $0x160] sm:$0xf]
    %v174 = vld [vmem:[#allocation6 + $0x164] sm:$0xf]
    %v175 = vld [vmem:[#allocation6 + $0x168] sm:$0xf]
    %v176 = vld [vmem:[#allocation6 + $0x16c] sm:$0xf]
    %v177 = vld [vmem:[#allocation6 + $0x170] sm:$0xf]
    %v178 = vld [vmem:[#allocation6 + $0x174] sm:$0xf]
    %v179 = vld [vmem:[#allocation6 + $0x178] sm:$0xf]
    %v180 = vld [vmem:[#allocation6 + $0x17c] sm:$0xf]
    %v181 = vld [vmem:[#allocation6 + $0x180] sm:$0xf]
    %v182 = vld [vmem:[#allocation6 + $0x184] sm:$0xf]
    %v183 = vld [vmem:[#allocation6 + $0x188] sm:$0xf]
    %v184 = vld [vmem:[#allocation6 + $0x18c] sm:$0xf]
    %v185 = vld [vmem:[#allocation6 + $0x190] sm:$0xf]
    %v186 = vld [vmem:[#allocation6 + $0x194] sm:$0xf]
    %v187 = vld [vmem:[#allocation6 + $0x198] sm:$0xf]
    %v188 = vld [vmem:[#allocation6 + $0x19c] sm:$0xf]
    %v189 = vld [vmem:[#allocation6 + $0x1a0] sm:$0xf]
    %v190 = vld [vmem:[#allocation6 + $0x1a4] sm:$0xf]
    %v191 = vld [vmem:[#allocation6 + $0x1a8] sm:$0xf]
    %v192 = vld [vmem:[#allocation6 + $0x1ac] sm:$0xf]
    %v193 = vld [vmem:[#allocation6 + $0x1b0] sm:$0xf]
    %v194 = vld [vmem:[#allocation6 + $0x1b4] sm:$0xf]
    %v195 = vld [vmem:[#allocation6 + $0x1b8] sm:$0xf]
    %v196 = vld [vmem:[#allocation6 + $0x1bc] sm:$0xf]
    %v197 = vld [vmem:[#allocation6 + $0x1c0] sm:$0xf]
    %v198 = vld [vmem:[#allocation6 + $0x1c4] sm:$0xf]
    %v199 = vld [vmem:[#allocation6 + $0x1c8] sm:$0xf]
    %v200 = vld [vmem:[#allocation6 + $0x1cc] sm:$0xf]
    %v201 = vld [vmem:[#allocation6 + $0x1d0] sm:$0xf]
    %v202 = vld [vmem:[#allocation6 + $0x1d4] sm:$0xf]
    %v203 = vld [vmem:[#allocation6 + $0x1d8] sm:$0xf]
    %v204 = vld [vmem:[#allocation6 + $0x1dc] sm:$0xf]
    %v205 = vld [vmem:[#allocation6 + $0x1e0] sm:$0xf]
    %v206 = vld [vmem:[#allocation6 + $0x1e4] sm:$0xf]
    %v207 = vld [vmem:[#allocation6 + $0x1e8] sm:$0xf]
    %v208 = vld [vmem:[#allocation6 + $0x1ec] sm:$0xf]
    %v209 = vld [vmem:[#allocation6 + $0x1f0] sm:$0xf]
    %v210 = vld [vmem:[#allocation6 + $0x1f4] sm:$0xf]
    %v211 = vld [vmem:[#allocation6 + $0x1f8] sm:$0xf]
    %v212 = vld [vmem:[#allocation6 + $0x1fc] sm:$0xf]
    %v229 = vunpack.c.l.b16 %v69
    %v230 = vunpack.c.h.b16 %v69
    %v231 = vunpack.c.l.b16 %v70
    %v232 = vunpack.c.h.b16 %v70
    %v233 = vunpack.c.l.b16 %v71
    %v234 = vunpack.c.h.b16 %v71
    %v235 = vunpack.c.l.b16 %v72
    %v236 = vunpack.c.h.b16 %v72
    %v237 = vunpack.c.l.b16 %v73
    %v238 = vunpack.c.h.b16 %v73
    %v239 = vunpack.c.l.b16 %v74
    %v240 = vunpack.c.h.b16 %v74
    %v241 = vunpack.c.l.b16 %v75
    %v242 = vunpack.c.h.b16 %v75
    %v243 = vunpack.c.l.b16 %v76
    %v244 = vunpack.c.h.b16 %v76
    %v245 = vunpack.c.l.b16 %v77
    %v246 = vunpack.c.h.b16 %v77
    %v247 = vunpack.c.l.b16 %v78
    %v248 = vunpack.c.h.b16 %v78
    %v249 = vunpack.c.l.b16 %v79
    %v250 = vunpack.c.h.b16 %v79
    %v251 = vunpack.c.l.b16 %v80
    %v252 = vunpack.c.h.b16 %v80
    %v253 = vunpack.c.l.b16 %v81
    %v254 = vunpack.c.h.b16 %v81
    %v255 = vunpack.c.l.b16 %v82
    %v256 = vunpack.c.h.b16 %v82
    %v257 = vunpack.c.l.b16 %v83
    %v258 = vunpack.c.h.b16 %v83
    %v259 = vunpack.c.l.b16 %v84
    %v260 = vunpack.c.h.b16 %v84
    %v261 = vpack.c.b16 %v237, %v229
    %v262 = vpack.c.b16 %v238, %v230
    %v263 = vpack.c.b16 %v239, %v231
    %v264 = vpack.c.b16 %v240, %v232
    %v265 = vpack.c.b16 %v241, %v233
    %v266 = vpack.c.b16 %v242, %v234
    %v267 = vpack.c.b16 %v243, %v235
    %v268 = vpack.c.b16 %v244, %v236
    %v269 = vpack.c.b16 %v253, %v245
    %v270 = vpack.c.b16 %v254, %v246
    %v271 = vpack.c.b16 %v255, %v247
    %v272 = vpack.c.b16 %v256, %v248
    %v273 = vpack.c.b16 %v257, %v249
    %v274 = vpack.c.b16 %v258, %v250
    %v275 = vpack.c.b16 %v259, %v251
    %v276 = vpack.c.b16 %v260, %v252
    %v421 = vunpack.c.l.b16 %v85
    %v422 = vunpack.c.l.b16 %v86
    %v423 = vunpack.c.l.b16 %v87
    %v424 = vunpack.c.l.b16 %v88
    %v425 = vunpack.c.l.b16 %v89
    %v426 = vunpack.c.l.b16 %v90
    %v427 = vunpack.c.l.b16 %v91
    %v428 = vunpack.c.l.b16 %v92
    %v429 = vunpack.c.l.b16 %v93
    %v430 = vunpack.c.l.b16 %v94
    %v431 = vunpack.c.l.b16 %v95
    %v432 = vunpack.c.l.b16 %v96
    %v433 = vunpack.c.l.b16 %v97
    %v434 = vunpack.c.l.b16 %v98
    %v435 = vunpack.c.l.b16 %v99
    %v436 = vunpack.c.l.b16 %v100
    %v437 = vunpack.c.l.b16 %v101
    %v438 = vunpack.c.l.b16 %v102
    %v439 = vunpack.c.l.b16 %v103
    %v440 = vunpack.c.l.b16 %v104
    %v441 = vunpack.c.l.b16 %v105
    %v442 = vunpack.c.l.b16 %v106
    %v443 = vunpack.c.l.b16 %v107
    %v444 = vunpack.c.l.b16 %v108
    %v445 = vunpack.c.l.b16 %v109
    %v446 = vunpack.c.l.b16 %v110
    %v447 = vunpack.c.l.b16 %v111
    %v448 = vunpack.c.l.b16 %v112
    %v449 = vunpack.c.l.b16 %v113
    %v450 = vunpack.c.l.b16 %v114
    %v451 = vunpack.c.l.b16 %v115
    %v452 = vunpack.c.l.b16 %v116
    %v453 = vunpack.c.l.b16 %v117
    %v454 = vunpack.c.l.b16 %v118
    %v455 = vunpack.c.l.b16 %v119
    %v456 = vunpack.c.l.b16 %v120
    %v457 = vunpack.c.l.b16 %v121
    %v458 = vunpack.c.l.b16 %v122
    %v459 = vunpack.c.l.b16 %v123
    %v460 = vunpack.c.l.b16 %v124
    %v461 = vunpack.c.l.b16 %v125
    %v462 = vunpack.c.l.b16 %v126
    %v463 = vunpack.c.l.b16 %v127
    %v464 = vunpack.c.l.b16 %v128
    %v465 = vunpack.c.l.b16 %v129
    %v466 = vunpack.c.l.b16 %v130
    %v467 = vunpack.c.l.b16 %v131
    %v468 = vunpack.c.l.b16 %v132
    %v469 = vunpack.c.l.b16 %v133
    %v470 = vunpack.c.l.b16 %v134
    %v471 = vunpack.c.l.b16 %v135
    %v472 = vunpack.c.l.b16 %v136
    %v473 = vunpack.c.l.b16 %v137
    %v474 = vunpack.c.l.b16 %v138
    %v475 = vunpack.c.l.b16 %v139
    %v476 = vunpack.c.l.b16 %v140
    %v477 = vunpack.c.l.b16 %v141
    %v478 = vunpack.c.l.b16 %v142
    %v479 = vunpack.c.l.b16 %v143
    %v480 = vunpack.c.l.b16 %v144
    %v481 = vunpack.c.l.b16 %v145
    %v482 = vunpack.c.l.b16 %v146
    %v483 = vunpack.c.l.b16 %v147
    %v484 = vunpack.c.l.b16 %v148
    %v485 = vunpack.c.l.b16 %v149
    %v486 = vunpack.c.l.b16 %v150
    %v487 = vunpack.c.l.b16 %v151
    %v488 = vunpack.c.l.b16 %v152
    %v489 = vunpack.c.l.b16 %v153
    %v490 = vunpack.c.l.b16 %v154
    %v491 = vunpack.c.l.b16 %v155
    %v492 = vunpack.c.l.b16 %v156
    %v493 = vunpack.c.l.b16 %v157
    %v494 = vunpack.c.l.b16 %v158
    %v495 = vunpack.c.l.b16 %v159
    %v496 = vunpack.c.l.b16 %v160
    %v497 = vunpack.c.l.b16 %v161
    %v498 = vunpack.c.l.b16 %v162
    %v499 = vunpack.c.l.b16 %v163
    %v500 = vunpack.c.l.b16 %v164
    %v501 = vunpack.c.l.b16 %v165
    %v502 = vunpack.c.l.b16 %v166
    %v503 = vunpack.c.l.b16 %v167
    %v504 = vunpack.c.l.b16 %v168
    %v505 = vunpack.c.l.b16 %v169
    %v506 = vunpack.c.l.b16 %v170
    %v507 = vunpack.c.l.b16 %v171
    %v508 = vunpack.c.l.b16 %v172
    %v509 = vunpack.c.l.b16 %v173
    %v510 = vunpack.c.l.b16 %v174
    %v511 = vunpack.c.l.b16 %v175
    %v512 = vunpack.c.l.b16 %v176
    %v513 = vunpack.c.l.b16 %v177
    %v514 = vunpack.c.l.b16 %v178
    %v515 = vunpack.c.l.b16 %v179
    %v516 = vunpack.c.l.b16 %v180
    %v517 = vunpack.c.l.b16 %v181
    %v518 = vunpack.c.l.b16 %v182
    %v519 = vunpack.c.l.b16 %v183
    %v520 = vunpack.c.l.b16 %v184
    %v521 = vunpack.c.l.b16 %v185
    %v522 = vunpack.c.l.b16 %v186
    %v523 = vunpack.c.l.b16 %v187
    %v524 = vunpack.c.l.b16 %v188
    %v525 = vunpack.c.l.b16 %v189
    %v526 = vunpack.c.l.b16 %v190
    %v527 = vunpack.c.l.b16 %v191
    %v528 = vunpack.c.l.b16 %v192
    %v529 = vunpack.c.l.b16 %v193
    %v530 = vunpack.c.l.b16 %v194
    %v531 = vunpack.c.l.b16 %v195
    %v532 = vunpack.c.l.b16 %v196
    %v533 = vunpack.c.l.b16 %v197
    %v534 = vunpack.c.l.b16 %v198
    %v535 = vunpack.c.l.b16 %v199
    %v536 = vunpack.c.l.b16 %v200
    %v537 = vunpack.c.l.b16 %v201
    %v538 = vunpack.c.l.b16 %v202
    %v539 = vunpack.c.l.b16 %v203
    %v540 = vunpack.c.l.b16 %v204
    %v541 = vunpack.c.l.b16 %v205
    %v542 = vunpack.c.l.b16 %v206
    %v543 = vunpack.c.l.b16 %v207
    %v544 = vunpack.c.l.b16 %v208
    %v545 = vunpack.c.l.b16 %v209
    %v546 = vunpack.c.l.b16 %v210
    %v547 = vunpack.c.l.b16 %v211
    %v548 = vunpack.c.l.b16 %v212
    %v549 = vpack.c.b16 %v422, %v421
    %v550 = vpack.c.b16 %v424, %v423
    %v551 = vpack.c.b16 %v426, %v425
    %v552 = vpack.c.b16 %v428, %v427
    %v553 = vpack.c.b16 %v430, %v429
    %v554 = vpack.c.b16 %v432, %v431
    %v555 = vpack.c.b16 %v434, %v433
    %v556 = vpack.c.b16 %v436, %v435
    %v557 = vpack.c.b16 %v438, %v437
    %v558 = vpack.c.b16 %v440, %v439
    %v559 = vpack.c.b16 %v442, %v441
    %v560 = vpack.c.b16 %v444, %v443
    %v561 = vpack.c.b16 %v446, %v445
    %v562 = vpack.c.b16 %v448, %v447
    %v563 = vpack.c.b16 %v450, %v449
    %v564 = vpack.c.b16 %v452, %v451
    %v565 = vpack.c.b16 %v454, %v453
    %v566 = vpack.c.b16 %v456, %v455
    %v567 = vpack.c.b16 %v458, %v457
    %v568 = vpack.c.b16 %v460, %v459
    %v569 = vpack.c.b16 %v462, %v461
    %v570 = vpack.c.b16 %v464, %v463
    %v571 = vpack.c.b16 %v466, %v465
    %v572 = vpack.c.b16 %v468, %v467
    %v573 = vpack.c.b16 %v470, %v469
    %v574 = vpack.c.b16 %v472, %v471
    %v575 = vpack.c.b16 %v474, %v473
    %v576 = vpack.c.b16 %v476, %v475
    %v577 = vpack.c.b16 %v478, %v477
    %v578 = vpack.c.b16 %v480, %v479
    %v579 = vpack.c.b16 %v482, %v481
    %v580 = vpack.c.b16 %v484, %v483
    %v581 = vpack.c.b16 %v486, %v485
    %v582 = vpack.c.b16 %v488, %v487
    %v583 = vpack.c.b16 %v490, %v489
    %v584 = vpack.c.b16 %v492, %v491
    %v585 = vpack.c.b16 %v494, %v493
    %v586 = vpack.c.b16 %v496, %v495
    %v587 = vpack.c.b16 %v498, %v497
    %v588 = vpack.c.b16 %v500, %v499
    %v589 = vpack.c.b16 %v502, %v501
    %v590 = vpack.c.b16 %v504, %v503
    %v591 = vpack.c.b16 %v506, %v505
    %v592 = vpack.c.b16 %v508, %v507
    %v593 = vpack.c.b16 %v510, %v509
    %v594 = vpack.c.b16 %v512, %v511
    %v595 = vpack.c.b16 %v514, %v513
    %v596 = vpack.c.b16 %v516, %v515
    %v597 = vpack.c.b16 %v518, %v517
    %v598 = vpack.c.b16 %v520, %v519
    %v599 = vpack.c.b16 %v522, %v521
    %v600 = vpack.c.b16 %v524, %v523
    %v601 = vpack.c.b16 %v526, %v525
    %v602 = vpack.c.b16 %v528, %v527
    %v603 = vpack.c.b16 %v530, %v529
    %v604 = vpack.c.b16 %v532, %v531
    %v605 = vpack.c.b16 %v534, %v533
    %v606 = vpack.c.b16 %v536, %v535
    %v607 = vpack.c.b16 %v538, %v537
    %v608 = vpack.c.b16 %v540, %v539
    %v609 = vpack.c.b16 %v542, %v541
    %v610 = vpack.c.b16 %v544, %v543
    %v611 = vpack.c.b16 %v546, %v545
    %v612 = vpack.c.b16 %v548, %v547
    %677 = vmatprep.subr.bf16.mxu0 0
    %678 = vmatpush1.bf16.msra.mxu0 %v549
    %679 = vmatprep.subr.bf16.mxu0 0
    %680 = vmatpush1.bf16.msra.mxu0 %v550
    %681 = vmatprep.subr.bf16.mxu0 0
    %682 = vmatpush1.bf16.msra.mxu0 %v551
    %683 = vmatprep.subr.bf16.mxu0 0
    %684 = vmatpush1.bf16.msra.mxu0 %v552
    %685 = vmatprep.subr.bf16.mxu0 0
    %686 = vmatpush1.bf16.msra.mxu0 %v553
    %687 = vmatprep.subr.bf16.mxu0 0
    %688 = vmatpush1.bf16.msra.mxu0 %v554
    %689 = vmatprep.subr.bf16.mxu0 0
    %690 = vmatpush1.bf16.msra.mxu0 %v555
    %691 = vmatprep.subr.bf16.mxu0 0
    %692 = vmatpush1.bf16.msra.mxu0 %v556
    %693 = vmatprep.subr.bf16.mxu0 0
    %694 = vmatpush1.bf16.msra.mxu0 %v557
    %695 = vmatprep.subr.bf16.mxu0 0
    %696 = vmatpush1.bf16.msra.mxu0 %v558
    %697 = vmatprep.subr.bf16.mxu0 0
    %698 = vmatpush1.bf16.msra.mxu0 %v559
    %699 = vmatprep.subr.bf16.mxu0 0
    %700 = vmatpush1.bf16.msra.mxu0 %v560
    %701 = vmatprep.subr.bf16.mxu0 0
    %702 = vmatpush1.bf16.msra.mxu0 %v561
    %703 = vmatprep.subr.bf16.mxu0 0
    %704 = vmatpush1.bf16.msra.mxu0 %v562
    %705 = vmatprep.subr.bf16.mxu0 0
    %706 = vmatpush1.bf16.msra.mxu0 %v563
    %707 = vmatprep.subr.bf16.mxu0 0
    %708 = vmatpush1.bf16.msra.mxu0 %v564
    %709 = vmatprep.mubr.bf16.mxu0 %v262
    %710 = vmatmul.mubr.bf16.gmra.mrb[0].mxu0 %v261
    %v711 = vpop.f32.mrb[0].mxu0
    %v712 = vadd.f32 0.0, %v711
    %v713 = vpop.f32.mrb[0].mxu0
    %v714 = vpop.f32.mrb[0].mxu0
    %v715 = vadd.f32 0.0, %v714
    %v716 = vpop.f32.mrb[0].mxu0
    %717 = vmatprep.mubr.bf16.mxu0 %v270
    %718 = vmatmul.mubr.bf16.gmra.mrb[0].mxu0 %v269
    %v719 = vpop.f32.mrb[0].mxu0
    %v720 = vadd.f32 0.0, %v719
    %v721 = vpop.f32.mrb[0].mxu0
    %v722 = vpop.f32.mrb[0].mxu0
    %v723 = vadd.f32 0.0, %v722
    %v724 = vpop.f32.mrb[0].mxu0
    %725 = vdwg.mxu0
    %726 = vmatprep.subr.bf16.mxu0 0
    %727 = vmatpush1.bf16.msra.mxu0 %v565
    %728 = vmatprep.subr.bf16.mxu0 0
    %729 = vmatpush1.bf16.msra.mxu0 %v566
    %730 = vmatprep.subr.bf16.mxu0 0
    %731 = vmatpush1.bf16.msra.mxu0 %v567
    %732 = vmatprep.subr.bf16.mxu0 0
    %733 = vmatpush1.bf16.msra.mxu0 %v568
    %734 = vmatprep.subr.bf16.mxu0 0
    %735 = vmatpush1.bf16.msra.mxu0 %v569
    %736 = vmatprep.subr.bf16.mxu0 0
    %737 = vmatpush1.bf16.msra.mxu0 %v570
    %738 = vmatprep.subr.bf16.mxu0 0
    %739 = vmatpush1.bf16.msra.mxu0 %v571
    %740 = vmatprep.subr.bf16.mxu0 0
    %741 = vmatpush1.bf16.msra.mxu0 %v572
    %742 = vmatprep.subr.bf16.mxu0 0
    %743 = vmatpush1.bf16.msra.mxu0 %v573
    %744 = vmatprep.subr.bf16.mxu0 0
    %745 = vmatpush1.bf16.msra.mxu0 %v574
    %746 = vmatprep.subr.bf16.mxu0 0
    %747 = vmatpush1.bf16.msra.mxu0 %v575
    %748 = vmatprep.subr.bf16.mxu0 0
    %749 = vmatpush1.bf16.msra.mxu0 %v576
    %750 = vmatprep.subr.bf16.mxu0 0
    %751 = vmatpush1.bf16.msra.mxu0 %v577
    %752 = vmatprep.subr.bf16.mxu0 0
    %753 = vmatpush1.bf16.msra.mxu0 %v578
    %754 = vmatprep.subr.bf16.mxu0 0
    %755 = vmatpush1.bf16.msra.mxu0 %v579
    %756 = vmatprep.subr.bf16.mxu0 0
    %757 = vmatpush1.bf16.msra.mxu0 %v580
    %758 = vmatprep.mubr.bf16.mxu0 %v264
    %759 = vmatmul.mubr.bf16.gmra.mrb[0].mxu0 %v263
    %v760 = vpop.f32.mrb[0].mxu0
    %v761 = vadd.f32 %v712, %v760
    %v762 = vpop.f32.mrb[0].mxu0
    %v763 = vpop.f32.mrb[0].mxu0
    %v764 = vadd.f32 %v715, %v763
    %v765 = vpop.f32.mrb[0].mxu0
    %766 = vmatprep.mubr.bf16.mxu0 %v272
    %767 = vmatmul.mubr.bf16.gmra.mrb[0].mxu0 %v271
    %v768 = vpop.f32.mrb[0].mxu0
    %v769 = vadd.f32 %v720, %v768
    %v770 = vpop.f32.mrb[0].mxu0
    %v771 = vpop.f32.mrb[0].mxu0
    %v772 = vadd.f32 %v723, %v771
    %v773 = vpop.f32.mrb[0].mxu0
    %774 = vdwg.mxu0
    %775 = vmatprep.subr.bf16.mxu0 0
    %776 = vmatpush1.bf16.msra.mxu0 %v581
    %777 = vmatprep.subr.bf16.mxu0 0
    %778 = vmatpush1.bf16.msra.mxu0 %v582
    %779 = vmatprep.subr.bf16.mxu0 0
    %780 = vmatpush1.bf16.msra.mxu0 %v583
    %781 = vmatprep.subr.bf16.mxu0 0
    %782 = vmatpush1.bf16.msra.mxu0 %v584
    %783 = vmatprep.subr.bf16.mxu0 0
    %784 = vmatpush1.bf16.msra.mxu0 %v585
    %785 = vmatprep.subr.bf16.mxu0 0
    %786 = vmatpush1.bf16.msra.mxu0 %v586
    %787 = vmatprep.subr.bf16.mxu0 0
    %788 = vmatpush1.bf16.msra.mxu0 %v587
    %789 = vmatprep.subr.bf16.mxu0 0
    %790 = vmatpush1.bf16.msra.mxu0 %v588
    %791 = vmatprep.subr.bf16.mxu0 0
    %792 = vmatpush1.bf16.msra.mxu0 %v589
    %793 = vmatprep.subr.bf16.mxu0 0
    %794 = vmatpush1.bf16.msra.mxu0 %v590
    %795 = vmatprep.subr.bf16.mxu0 0
    %796 = vmatpush1.bf16.msra.mxu0 %v591
    %797 = vmatprep.subr.bf16.mxu0 0
    %798 = vmatpush1.bf16.msra.mxu0 %v592
    %799 = vmatprep.subr.bf16.mxu0 0
    %800 = vmatpush1.bf16.msra.mxu0 %v593
    %801 = vmatprep.subr.bf16.mxu0 0
    %802 = vmatpush1.bf16.msra.mxu0 %v594
    %803 = vmatprep.subr.bf16.mxu0 0
    %804 = vmatpush1.bf16.msra.mxu0 %v595
    %805 = vmatprep.subr.bf16.mxu0 0
    %806 = vmatpush1.bf16.msra.mxu0 %v596
    %807 = vmatprep.mubr.bf16.mxu0 %v266
    %808 = vmatmul.mubr.bf16.gmra.mrb[0].mxu0 %v265
    %v809 = vpop.f32.mrb[0].mxu0
    %v810 = vadd.f32 %v761, %v809
    %v811 = vpop.f32.mrb[0].mxu0
    %v812 = vpop.f32.mrb[0].mxu0
    %v813 = vadd.f32 %v764, %v812
    %v814 = vpop.f32.mrb[0].mxu0
    %815 = vmatprep.mubr.bf16.mxu0 %v274
    %816 = vmatmul.mubr.bf16.gmra.mrb[0].mxu0 %v273
    %v817 = vpop.f32.mrb[0].mxu0
    %v818 = vadd.f32 %v769, %v817
    %v819 = vpop.f32.mrb[0].mxu0
    %v820 = vpop.f32.mrb[0].mxu0
    %v821 = vadd.f32 %v772, %v820
    %v822 = vpop.f32.mrb[0].mxu0
    %823 = vdwg.mxu0
    %824 = vmatprep.subr.bf16.mxu0 0
    %825 = vmatpush1.bf16.msra.mxu0 %v597
    %826 = vmatprep.subr.bf16.mxu0 0
    %827 = vmatpush1.bf16.msra.mxu0 %v598
    %828 = vmatprep.subr.bf16.mxu0 0
    %829 = vmatpush1.bf16.msra.mxu0 %v599
    %830 = vmatprep.subr.bf16.mxu0 0
    %831 = vmatpush1.bf16.msra.mxu0 %v600
    %832 = vmatprep.subr.bf16.mxu0 0
    %833 = vmatpush1.bf16.msra.mxu0 %v601
    %834 = vmatprep.subr.bf16.mxu0 0
    %835 = vmatpush1.bf16.msra.mxu0 %v602
    %836 = vmatprep.subr.bf16.mxu0 0
    %837 = vmatpush1.bf16.msra.mxu0 %v603
    %838 = vmatprep.subr.bf16.mxu0 0
    %839 = vmatpush1.bf16.msra.mxu0 %v604
    %840 = vmatprep.subr.bf16.mxu0 0
    %841 = vmatpush1.bf16.msra.mxu0 %v605
    %842 = vmatprep.subr.bf16.mxu0 0
    %843 = vmatpush1.bf16.msra.mxu0 %v606
    %844 = vmatprep.subr.bf16.mxu0 0
    %845 = vmatpush1.bf16.msra.mxu0 %v607
    %846 = vmatprep.subr.bf16.mxu0 0
    %847 = vmatpush1.bf16.msra.mxu0 %v608
    %848 = vmatprep.subr.bf16.mxu0 0
    %849 = vmatpush1.bf16.msra.mxu0 %v609
    %850 = vmatprep.subr.bf16.mxu0 0
    %851 = vmatpush1.bf16.msra.mxu0 %v610
    %852 = vmatprep.subr.bf16.mxu0 0
    %853 = vmatpush1.bf16.msra.mxu0 %v611
    %854 = vmatprep.subr.bf16.mxu0 0
    %855 = vmatpush1.bf16.msra.mxu0 %v612
    %856 = vmatprep.mubr.bf16.mxu0 %v268
    %857 = vmatmul.mubr.bf16.gmra.mrb[0].mxu0 %v267
    %v858 = vpop.f32.mrb[0].mxu0
    %v859 = vadd.f32 %v810, %v858
    %v860 = vpop.f32.mrb[0].mxu0
    %v861 = vpop.f32.mrb[0].mxu0
    %v862 = vadd.f32 %v813, %v861
    %v863 = vpop.f32.mrb[0].mxu0
    %864 = vmatprep.mubr.bf16.mxu0 %v276
    %865 = vmatmul.mubr.bf16.gmra.mrb[0].mxu0 %v275
    %v866 = vpop.f32.mrb[0].mxu0
    %v867 = vadd.f32 %v818, %v866
    %v868 = vpop.f32.mrb[0].mxu0
    %v869 = vpop.f32.mrb[0].mxu0
    %v870 = vadd.f32 %v821, %v869
    %v871 = vpop.f32.mrb[0].mxu0
    %872 = vdwg.mxu0
    %v873 = vadd.f32 %v65, %v859
    %v874 = vadd.f32 %v66, %v862
    %v875 = vadd.f32 %v67, %v867
    %v876 = vadd.f32 %v68, %v870
    %877 = vst [vmem:[#allocation2] sm:$0xff] %v873
    %878 = vst [vmem:[#allocation2 + $0x8] sm:$0xff] %v874
    %879 = vst [vmem:[#allocation2 + $0x10] sm:$0xff] %v875
    %880 = vst [vmem:[#allocation2 + $0x18] sm:$0xff] %v876
    // Predicated region
    $region30: #{tpu_custom_call.1} parent=1 // pred_check
      %p881 = pneg %p57
    $region31: #{tpu_custom_call.1} parent=1 // pred_check_branch
      %883 = sbr.rel (%p881) target = $region33
    $region32: #{tpu_custom_call.1} parent=1 // pred_region
      %v884 = vld [vmem:[#allocation2] sm:$0xff]
      %v885 = vld [vmem:[#allocation2 + $0x8] sm:$0xff]
      %v886 = vld [vmem:[#allocation2 + $0x10] sm:$0xff]
      %v887 = vld [vmem:[#allocation2 + $0x18] sm:$0xff]
      %v888 = vld [vmem:[#allocation8] sm:$0xff]
      %v889 = vld [vmem:[#allocation8 + $0x8] sm:$0xff]
      %890 = vxpose.xlu0.b32.start [1/16] %v888, 128
      %891 = vxpose.xlu0.b32.cont [2/16] %v889, 128
      %892 = vxpose.xlu0.b32.cont [3/16] 0.0, 128
      %893 = vxpose.xlu0.b32.cont [4/16] 0.0, 128
      %894 = vxpose.xlu0.b32.cont [5/16] 0.0, 128
      %895 = vxpose.xlu0.b32.cont [6/16] 0.0, 128
      %896 = vxpose.xlu0.b32.cont [7/16] 0.0, 128
      %897 = vxpose.xlu0.b32.cont [8/16] 0.0, 128
      %898 = vxpose.xlu0.b32.cont [9/16] 0.0, 128
      %899 = vxpose.xlu0.b32.cont [10/16] 0.0, 128
      %900 = vxpose.xlu0.b32.cont [11/16] 0.0, 128
      %901 = vxpose.xlu0.b32.cont [12/16] 0.0, 128
      %902 = vxpose.xlu0.b32.cont [13/16] 0.0, 128
      %903 = vxpose.xlu0.b32.cont [14/16] 0.0, 128
      %904 = vxpose.xlu0.b32.cont [15/16] 0.0, 128
      %905 = vxpose.xlu0.b32.end [16/16] 0.0, 128
      %v906 = vpop.trf.xlu0
      %v907 = vpop.trf.xlu0
      %v908 = vpop.trf.xlu0
      %v909 = vpop.trf.xlu0
      %v910 = vpop.trf.xlu0
      %v911 = vpop.trf.xlu0
      %v912 = vpop.trf.xlu0
      %v913 = vpop.trf.xlu0
      %v914 = vpop.trf.xlu0
      %v915 = vpop.trf.xlu0
      %v916 = vpop.trf.xlu0
      %v917 = vpop.trf.xlu0
      %v918 = vpop.trf.xlu0
      %v919 = vpop.trf.xlu0
      %v920 = vpop.trf.xlu0
      %v921 = vpop.trf.xlu0
      %vm922 = vcmask 130048
      %v924 = vsel %vm922, %v906, 0
      %v927 = vsel %vm922, %v907, 0
      %v930 = vsel %vm922, %v908, 0
      %v933 = vsel %vm922, %v909, 0
      %v936 = vsel %vm922, %v910, 0
      %v939 = vsel %vm922, %v911, 0
      %v942 = vsel %vm922, %v912, 0
      %v945 = vsel %vm922, %v913, 0
      %v948 = vsel %vm922, %v914, 0
      %v951 = vsel %vm922, %v915, 0
      %v954 = vsel %vm922, %v916, 0
      %v957 = vsel %vm922, %v917, 0
      %v960 = vsel %vm922, %v918, 0
      %v963 = vsel %vm922, %v919, 0
      %v966 = vsel %vm922, %v920, 0
      %v969 = vsel %vm922, %v921, 0
      %971 = vmatprep.subr.mxu0 0.0
      %972 = vmatpush1.msra.mxu0 %v886
      %973 = vmatprep.subr.mxu0 0.0
      %974 = vmatpush1.msra.mxu0 %v887
      %975 = vmatprep.subr.mxu0 0.0
      %976 = vmatpush1.msra.mxu0 0.0
      %977 = vmatprep.subr.mxu0 0.0
      %978 = vmatpush1.msra.mxu0 0.0
      %979 = vmatprep.subr.mxu0 0.0
      %980 = vmatpush1.msra.mxu0 0.0
      %981 = vmatprep.subr.mxu0 0.0
      %982 = vmatpush1.msra.mxu0 0.0
      %983 = vmatprep.subr.mxu0 0.0
      %984 = vmatpush1.msra.mxu0 0.0
      %985 = vmatprep.subr.mxu0 0.0
      %986 = vmatpush1.msra.mxu0 0.0
      %987 = vmatprep.subr.mxu0 0.0
      %988 = vmatpush1.msra.mxu0 0.0
      %989 = vmatprep.subr.mxu0 0.0
      %990 = vmatpush1.msra.mxu0 0.0
      %991 = vmatprep.subr.mxu0 0.0
      %992 = vmatpush1.msra.mxu0 0.0
      %993 = vmatprep.subr.mxu0 0.0
      %994 = vmatpush1.msra.mxu0 0.0
      %995 = vmatprep.subr.mxu0 0.0
      %996 = vmatpush1.msra.mxu0 0.0
      %997 = vmatprep.subr.mxu0 0.0
      %998 = vmatpush1.msra.mxu0 0.0
      %999 = vmatprep.subr.mxu0 0.0
      %1000 = vmatpush1.msra.mxu0 0.0
      %1001 = vmatprep.subr.mxu0 0.0
      %1002 = vmatpush1.msra.mxu0 0.0
      %1003 = vmatprep.subr.mxu0 0.0
      %1004 = vmatpush1.msra.mxu0 0.0
      %1005 = vmatprep.subr.mxu0 0.0
      %1006 = vmatpush1.msra.mxu0 0.0
      %1007 = vmatprep.subr.mxu0 0.0
      %1008 = vmatpush1.msra.mxu0 0.0
      %1009 = vmatprep.subr.mxu0 0.0
      %1010 = vmatpush1.msra.mxu0 0.0
      %1011 = vmatprep.subr.mxu0 0.0
      %1012 = vmatpush1.msra.mxu0 0.0
      %1013 = vmatprep.subr.mxu0 0.0
      %1014 = vmatpush1.msra.mxu0 0.0
      %1015 = vmatprep.subr.mxu0 0.0
      %1016 = vmatpush1.msra.mxu0 0.0
      %1017 = vmatprep.subr.mxu0 0.0
      %1018 = vmatpush1.msra.mxu0 0.0
      %1019 = vmatprep.subr.mxu0 0.0
      %1020 = vmatpush1.msra.mxu0 0.0
      %1021 = vmatprep.subr.mxu0 0.0
      %1022 = vmatpush1.msra.mxu0 0.0
      %1023 = vmatprep.subr.mxu0 0.0
      %1024 = vmatpush1.msra.mxu0 0.0
      %1025 = vmatprep.subr.mxu0 0.0
      %1026 = vmatpush1.msra.mxu0 0.0
      %1027 = vmatprep.subr.mxu0 0.0
      %1028 = vmatpush1.msra.mxu0 0.0
      %1029 = vmatprep.subr.mxu0 0.0
      %1030 = vmatpush1.msra.mxu0 0.0
      %1031 = vmatprep.subr.mxu0 0.0
      %1032 = vmatpush1.msra.mxu0 0.0
      %1033 = vmatprep.subr.mxu0 0.0
      %1034 = vmatpush1.msra.mxu0 0.0
      %1035 = vmatprep.mubr.f32.mxu0 0.0
      %1036 = vmatmul.mubr.f32.gmra.mrb[0].mxu0 %v924
      %v1037 = vpop.f32.mrb[0].mxu0
      %v1038 = vadd.f32 0.0, %v1037
      %v1039 = vpop.f32.mrb[0].mxu0
      %1040 = vmatprep.mubr.f32.mxu0 0.0
      %1041 = vmatmul.mubr.f32.gmra.mrb[0].mxu0 %v927
      %v1042 = vpop.f32.mrb[0].mxu0
      %v1043 = vadd.f32 0.0, %v1042
      %v1044 = vpop.f32.mrb[0].mxu0
      %1045 = vmatprep.mubr.f32.mxu0 0.0
      %1046 = vmatmul.mubr.f32.gmra.mrb[0].mxu0 %v930
      %v1047 = vpop.f32.mrb[0].mxu0
      %v1048 = vadd.f32 0.0, %v1047
      %v1049 = vpop.f32.mrb[0].mxu0
      %1050 = vmatprep.mubr.f32.mxu0 0.0
      %1051 = vmatmul.mubr.f32.gmra.mrb[0].mxu0 %v933
      %v1052 = vpop.f32.mrb[0].mxu0
      %v1053 = vadd.f32 0.0, %v1052
      %v1054 = vpop.f32.mrb[0].mxu0
      %1055 = vmatprep.mubr.f32.mxu0 0.0
      %1056 = vmatmul.mubr.f32.gmra.mrb[0].mxu0 %v936
      %v1057 = vpop.f32.mrb[0].mxu0
      %v1058 = vadd.f32 0.0, %v1057
      %v1059 = vpop.f32.mrb[0].mxu0
      %1060 = vmatprep.mubr.f32.mxu0 0.0
      %1061 = vmatmul.mubr.f32.gmra.mrb[0].mxu0 %v939
      %v1062 = vpop.f32.mrb[0].mxu0
      %v1063 = vadd.f32 0.0, %v1062
      %v1064 = vpop.f32.mrb[0].mxu0
      %1065 = vmatprep.mubr.f32.mxu0 0.0
      %1066 = vmatmul.mubr.f32.gmra.mrb[0].mxu0 %v942
      %v1067 = vpop.f32.mrb[0].mxu0
      %v1068 = vadd.f32 0.0, %v1067
      %v1069 = vpop.f32.mrb[0].mxu0
      %1070 = vmatprep.mubr.f32.mxu0 0.0
      %1071 = vmatmul.mubr.f32.gmra.mrb[0].mxu0 %v945
      %v1072 = vpop.f32.mrb[0].mxu0
      %v1073 = vadd.f32 0.0, %v1072
      %v1074 = vpop.f32.mrb[0].mxu0
      %1075 = vmatprep.mubr.f32.mxu0 0.0
      %1076 = vmatmul.mubr.f32.gmra.mrb[0].mxu0 %v948
      %v1077 = vpop.f32.mrb[0].mxu0
      %v1078 = vadd.f32 0.0, %v1077
      %v1079 = vpop.f32.mrb[0].mxu0
      %1080 = vmatprep.mubr.f32.mxu0 0.0
      %1081 = vmatmul.mubr.f32.gmra.mrb[0].mxu0 %v951
      %v1082 = vpop.f32.mrb[0].mxu0
      %v1083 = vadd.f32 0.0, %v1082
      %v1084 = vpop.f32.mrb[0].mxu0
      %1085 = vmatprep.mubr.f32.mxu0 0.0
      %1086 = vmatmul.mubr.f32.gmra.mrb[0].mxu0 %v954
      %v1087 = vpop.f32.mrb[0].mxu0
      %v1088 = vadd.f32 0.0, %v1087
      %v1089 = vpop.f32.mrb[0].mxu0
      %1090 = vmatprep.mubr.f32.mxu0 0.0
      %1091 = vmatmul.mubr.f32.gmra.mrb[0].mxu0 %v957
      %v1092 = vpop.f32.mrb[0].mxu0
      %v1093 = vadd.f32 0.0, %v1092
      %v1094 = vpop.f32.mrb[0].mxu0
      %1095 = vmatprep.mubr.f32.mxu0 0.0
      %1096 = vmatmul.mubr.f32.gmra.mrb[0].mxu0 %v960
      %v1097 = vpop.f32.mrb[0].mxu0
      %v1098 = vadd.f32 0.0, %v1097
      %v1099 = vpop.f32.mrb[0].mxu0
      %1100 = vmatprep.mubr.f32.mxu0 0.0
      %1101 = vmatmul.mubr.f32.gmra.mrb[0].mxu0 %v963
      %v1102 = vpop.f32.mrb[0].mxu0
      %v1103 = vadd.f32 0.0, %v1102
      %v1104 = vpop.f32.mrb[0].mxu0
      %1105 = vmatprep.mubr.f32.mxu0 0.0
      %1106 = vmatmul.mubr.f32.gmra.mrb[0].mxu0 %v966
      %v1107 = vpop.f32.mrb[0].mxu0
      %v1108 = vadd.f32 0.0, %v1107
      %v1109 = vpop.f32.mrb[0].mxu0
      %1110 = vmatprep.mubr.f32.mxu0 0.0
      %1111 = vmatmul.mubr.f32.gmra.mrb[0].mxu0 %v969
      %v1112 = vpop.f32.mrb[0].mxu0
      %v1113 = vadd.f32 0.0, %v1112
      %v1114 = vpop.f32.mrb[0].mxu0
      %1115 = vdwg.mxu0
      %v1118 = vcombine.high %v884, %v884
      %v1120 = vunpack.c.l.s4 1966171168
      %v1121 = vunpack.c.0.s8 %v1120
      %v1122 = vlaneseq
      %v1123 = vshrl.u32 %v1122, 7
      %v1124 = vsub.s32 %v1121, %v1123
      %v1125 = vrot.slane %v884, %v1124
      %v1127 = vunpack.c.l.s4 1966171168
      %v1128 = vunpack.c.0.s8 %v1127
      %v1129 = vlaneseq
      %v1130 = vshrl.u32 %v1129, 7
      %v1131 = vsub.s32 %v1128, %v1130
      %v1132 = vrot.slane %v1118, %v1131
      %v1133 = vcombine.high %v1125, %v1125
      %v1134 = vcombine.high %v1132, %v1132
      %v1136 = vunpack.c.l.s4 1966171168
      %v1137 = vunpack.c.0.s8 %v1136
      %v1138 = vlaneseq
      %v1139 = vshrl.u32 %v1138, 7
      %v1140 = vsub.s32 %v1137, %v1139
      %v1141 = vrot.slane %v1125, %v1140
      %v1143 = vunpack.c.l.s4 1966171168
      %v1144 = vunpack.c.0.s8 %v1143
      %v1145 = vlaneseq
      %v1146 = vshrl.u32 %v1145, 7
      %v1147 = vsub.s32 %v1144, %v1146
      %v1148 = vrot.slane %v1132, %v1147
      %v1150 = vunpack.c.l.s4 1966171168
      %v1151 = vunpack.c.0.s8 %v1150
      %v1152 = vlaneseq
      %v1153 = vshrl.u32 %v1152, 7
      %v1154 = vsub.s32 %v1151, %v1153
      %v1155 = vrot.slane %v1133, %v1154
      %v1157 = vunpack.c.l.s4 1966171168
      %v1158 = vunpack.c.0.s8 %v1157
      %v1159 = vlaneseq
      %v1160 = vshrl.u32 %v1159, 7
      %v1161 = vsub.s32 %v1158, %v1160
      %v1162 = vrot.slane %v1134, %v1161
      %v1163 = vcombine.high %v1141, %v1141
      %v1164 = vcombine.high %v1148, %v1148
      %v1165 = vcombine.high %v1155, %v1155
      %v1166 = vcombine.high %v1162, %v1162
      %v1167 = vcombine.high %v885, %v885
      %v1169 = vunpack.c.l.s4 1966171168
      %v1170 = vunpack.c.0.s8 %v1169
      %v1171 = vlaneseq
      %v1172 = vshrl.u32 %v1171, 7
      %v1173 = vsub.s32 %v1170, %v1172
      %v1174 = vrot.slane %v885, %v1173
      %v1176 = vunpack.c.l.s4 1966171168
      %v1177 = vunpack.c.0.s8 %v1176
      %v1178 = vlaneseq
      %v1179 = vshrl.u32 %v1178, 7
      %v1180 = vsub.s32 %v1177, %v1179
      %v1181 = vrot.slane %v1167, %v1180
      %v1182 = vcombine.high %v1174, %v1174
      %v1183 = vcombine.high %v1181, %v1181
      %v1185 = vunpack.c.l.s4 1966171168
      %v1186 = vunpack.c.0.s8 %v1185
      %v1187 = vlaneseq
      %v1188 = vshrl.u32 %v1187, 7
      %v1189 = vsub.s32 %v1186, %v1188
      %v1190 = vrot.slane %v1174, %v1189
      %v1192 = vunpack.c.l.s4 1966171168
      %v1193 = vunpack.c.0.s8 %v1192
      %v1194 = vlaneseq
      %v1195 = vshrl.u32 %v1194, 7
      %v1196 = vsub.s32 %v1193, %v1195
      %v1197 = vrot.slane %v1181, %v1196
      %v1199 = vunpack.c.l.s4 1966171168
      %v1200 = vunpack.c.0.s8 %v1199
      %v1201 = vlaneseq
      %v1202 = vshrl.u32 %v1201, 7
      %v1203 = vsub.s32 %v1200, %v1202
      %v1204 = vrot.slane %v1182, %v1203
      %v1206 = vunpack.c.l.s4 1966171168
      %v1207 = vunpack.c.0.s8 %v1206
      %v1208 = vlaneseq
      %v1209 = vshrl.u32 %v1208, 7
      %v1210 = vsub.s32 %v1207, %v1209
      %v1211 = vrot.slane %v1183, %v1210
      %v1212 = vcombine.high %v1190, %v1190
      %v1213 = vcombine.high %v1197, %v1197
      %v1214 = vcombine.high %v1204, %v1204
      %v1215 = vcombine.high %v1211, %v1211
      %v1216 = vlaneseq
      %v1217 = vshrl.u32 %v1216, 7
      %v1218 = vsub.s32 0, %v1217
      %v1219 = vrot.slane %v1141, %v1218
      %v1220 = vlaneseq
      %v1221 = vshrl.u32 %v1220, 7
      %v1222 = vsub.s32 0, %v1221
      %v1223 = vrot.slane %v1155, %v1222
      %v1224 = vlaneseq
      %v1225 = vshrl.u32 %v1224, 7
      %v1226 = vsub.s32 0, %v1225
      %v1227 = vrot.slane %v1163, %v1226
      %v1228 = vlaneseq
      %v1229 = vshrl.u32 %v1228, 7
      %v1230 = vsub.s32 0, %v1229
      %v1231 = vrot.slane %v1165, %v1230
      %v1232 = vlaneseq
      %v1233 = vshrl.u32 %v1232, 7
      %v1234 = vsub.s32 0, %v1233
      %v1235 = vrot.slane %v1148, %v1234
      %v1236 = vlaneseq
      %v1237 = vshrl.u32 %v1236, 7
      %v1238 = vsub.s32 0, %v1237
      %v1239 = vrot.slane %v1162, %v1238
      %v1240 = vlaneseq
      %v1241 = vshrl.u32 %v1240, 7
      %v1242 = vsub.s32 0, %v1241
      %v1243 = vrot.slane %v1164, %v1242
      %v1244 = vlaneseq
      %v1245 = vshrl.u32 %v1244, 7
      %v1246 = vsub.s32 0, %v1245
      %v1247 = vrot.slane %v1166, %v1246
      %v1248 = vlaneseq
      %v1249 = vshrl.u32 %v1248, 7
      %v1250 = vsub.s32 0, %v1249
      %v1251 = vrot.slane %v1190, %v1250
      %v1252 = vlaneseq
      %v1253 = vshrl.u32 %v1252, 7
      %v1254 = vsub.s32 0, %v1253
      %v1255 = vrot.slane %v1204, %v1254
      %v1256 = vlaneseq
      %v1257 = vshrl.u32 %v1256, 7
      %v1258 = vsub.s32 0, %v1257
      %v1259 = vrot.slane %v1212, %v1258
      %v1260 = vlaneseq
      %v1261 = vshrl.u32 %v1260, 7
      %v1262 = vsub.s32 0, %v1261
      %v1263 = vrot.slane %v1214, %v1262
      %v1264 = vlaneseq
      %v1265 = vshrl.u32 %v1264, 7
      %v1266 = vsub.s32 0, %v1265
      %v1267 = vrot.slane %v1197, %v1266
      %v1268 = vlaneseq
      %v1269 = vshrl.u32 %v1268, 7
      %v1270 = vsub.s32 0, %v1269
      %v1271 = vrot.slane %v1211, %v1270
      %v1272 = vlaneseq
      %v1273 = vshrl.u32 %v1272, 7
      %v1274 = vsub.s32 0, %v1273
      %v1275 = vrot.slane %v1213, %v1274
      %v1276 = vlaneseq
      %v1277 = vshrl.u32 %v1276, 7
      %v1278 = vsub.s32 0, %v1277
      %v1279 = vrot.slane %v1215, %v1278
      %v1296 = vsub.f32 %v1219, %v1038
      %v1297 = vsub.f32 %v1219, %v1043
      %v1298 = vsub.f32 %v1219, %v1048
      %v1299 = vsub.f32 %v1219, %v1053
      %v1300 = vsub.f32 %v1219, %v1058
      %v1301 = vsub.f32 %v1219, %v1063
      %v1302 = vsub.f32 %v1219, %v1068
      %v1303 = vsub.f32 %v1219, %v1073
      %v1304 = vsub.f32 %v1219, %v1078
      %v1305 = vsub.f32 %v1219, %v1083
      %v1306 = vsub.f32 %v1219, %v1088
      %v1307 = vsub.f32 %v1219, %v1093
      %v1308 = vsub.f32 %v1219, %v1098
      %v1309 = vsub.f32 %v1219, %v1103
      %v1310 = vsub.f32 %v1219, %v1108
      %v1311 = vsub.f32 %v1219, %v1113
      %v1312 = vsub.f32 %v1223, %v1038
      %v1313 = vsub.f32 %v1223, %v1043
      %v1314 = vsub.f32 %v1223, %v1048
      %v1315 = vsub.f32 %v1223, %v1053
      %v1316 = vsub.f32 %v1223, %v1058
      %v1317 = vsub.f32 %v1223, %v1063
      %v1318 = vsub.f32 %v1223, %v1068
      %v1319 = vsub.f32 %v1223, %v1073
      %v1320 = vsub.f32 %v1223, %v1078
      %v1321 = vsub.f32 %v1223, %v1083
      %v1322 = vsub.f32 %v1223, %v1088
      %v1323 = vsub.f32 %v1223, %v1093
      %v1324 = vsub.f32 %v1223, %v1098
      %v1325 = vsub.f32 %v1223, %v1103
      %v1326 = vsub.f32 %v1223, %v1108
      %v1327 = vsub.f32 %v1223, %v1113
      %v1328 = vsub.f32 %v1227, %v1038
      %v1329 = vsub.f32 %v1227, %v1043
      %v1330 = vsub.f32 %v1227, %v1048
      %v1331 = vsub.f32 %v1227, %v1053
      %v1332 = vsub.f32 %v1227, %v1058
      %v1333 = vsub.f32 %v1227, %v1063
      %v1334 = vsub.f32 %v1227, %v1068
      %v1335 = vsub.f32 %v1227, %v1073
      %v1336 = vsub.f32 %v1227, %v1078
      %v1337 = vsub.f32 %v1227, %v1083
      %v1338 = vsub.f32 %v1227, %v1088
      %v1339 = vsub.f32 %v1227, %v1093
      %v1340 = vsub.f32 %v1227, %v1098
      %v1341 = vsub.f32 %v1227, %v1103
      %v1342 = vsub.f32 %v1227, %v1108
      %v1343 = vsub.f32 %v1227, %v1113
      %v1344 = vsub.f32 %v1231, %v1038
      %v1345 = vsub.f32 %v1231, %v1043
      %v1346 = vsub.f32 %v1231, %v1048
      %v1347 = vsub.f32 %v1231, %v1053
      %v1348 = vsub.f32 %v1231, %v1058
      %v1349 = vsub.f32 %v1231, %v1063
      %v1350 = vsub.f32 %v1231, %v1068
      %v1351 = vsub.f32 %v1231, %v1073
      %v1352 = vsub.f32 %v1231, %v1078
      %v1353 = vsub.f32 %v1231, %v1083
      %v1354 = vsub.f32 %v1231, %v1088
      %v1355 = vsub.f32 %v1231, %v1093
      %v1356 = vsub.f32 %v1231, %v1098
      %v1357 = vsub.f32 %v1231, %v1103
      %v1358 = vsub.f32 %v1231, %v1108
      %v1359 = vsub.f32 %v1231, %v1113
      %v1360 = vsub.f32 %v1235, %v1038
      %v1361 = vsub.f32 %v1235, %v1043
      %v1362 = vsub.f32 %v1235, %v1048
      %v1363 = vsub.f32 %v1235, %v1053
      %v1364 = vsub.f32 %v1235, %v1058
      %v1365 = vsub.f32 %v1235, %v1063
      %v1366 = vsub.f32 %v1235, %v1068
      %v1367 = vsub.f32 %v1235, %v1073
      %v1368 = vsub.f32 %v1235, %v1078
      %v1369 = vsub.f32 %v1235, %v1083
      %v1370 = vsub.f32 %v1235, %v1088
      %v1371 = vsub.f32 %v1235, %v1093
      %v1372 = vsub.f32 %v1235, %v1098
      %v1373 = vsub.f32 %v1235, %v1103
      %v1374 = vsub.f32 %v1235, %v1108
      %v1375 = vsub.f32 %v1235, %v1113
      %v1376 = vsub.f32 %v1239, %v1038
      %v1377 = vsub.f32 %v1239, %v1043
      %v1378 = vsub.f32 %v1239, %v1048
      %v1379 = vsub.f32 %v1239, %v1053
      %v1380 = vsub.f32 %v1239, %v1058
      %v1381 = vsub.f32 %v1239, %v1063
      %v1382 = vsub.f32 %v1239, %v1068
      %v1383 = vsub.f32 %v1239, %v1073
      %v1384 = vsub.f32 %v1239, %v1078
      %v1385 = vsub.f32 %v1239, %v1083
      %v1386 = vsub.f32 %v1239, %v1088
      %v1387 = vsub.f32 %v1239, %v1093
      %v1388 = vsub.f32 %v1239, %v1098
      %v1389 = vsub.f32 %v1239, %v1103
      %v1390 = vsub.f32 %v1239, %v1108
      %v1391 = vsub.f32 %v1239, %v1113
      %v1392 = vsub.f32 %v1243, %v1038
      %v1393 = vsub.f32 %v1243, %v1043
      %v1394 = vsub.f32 %v1243, %v1048
      %v1395 = vsub.f32 %v1243, %v1053
      %v1396 = vsub.f32 %v1243, %v1058
      %v1397 = vsub.f32 %v1243, %v1063
      %v1398 = vsub.f32 %v1243, %v1068
      %v1399 = vsub.f32 %v1243, %v1073
      %v1400 = vsub.f32 %v1243, %v1078
      %v1401 = vsub.f32 %v1243, %v1083
      %v1402 = vsub.f32 %v1243, %v1088
      %v1403 = vsub.f32 %v1243, %v1093
      %v1404 = vsub.f32 %v1243, %v1098
      %v1405 = vsub.f32 %v1243, %v1103
      %v1406 = vsub.f32 %v1243, %v1108
      %v1407 = vsub.f32 %v1243, %v1113
      %v1408 = vsub.f32 %v1247, %v1038
      %v1409 = vsub.f32 %v1247, %v1043
      %v1410 = vsub.f32 %v1247, %v1048
      %v1411 = vsub.f32 %v1247, %v1053
      %v1412 = vsub.f32 %v1247, %v1058
      %v1413 = vsub.f32 %v1247, %v1063
      %v1414 = vsub.f32 %v1247, %v1068
      %v1415 = vsub.f32 %v1247, %v1073
      %v1416 = vsub.f32 %v1247, %v1078
      %v1417 = vsub.f32 %v1247, %v1083
      %v1418 = vsub.f32 %v1247, %v1088
      %v1419 = vsub.f32 %v1247, %v1093
      %v1420 = vsub.f32 %v1247, %v1098
      %v1421 = vsub.f32 %v1247, %v1103
      %v1422 = vsub.f32 %v1247, %v1108
      %v1423 = vsub.f32 %v1247, %v1113
      %v1424 = vsub.f32 %v1251, %v1038
      %v1425 = vsub.f32 %v1251, %v1043
      %v1426 = vsub.f32 %v1251, %v1048
      %v1427 = vsub.f32 %v1251, %v1053
      %v1428 = vsub.f32 %v1251, %v1058
      %v1429 = vsub.f32 %v1251, %v1063
      %v1430 = vsub.f32 %v1251, %v1068
      %v1431 = vsub.f32 %v1251, %v1073
      %v1432 = vsub.f32 %v1251, %v1078
      %v1433 = vsub.f32 %v1251, %v1083
      %v1434 = vsub.f32 %v1251, %v1088
      %v1435 = vsub.f32 %v1251, %v1093
      %v1436 = vsub.f32 %v1251, %v1098
      %v1437 = vsub.f32 %v1251, %v1103
      %v1438 = vsub.f32 %v1251, %v1108
      %v1439 = vsub.f32 %v1251, %v1113
      %v1440 = vsub.f32 %v1255, %v1038
      %v1441 = vsub.f32 %v1255, %v1043
      %v1442 = vsub.f32 %v1255, %v1048
      %v1443 = vsub.f32 %v1255, %v1053
      %v1444 = vsub.f32 %v1255, %v1058
      %v1445 = vsub.f32 %v1255, %v1063
      %v1446 = vsub.f32 %v1255, %v1068
      %v1447 = vsub.f32 %v1255, %v1073
      %v1448 = vsub.f32 %v1255, %v1078
      %v1449 = vsub.f32 %v1255, %v1083
      %v1450 = vsub.f32 %v1255, %v1088
      %v1451 = vsub.f32 %v1255, %v1093
      %v1452 = vsub.f32 %v1255, %v1098
      %v1453 = vsub.f32 %v1255, %v1103
      %v1454 = vsub.f32 %v1255, %v1108
      %v1455 = vsub.f32 %v1255, %v1113
      %v1456 = vsub.f32 %v1259, %v1038
      %v1457 = vsub.f32 %v1259, %v1043
      %v1458 = vsub.f32 %v1259, %v1048
      %v1459 = vsub.f32 %v1259, %v1053
      %v1460 = vsub.f32 %v1259, %v1058
      %v1461 = vsub.f32 %v1259, %v1063
      %v1462 = vsub.f32 %v1259, %v1068
      %v1463 = vsub.f32 %v1259, %v1073
      %v1464 = vsub.f32 %v1259, %v1078
      %v1465 = vsub.f32 %v1259, %v1083
      %v1466 = vsub.f32 %v1259, %v1088
      %v1467 = vsub.f32 %v1259, %v1093
      %v1468 = vsub.f32 %v1259, %v1098
      %v1469 = vsub.f32 %v1259, %v1103
      %v1470 = vsub.f32 %v1259, %v1108
      %v1471 = vsub.f32 %v1259, %v1113
      %v1472 = vsub.f32 %v1263, %v1038
      %v1473 = vsub.f32 %v1263, %v1043
      %v1474 = vsub.f32 %v1263, %v1048
      %v1475 = vsub.f32 %v1263, %v1053
      %v1476 = vsub.f32 %v1263, %v1058
      %v1477 = vsub.f32 %v1263, %v1063
      %v1478 = vsub.f32 %v1263, %v1068
      %v1479 = vsub.f32 %v1263, %v1073
      %v1480 = vsub.f32 %v1263, %v1078
      %v1481 = vsub.f32 %v1263, %v1083
      %v1482 = vsub.f32 %v1263, %v1088
      %v1483 = vsub.f32 %v1263, %v1093
      %v1484 = vsub.f32 %v1263, %v1098
      %v1485 = vsub.f32 %v1263, %v1103
      %v1486 = vsub.f32 %v1263, %v1108
      %v1487 = vsub.f32 %v1263, %v1113
      %v1488 = vsub.f32 %v1267, %v1038
      %v1489 = vsub.f32 %v1267, %v1043
      %v1490 = vsub.f32 %v1267, %v1048
      %v1491 = vsub.f32 %v1267, %v1053
      %v1492 = vsub.f32 %v1267, %v1058
      %v1493 = vsub.f32 %v1267, %v1063
      %v1494 = vsub.f32 %v1267, %v1068
      %v1495 = vsub.f32 %v1267, %v1073
      %v1496 = vsub.f32 %v1267, %v1078
      %v1497 = vsub.f32 %v1267, %v1083
      %v1498 = vsub.f32 %v1267, %v1088
      %v1499 = vsub.f32 %v1267, %v1093
      %v1500 = vsub.f32 %v1267, %v1098
      %v1501 = vsub.f32 %v1267, %v1103
      %v1502 = vsub.f32 %v1267, %v1108
      %v1503 = vsub.f32 %v1267, %v1113
      %v1504 = vsub.f32 %v1271, %v1038
      %v1505 = vsub.f32 %v1271, %v1043
      %v1506 = vsub.f32 %v1271, %v1048
      %v1507 = vsub.f32 %v1271, %v1053
      %v1508 = vsub.f32 %v1271, %v1058
      %v1509 = vsub.f32 %v1271, %v1063
      %v1510 = vsub.f32 %v1271, %v1068
      %v1511 = vsub.f32 %v1271, %v1073
      %v1512 = vsub.f32 %v1271, %v1078
      %v1513 = vsub.f32 %v1271, %v1083
      %v1514 = vsub.f32 %v1271, %v1088
      %v1515 = vsub.f32 %v1271, %v1093
      %v1516 = vsub.f32 %v1271, %v1098
      %v1517 = vsub.f32 %v1271, %v1103
      %v1518 = vsub.f32 %v1271, %v1108
      %v1519 = vsub.f32 %v1271, %v1113
      %v1520 = vsub.f32 %v1275, %v1038
      %v1521 = vsub.f32 %v1275, %v1043
      %v1522 = vsub.f32 %v1275, %v1048
      %v1523 = vsub.f32 %v1275, %v1053
      %v1524 = vsub.f32 %v1275, %v1058
      %v1525 = vsub.f32 %v1275, %v1063
      %v1526 = vsub.f32 %v1275, %v1068
      %v1527 = vsub.f32 %v1275, %v1073
      %v1528 = vsub.f32 %v1275, %v1078
      %v1529 = vsub.f32 %v1275, %v1083
      %v1530 = vsub.f32 %v1275, %v1088
      %v1531 = vsub.f32 %v1275, %v1093
      %v1532 = vsub.f32 %v1275, %v1098
      %v1533 = vsub.f32 %v1275, %v1103
      %v1534 = vsub.f32 %v1275, %v1108
      %v1535 = vsub.f32 %v1275, %v1113
      %v1536 = vsub.f32 %v1279, %v1038
      %v1537 = vsub.f32 %v1279, %v1043
      %v1538 = vsub.f32 %v1279, %v1048
      %v1539 = vsub.f32 %v1279, %v1053
      %v1540 = vsub.f32 %v1279, %v1058
      %v1541 = vsub.f32 %v1279, %v1063
      %v1542 = vsub.f32 %v1279, %v1068
      %v1543 = vsub.f32 %v1279, %v1073
      %v1544 = vsub.f32 %v1279, %v1078
      %v1545 = vsub.f32 %v1279, %v1083
      %v1546 = vsub.f32 %v1279, %v1088
      %v1547 = vsub.f32 %v1279, %v1093
      %v1548 = vsub.f32 %v1279, %v1098
      %v1549 = vsub.f32 %v1279, %v1103
      %v1550 = vsub.f32 %v1279, %v1108
      %v1551 = vsub.f32 %v1279, %v1113
      %v1552 = vmul.f32 %v1296, %v1296
      %v1553 = vmul.f32 %v1297, %v1297
      %v1554 = vmul.f32 %v1298, %v1298
      %v1555 = vmul.f32 %v1299, %v1299
      %v1556 = vmul.f32 %v1300, %v1300
      %v1557 = vmul.f32 %v1301, %v1301
      %v1558 = vmul.f32 %v1302, %v1302
      %v1559 = vmul.f32 %v1303, %v1303
      %v1560 = vmul.f32 %v1304, %v1304
      %v1561 = vmul.f32 %v1305, %v1305
      %v1562 = vmul.f32 %v1306, %v1306
      %v1563 = vmul.f32 %v1307, %v1307
      %v1564 = vmul.f32 %v1308, %v1308
      %v1565 = vmul.f32 %v1309, %v1309
      %v1566 = vmul.f32 %v1310, %v1310
      %v1567 = vmul.f32 %v1311, %v1311
      %v1568 = vmul.f32 %v1312, %v1312
      %v1569 = vmul.f32 %v1313, %v1313
      %v1570 = vmul.f32 %v1314, %v1314
      %v1571 = vmul.f32 %v1315, %v1315
      %v1572 = vmul.f32 %v1316, %v1316
      %v1573 = vmul.f32 %v1317, %v1317
      %v1574 = vmul.f32 %v1318, %v1318
      %v1575 = vmul.f32 %v1319, %v1319
      %v1576 = vmul.f32 %v1320, %v1320
      %v1577 = vmul.f32 %v1321, %v1321
      %v1578 = vmul.f32 %v1322, %v1322
      %v1579 = vmul.f32 %v1323, %v1323
      %v1580 = vmul.f32 %v1324, %v1324
      %v1581 = vmul.f32 %v1325, %v1325
      %v1582 = vmul.f32 %v1326, %v1326
      %v1583 = vmul.f32 %v1327, %v1327
      %v1584 = vmul.f32 %v1328, %v1328
      %v1585 = vmul.f32 %v1329, %v1329
      %v1586 = vmul.f32 %v1330, %v1330
      %v1587 = vmul.f32 %v1331, %v1331
      %v1588 = vmul.f32 %v1332, %v1332
      %v1589 = vmul.f32 %v1333, %v1333
      %v1590 = vmul.f32 %v1334, %v1334
      %v1591 = vmul.f32 %v1335, %v1335
      %v1592 = vmul.f32 %v1336, %v1336
      %v1593 = vmul.f32 %v1337, %v1337
      %v1594 = vmul.f32 %v1338, %v1338
      %v1595 = vmul.f32 %v1339, %v1339
      %v1596 = vmul.f32 %v1340, %v1340
      %v1597 = vmul.f32 %v1341, %v1341
      %v1598 = vmul.f32 %v1342, %v1342
      %v1599 = vmul.f32 %v1343, %v1343
      %v1600 = vmul.f32 %v1344, %v1344
      %v1601 = vmul.f32 %v1345, %v1345
      %v1602 = vmul.f32 %v1346, %v1346
      %v1603 = vmul.f32 %v1347, %v1347
      %v1604 = vmul.f32 %v1348, %v1348
      %v1605 = vmul.f32 %v1349, %v1349
      %v1606 = vmul.f32 %v1350, %v1350
      %v1607 = vmul.f32 %v1351, %v1351
      %v1608 = vmul.f32 %v1352, %v1352
      %v1609 = vmul.f32 %v1353, %v1353
      %v1610 = vmul.f32 %v1354, %v1354
      %v1611 = vmul.f32 %v1355, %v1355
      %v1612 = vmul.f32 %v1356, %v1356
      %v1613 = vmul.f32 %v1357, %v1357
      %v1614 = vmul.f32 %v1358, %v1358
      %v1615 = vmul.f32 %v1359, %v1359
      %v1616 = vmul.f32 %v1360, %v1360
      %v1617 = vmul.f32 %v1361, %v1361
      %v1618 = vmul.f32 %v1362, %v1362
      %v1619 = vmul.f32 %v1363, %v1363
      %v1620 = vmul.f32 %v1364, %v1364
      %v1621 = vmul.f32 %v1365, %v1365
      %v1622 = vmul.f32 %v1366, %v1366
      %v1623 = vmul.f32 %v1367, %v1367
      %v1624 = vmul.f32 %v1368, %v1368
      %v1625 = vmul.f32 %v1369, %v1369
      %v1626 = vmul.f32 %v1370, %v1370
      %v1627 = vmul.f32 %v1371, %v1371
      %v1628 = vmul.f32 %v1372, %v1372
      %v1629 = vmul.f32 %v1373, %v1373
      %v1630 = vmul.f32 %v1374, %v1374
      %v1631 = vmul.f32 %v1375, %v1375
      %v1632 = vmul.f32 %v1376, %v1376
      %v1633 = vmul.f32 %v1377, %v1377
      %v1634 = vmul.f32 %v1378, %v1378
      %v1635 = vmul.f32 %v1379, %v1379
      %v1636 = vmul.f32 %v1380, %v1380
      %v1637 = vmul.f32 %v1381, %v1381
      %v1638 = vmul.f32 %v1382, %v1382
      %v1639 = vmul.f32 %v1383, %v1383
      %v1640 = vmul.f32 %v1384, %v1384
      %v1641 = vmul.f32 %v1385, %v1385
      %v1642 = vmul.f32 %v1386, %v1386
      %v1643 = vmul.f32 %v1387, %v1387
      %v1644 = vmul.f32 %v1388, %v1388
      %v1645 = vmul.f32 %v1389, %v1389
      %v1646 = vmul.f32 %v1390, %v1390
      %v1647 = vmul.f32 %v1391, %v1391
      %v1648 = vmul.f32 %v1392, %v1392
      %v1649 = vmul.f32 %v1393, %v1393
      %v1650 = vmul.f32 %v1394, %v1394
      %v1651 = vmul.f32 %v1395, %v1395
      %v1652 = vmul.f32 %v1396, %v1396
      %v1653 = vmul.f32 %v1397, %v1397
      %v1654 = vmul.f32 %v1398, %v1398
      %v1655 = vmul.f32 %v1399, %v1399
      %v1656 = vmul.f32 %v1400, %v1400
      %v1657 = vmul.f32 %v1401, %v1401
      %v1658 = vmul.f32 %v1402, %v1402
      %v1659 = vmul.f32 %v1403, %v1403
      %v1660 = vmul.f32 %v1404, %v1404
      %v1661 = vmul.f32 %v1405, %v1405
      %v1662 = vmul.f32 %v1406, %v1406
      %v1663 = vmul.f32 %v1407, %v1407
      %v1664 = vmul.f32 %v1408, %v1408
      %v1665 = vmul.f32 %v1409, %v1409
      %v1666 = vmul.f32 %v1410, %v1410
      %v1667 = vmul.f32 %v1411, %v1411
      %v1668 = vmul.f32 %v1412, %v1412
      %v1669 = vmul.f32 %v1413, %v1413
      %v1670 = vmul.f32 %v1414, %v1414
      %v1671 = vmul.f32 %v1415, %v1415
      %v1672 = vmul.f32 %v1416, %v1416
      %v1673 = vmul.f32 %v1417, %v1417
      %v1674 = vmul.f32 %v1418, %v1418
      %v1675 = vmul.f32 %v1419, %v1419
      %v1676 = vmul.f32 %v1420, %v1420
      %v1677 = vmul.f32 %v1421, %v1421
      %v1678 = vmul.f32 %v1422, %v1422
      %v1679 = vmul.f32 %v1423, %v1423
      %v1680 = vmul.f32 %v1424, %v1424
      %v1681 = vmul.f32 %v1425, %v1425
      %v1682 = vmul.f32 %v1426, %v1426
      %v1683 = vmul.f32 %v1427, %v1427
      %v1684 = vmul.f32 %v1428, %v1428
      %v1685 = vmul.f32 %v1429, %v1429
      %v1686 = vmul.f32 %v1430, %v1430
      %v1687 = vmul.f32 %v1431, %v1431
      %v1688 = vmul.f32 %v1432, %v1432
      %v1689 = vmul.f32 %v1433, %v1433
      %v1690 = vmul.f32 %v1434, %v1434
      %v1691 = vmul.f32 %v1435, %v1435
      %v1692 = vmul.f32 %v1436, %v1436
      %v1693 = vmul.f32 %v1437, %v1437
      %v1694 = vmul.f32 %v1438, %v1438
      %v1695 = vmul.f32 %v1439, %v1439
      %v1696 = vmul.f32 %v1440, %v1440
      %v1697 = vmul.f32 %v1441, %v1441
      %v1698 = vmul.f32 %v1442, %v1442
      %v1699 = vmul.f32 %v1443, %v1443
      %v1700 = vmul.f32 %v1444, %v1444
      %v1701 = vmul.f32 %v1445, %v1445
      %v1702 = vmul.f32 %v1446, %v1446
      %v1703 = vmul.f32 %v1447, %v1447
      %v1704 = vmul.f32 %v1448, %v1448
      %v1705 = vmul.f32 %v1449, %v1449
      %v1706 = vmul.f32 %v1450, %v1450
      %v1707 = vmul.f32 %v1451, %v1451
      %v1708 = vmul.f32 %v1452, %v1452
      %v1709 = vmul.f32 %v1453, %v1453
      %v1710 = vmul.f32 %v1454, %v1454
      %v1711 = vmul.f32 %v1455, %v1455
      %v1712 = vmul.f32 %v1456, %v1456
      %v1713 = vmul.f32 %v1457, %v1457
      %v1714 = vmul.f32 %v1458, %v1458
      %v1715 = vmul.f32 %v1459, %v1459
      %v1716 = vmul.f32 %v1460, %v1460
      %v1717 = vmul.f32 %v1461, %v1461
      %v1718 = vmul.f32 %v1462, %v1462
      %v1719 = vmul.f32 %v1463, %v1463
      %v1720 = vmul.f32 %v1464, %v1464
      %v1721 = vmul.f32 %v1465, %v1465
      %v1722 = vmul.f32 %v1466, %v1466
      %v1723 = vmul.f32 %v1467, %v1467
      %v1724 = vmul.f32 %v1468, %v1468
      %v1725 = vmul.f32 %v1469, %v1469
      %v1726 = vmul.f32 %v1470, %v1470
      %v1727 = vmul.f32 %v1471, %v1471
      %v1728 = vmul.f32 %v1472, %v1472
      %v1729 = vmul.f32 %v1473, %v1473
      %v1730 = vmul.f32 %v1474, %v1474
      %v1731 = vmul.f32 %v1475, %v1475
      %v1732 = vmul.f32 %v1476, %v1476
      %v1733 = vmul.f32 %v1477, %v1477
      %v1734 = vmul.f32 %v1478, %v1478
      %v1735 = vmul.f32 %v1479, %v1479
      %v1736 = vmul.f32 %v1480, %v1480
      %v1737 = vmul.f32 %v1481, %v1481
      %v1738 = vmul.f32 %v1482, %v1482
      %v1739 = vmul.f32 %v1483, %v1483
      %v1740 = vmul.f32 %v1484, %v1484
      %v1741 = vmul.f32 %v1485, %v1485
      %v1742 = vmul.f32 %v1486, %v1486
      %v1743 = vmul.f32 %v1487, %v1487
      %v1744 = vmul.f32 %v1488, %v1488
      %v1745 = vmul.f32 %v1489, %v1489
      %v1746 = vmul.f32 %v1490, %v1490
      %v1747 = vmul.f32 %v1491, %v1491
      %v1748 = vmul.f32 %v1492, %v1492
      %v1749 = vmul.f32 %v1493, %v1493
      %v1750 = vmul.f32 %v1494, %v1494
      %v1751 = vmul.f32 %v1495, %v1495
      %v1752 = vmul.f32 %v1496, %v1496
      %v1753 = vmul.f32 %v1497, %v1497
      %v1754 = vmul.f32 %v1498, %v1498
      %v1755 = vmul.f32 %v1499, %v1499
      %v1756 = vmul.f32 %v1500, %v1500
      %v1757 = vmul.f32 %v1501, %v1501
      %v1758 = vmul.f32 %v1502, %v1502
      %v1759 = vmul.f32 %v1503, %v1503
      %v1760 = vmul.f32 %v1504, %v1504
      %v1761 = vmul.f32 %v1505, %v1505
      %v1762 = vmul.f32 %v1506, %v1506
      %v1763 = vmul.f32 %v1507, %v1507
      %v1764 = vmul.f32 %v1508, %v1508
      %v1765 = vmul.f32 %v1509, %v1509
      %v1766 = vmul.f32 %v1510, %v1510
      %v1767 = vmul.f32 %v1511, %v1511
      %v1768 = vmul.f32 %v1512, %v1512
      %v1769 = vmul.f32 %v1513, %v1513
      %v1770 = vmul.f32 %v1514, %v1514
      %v1771 = vmul.f32 %v1515, %v1515
      %v1772 = vmul.f32 %v1516, %v1516
      %v1773 = vmul.f32 %v1517, %v1517
      %v1774 = vmul.f32 %v1518, %v1518
      %v1775 = vmul.f32 %v1519, %v1519
      %v1776 = vmul.f32 %v1520, %v1520
      %v1777 = vmul.f32 %v1521, %v1521
      %v1778 = vmul.f32 %v1522, %v1522
      %v1779 = vmul.f32 %v1523, %v1523
      %v1780 = vmul.f32 %v1524, %v1524
      %v1781 = vmul.f32 %v1525, %v1525
      %v1782 = vmul.f32 %v1526, %v1526
      %v1783 = vmul.f32 %v1527, %v1527
      %v1784 = vmul.f32 %v1528, %v1528
      %v1785 = vmul.f32 %v1529, %v1529
      %v1786 = vmul.f32 %v1530, %v1530
      %v1787 = vmul.f32 %v1531, %v1531
      %v1788 = vmul.f32 %v1532, %v1532
      %v1789 = vmul.f32 %v1533, %v1533
      %v1790 = vmul.f32 %v1534, %v1534
      %v1791 = vmul.f32 %v1535, %v1535
      %v1792 = vmul.f32 %v1536, %v1536
      %v1793 = vmul.f32 %v1537, %v1537
      %v1794 = vmul.f32 %v1538, %v1538
      %v1795 = vmul.f32 %v1539, %v1539
      %v1796 = vmul.f32 %v1540, %v1540
      %v1797 = vmul.f32 %v1541, %v1541
      %v1798 = vmul.f32 %v1542, %v1542
      %v1799 = vmul.f32 %v1543, %v1543
      %v1800 = vmul.f32 %v1544, %v1544
      %v1801 = vmul.f32 %v1545, %v1545
      %v1802 = vmul.f32 %v1546, %v1546
      %v1803 = vmul.f32 %v1547, %v1547
      %v1804 = vmul.f32 %v1548, %v1548
      %v1805 = vmul.f32 %v1549, %v1549
      %v1806 = vmul.f32 %v1550, %v1550
      %v1807 = vmul.f32 %v1551, %v1551
      %1808 = vadd.xlane.f32.xlu0 %v1552
      %v1809 = vpop.xlane.xlu0 %1808
      %1810 = vadd.xlane.f32.xlu0 %v1553
      %v1811 = vpop.xlane.xlu0 %1810
      %1812 = vadd.xlane.f32.xlu0 %v1554
      %v1813 = vpop.xlane.xlu0 %1812
      %1814 = vadd.xlane.f32.xlu0 %v1555
      %v1815 = vpop.xlane.xlu0 %1814
      %1816 = vadd.xlane.f32.xlu0 %v1556
      %v1817 = vpop.xlane.xlu0 %1816
      %1818 = vadd.xlane.f32.xlu0 %v1557
      %v1819 = vpop.xlane.xlu0 %1818
      %1820 = vadd.xlane.f32.xlu0 %v1558
      %v1821 = vpop.xlane.xlu0 %1820
      %1822 = vadd.xlane.f32.xlu0 %v1559
      %v1823 = vpop.xlane.xlu0 %1822
      %1824 = vadd.xlane.f32.xlu0 %v1560
      %v1825 = vpop.xlane.xlu0 %1824
      %1826 = vadd.xlane.f32.xlu0 %v1561
      %v1827 = vpop.xlane.xlu0 %1826
      %1828 = vadd.xlane.f32.xlu0 %v1562
      %v1829 = vpop.xlane.xlu0 %1828
      %1830 = vadd.xlane.f32.xlu0 %v1563
      %v1831 = vpop.xlane.xlu0 %1830
      %1832 = vadd.xlane.f32.xlu0 %v1564
      %v1833 = vpop.xlane.xlu0 %1832
      %1834 = vadd.xlane.f32.xlu0 %v1565
      %v1835 = vpop.xlane.xlu0 %1834
      %1836 = vadd.xlane.f32.xlu0 %v1566
      %v1837 = vpop.xlane.xlu0 %1836
      %1838 = vadd.xlane.f32.xlu0 %v1567
      %v1839 = vpop.xlane.xlu0 %1838
      %1840 = vadd.xlane.f32.xlu0 %v1568
      %v1841 = vpop.xlane.xlu0 %1840
      %1842 = vadd.xlane.f32.xlu0 %v1569
      %v1843 = vpop.xlane.xlu0 %1842
      %1844 = vadd.xlane.f32.xlu0 %v1570
      %v1845 = vpop.xlane.xlu0 %1844
      %1846 = vadd.xlane.f32.xlu0 %v1571
      %v1847 = vpop.xlane.xlu0 %1846
      %1848 = vadd.xlane.f32.xlu0 %v1572
      %v1849 = vpop.xlane.xlu0 %1848
      %1850 = vadd.xlane.f32.xlu0 %v1573
      %v1851 = vpop.xlane.xlu0 %1850
      %1852 = vadd.xlane.f32.xlu0 %v1574
      %v1853 = vpop.xlane.xlu0 %1852
      %1854 = vadd.xlane.f32.xlu0 %v1575
      %v1855 = vpop.xlane.xlu0 %1854
      %1856 = vadd.xlane.f32.xlu0 %v1576
      %v1857 = vpop.xlane.xlu0 %1856
      %1858 = vadd.xlane.f32.xlu0 %v1577
      %v1859 = vpop.xlane.xlu0 %1858
      %1860 = vadd.xlane.f32.xlu0 %v1578
      %v1861 = vpop.xlane.xlu0 %1860
      %1862 = vadd.xlane.f32.xlu0 %v1579
      %v1863 = vpop.xlane.xlu0 %1862
      %1864 = vadd.xlane.f32.xlu0 %v1580
      %v1865 = vpop.xlane.xlu0 %1864
      %1866 = vadd.xlane.f32.xlu0 %v1581
      %v1867 = vpop.xlane.xlu0 %1866
      %1868 = vadd.xlane.f32.xlu0 %v1582
      %v1869 = vpop.xlane.xlu0 %1868
      %1870 = vadd.xlane.f32.xlu0 %v1583
      %v1871 = vpop.xlane.xlu0 %1870
      %1872 = vadd.xlane.f32.xlu0 %v1584
      %v1873 = vpop.xlane.xlu0 %1872
      %1874 = vadd.xlane.f32.xlu0 %v1585
      %v1875 = vpop.xlane.xlu0 %1874
      %1876 = vadd.xlane.f32.xlu0 %v1586
      %v1877 = vpop.xlane.xlu0 %1876
      %1878 = vadd.xlane.f32.xlu0 %v1587
      %v1879 = vpop.xlane.xlu0 %1878
      %1880 = vadd.xlane.f32.xlu0 %v1588
      %v1881 = vpop.xlane.xlu0 %1880
      %1882 = vadd.xlane.f32.xlu0 %v1589
      %v1883 = vpop.xlane.xlu0 %1882
      %1884 = vadd.xlane.f32.xlu0 %v1590
      %v1885 = vpop.xlane.xlu0 %1884
      %1886 = vadd.xlane.f32.xlu0 %v1591
      %v1887 = vpop.xlane.xlu0 %1886
      %1888 = vadd.xlane.f32.xlu0 %v1592
      %v1889 = vpop.xlane.xlu0 %1888
      %1890 = vadd.xlane.f32.xlu0 %v1593
      %v1891 = vpop.xlane.xlu0 %1890
      %1892 = vadd.xlane.f32.xlu0 %v1594
      %v1893 = vpop.xlane.xlu0 %1892
      %1894 = vadd.xlane.f32.xlu0 %v1595
      %v1895 = vpop.xlane.xlu0 %1894
      %1896 = vadd.xlane.f32.xlu0 %v1596
      %v1897 = vpop.xlane.xlu0 %1896
      %1898 = vadd.xlane.f32.xlu0 %v1597
      %v1899 = vpop.xlane.xlu0 %1898
      %1900 = vadd.xlane.f32.xlu0 %v1598
      %v1901 = vpop.xlane.xlu0 %1900
      %1902 = vadd.xlane.f32.xlu0 %v1599
      %v1903 = vpop.xlane.xlu0 %1902
      %1904 = vadd.xlane.f32.xlu0 %v1600
      %v1905 = vpop.xlane.xlu0 %1904
      %1906 = vadd.xlane.f32.xlu0 %v1601
      %v1907 = vpop.xlane.xlu0 %1906
      %1908 = vadd.xlane.f32.xlu0 %v1602
      %v1909 = vpop.xlane.xlu0 %1908
      %1910 = vadd.xlane.f32.xlu0 %v1603
      %v1911 = vpop.xlane.xlu0 %1910
      %1912 = vadd.xlane.f32.xlu0 %v1604
      %v1913 = vpop.xlane.xlu0 %1912
      %1914 = vadd.xlane.f32.xlu0 %v1605
      %v1915 = vpop.xlane.xlu0 %1914
      %1916 = vadd.xlane.f32.xlu0 %v1606
      %v1917 = vpop.xlane.xlu0 %1916
      %1918 = vadd.xlane.f32.xlu0 %v1607
      %v1919 = vpop.xlane.xlu0 %1918
      %1920 = vadd.xlane.f32.xlu0 %v1608
      %v1921 = vpop.xlane.xlu0 %1920
      %1922 = vadd.xlane.f32.xlu0 %v1609
      %v1923 = vpop.xlane.xlu0 %1922
      %1924 = vadd.xlane.f32.xlu0 %v1610
      %v1925 = vpop.xlane.xlu0 %1924
      %1926 = vadd.xlane.f32.xlu0 %v1611
      %v1927 = vpop.xlane.xlu0 %1926
      %1928 = vadd.xlane.f32.xlu0 %v1612
      %v1929 = vpop.xlane.xlu0 %1928
      %1930 = vadd.xlane.f32.xlu0 %v1613
      %v1931 = vpop.xlane.xlu0 %1930
      %1932 = vadd.xlane.f32.xlu0 %v1614
      %v1933 = vpop.xlane.xlu0 %1932
      %1934 = vadd.xlane.f32.xlu0 %v1615
      %v1935 = vpop.xlane.xlu0 %1934
      %1936 = vadd.xlane.f32.xlu0 %v1616
      %v1937 = vpop.xlane.xlu0 %1936
      %1938 = vadd.xlane.f32.xlu0 %v1617
      %v1939 = vpop.xlane.xlu0 %1938
      %1940 = vadd.xlane.f32.xlu0 %v1618
      %v1941 = vpop.xlane.xlu0 %1940
      %1942 = vadd.xlane.f32.xlu0 %v1619
      %v1943 = vpop.xlane.xlu0 %1942
      %1944 = vadd.xlane.f32.xlu0 %v1620
      %v1945 = vpop.xlane.xlu0 %1944
      %1946 = vadd.xlane.f32.xlu0 %v1621
      %v1947 = vpop.xlane.xlu0 %1946
      %1948 = vadd.xlane.f32.xlu0 %v1622
      %v1949 = vpop.xlane.xlu0 %1948
      %1950 = vadd.xlane.f32.xlu0 %v1623
      %v1951 = vpop.xlane.xlu0 %1950
      %1952 = vadd.xlane.f32.xlu0 %v1624
      %v1953 = vpop.xlane.xlu0 %1952
      %1954 = vadd.xlane.f32.xlu0 %v1625
      %v1955 = vpop.xlane.xlu0 %1954
      %1956 = vadd.xlane.f32.xlu0 %v1626
      %v1957 = vpop.xlane.xlu0 %1956
      %1958 = vadd.xlane.f32.xlu0 %v1627
      %v1959 = vpop.xlane.xlu0 %1958
      %1960 = vadd.xlane.f32.xlu0 %v1628
      %v1961 = vpop.xlane.xlu0 %1960
      %1962 = vadd.xlane.f32.xlu0 %v1629
      %v1963 = vpop.xlane.xlu0 %1962
      %1964 = vadd.xlane.f32.xlu0 %v1630
      %v1965 = vpop.xlane.xlu0 %1964
      %1966 = vadd.xlane.f32.xlu0 %v1631
      %v1967 = vpop.xlane.xlu0 %1966
      %1968 = vadd.xlane.f32.xlu0 %v1632
      %v1969 = vpop.xlane.xlu0 %1968
      %1970 = vadd.xlane.f32.xlu0 %v1633
      %v1971 = vpop.xlane.xlu0 %1970
      %1972 = vadd.xlane.f32.xlu0 %v1634
      %v1973 = vpop.xlane.xlu0 %1972
      %1974 = vadd.xlane.f32.xlu0 %v1635
      %v1975 = vpop.xlane.xlu0 %1974
      %1976 = vadd.xlane.f32.xlu0 %v1636
      %v1977 = vpop.xlane.xlu0 %1976
      %1978 = vadd.xlane.f32.xlu0 %v1637
      %v1979 = vpop.xlane.xlu0 %1978
      %1980 = vadd.xlane.f32.xlu0 %v1638
      %v1981 = vpop.xlane.xlu0 %1980
      %1982 = vadd.xlane.f32.xlu0 %v1639
      %v1983 = vpop.xlane.xlu0 %1982
      %1984 = vadd.xlane.f32.xlu0 %v1640
      %v1985 = vpop.xlane.xlu0 %1984
      %1986 = vadd.xlane.f32.xlu0 %v1641
      %v1987 = vpop.xlane.xlu0 %1986
      %1988 = vadd.xlane.f32.xlu0 %v1642
      %v1989 = vpop.xlane.xlu0 %1988
      %1990 = vadd.xlane.f32.xlu0 %v1643
      %v1991 = vpop.xlane.xlu0 %1990
      %1992 = vadd.xlane.f32.xlu0 %v1644
      %v1993 = vpop.xlane.xlu0 %1992
      %1994 = vadd.xlane.f32.xlu0 %v1645
      %v1995 = vpop.xlane.xlu0 %1994
      %1996 = vadd.xlane.f32.xlu0 %v1646
      %v1997 = vpop.xlane.xlu0 %1996
      %1998 = vadd.xlane.f32.xlu0 %v1647
      %v1999 = vpop.xlane.xlu0 %1998
      %2000 = vadd.xlane.f32.xlu0 %v1648
      %v2001 = vpop.xlane.xlu0 %2000
      %2002 = vadd.xlane.f32.xlu0 %v1649
      %v2003 = vpop.xlane.xlu0 %2002
      %2004 = vadd.xlane.f32.xlu0 %v1650
      %v2005 = vpop.xlane.xlu0 %2004
      %2006 = vadd.xlane.f32.xlu0 %v1651
      %v2007 = vpop.xlane.xlu0 %2006
      %2008 = vadd.xlane.f32.xlu0 %v1652
      %v2009 = vpop.xlane.xlu0 %2008
      %2010 = vadd.xlane.f32.xlu0 %v1653
      %v2011 = vpop.xlane.xlu0 %2010
      %2012 = vadd.xlane.f32.xlu0 %v1654
      %v2013 = vpop.xlane.xlu0 %2012
      %2014 = vadd.xlane.f32.xlu0 %v1655
      %v2015 = vpop.xlane.xlu0 %2014
      %2016 = vadd.xlane.f32.xlu0 %v1656
      %v2017 = vpop.xlane.xlu0 %2016
      %2018 = vadd.xlane.f32.xlu0 %v1657
      %v2019 = vpop.xlane.xlu0 %2018
      %2020 = vadd.xlane.f32.xlu0 %v1658
      %v2021 = vpop.xlane.xlu0 %2020
      %2022 = vadd.xlane.f32.xlu0 %v1659
      %v2023 = vpop.xlane.xlu0 %2022
      %2024 = vadd.xlane.f32.xlu0 %v1660
      %v2025 = vpop.xlane.xlu0 %2024
      %2026 = vadd.xlane.f32.xlu0 %v1661
      %v2027 = vpop.xlane.xlu0 %2026
      %2028 = vadd.xlane.f32.xlu0 %v1662
      %v2029 = vpop.xlane.xlu0 %2028
      %2030 = vadd.xlane.f32.xlu0 %v1663
      %v2031 = vpop.xlane.xlu0 %2030
      %2032 = vadd.xlane.f32.xlu0 %v1664
      %v2033 = vpop.xlane.xlu0 %2032
      %2034 = vadd.xlane.f32.xlu0 %v1665
      %v2035 = vpop.xlane.xlu0 %2034
      %2036 = vadd.xlane.f32.xlu0 %v1666
      %v2037 = vpop.xlane.xlu0 %2036
      %2038 = vadd.xlane.f32.xlu0 %v1667
      %v2039 = vpop.xlane.xlu0 %2038
      %2040 = vadd.xlane.f32.xlu0 %v1668
      %v2041 = vpop.xlane.xlu0 %2040
      %2042 = vadd.xlane.f32.xlu0 %v1669
      %v2043 = vpop.xlane.xlu0 %2042
      %2044 = vadd.xlane.f32.xlu0 %v1670
      %v2045 = vpop.xlane.xlu0 %2044
      %2046 = vadd.xlane.f32.xlu0 %v1671
      %v2047 = vpop.xlane.xlu0 %2046
      %2048 = vadd.xlane.f32.xlu0 %v1672
      %v2049 = vpop.xlane.xlu0 %2048
      %2050 = vadd.xlane.f32.xlu0 %v1673
      %v2051 = vpop.xlane.xlu0 %2050
      %2052 = vadd.xlane.f32.xlu0 %v1674
      %v2053 = vpop.xlane.xlu0 %2052
      %2054 = vadd.xlane.f32.xlu0 %v1675
      %v2055 = vpop.xlane.xlu0 %2054
      %2056 = vadd.xlane.f32.xlu0 %v1676
      %v2057 = vpop.xlane.xlu0 %2056
      %2058 = vadd.xlane.f32.xlu0 %v1677
      %v2059 = vpop.xlane.xlu0 %2058
      %2060 = vadd.xlane.f32.xlu0 %v1678
      %v2061 = vpop.xlane.xlu0 %2060
      %2062 = vadd.xlane.f32.xlu0 %v1679
      %v2063 = vpop.xlane.xlu0 %2062
      %2064 = vadd.xlane.f32.xlu0 %v1680
      %v2065 = vpop.xlane.xlu0 %2064
      %2066 = vadd.xlane.f32.xlu0 %v1681
      %v2067 = vpop.xlane.xlu0 %2066
      %2068 = vadd.xlane.f32.xlu0 %v1682
      %v2069 = vpop.xlane.xlu0 %2068
      %2070 = vadd.xlane.f32.xlu0 %v1683
      %v2071 = vpop.xlane.xlu0 %2070
      %2072 = vadd.xlane.f32.xlu0 %v1684
      %v2073 = vpop.xlane.xlu0 %2072
      %2074 = vadd.xlane.f32.xlu0 %v1685
      %v2075 = vpop.xlane.xlu0 %2074
      %2076 = vadd.xlane.f32.xlu0 %v1686
      %v2077 = vpop.xlane.xlu0 %2076
      %2078 = vadd.xlane.f32.xlu0 %v1687
      %v2079 = vpop.xlane.xlu0 %2078
      %2080 = vadd.xlane.f32.xlu0 %v1688
      %v2081 = vpop.xlane.xlu0 %2080
      %2082 = vadd.xlane.f32.xlu0 %v1689
      %v2083 = vpop.xlane.xlu0 %2082
      %2084 = vadd.xlane.f32.xlu0 %v1690
      %v2085 = vpop.xlane.xlu0 %2084
      %2086 = vadd.xlane.f32.xlu0 %v1691
      %v2087 = vpop.xlane.xlu0 %2086
      %2088 = vadd.xlane.f32.xlu0 %v1692
      %v2089 = vpop.xlane.xlu0 %2088
      %2090 = vadd.xlane.f32.xlu0 %v1693
      %v2091 = vpop.xlane.xlu0 %2090
      %2092 = vadd.xlane.f32.xlu0 %v1694
      %v2093 = vpop.xlane.xlu0 %2092
      %2094 = vadd.xlane.f32.xlu0 %v1695
      %v2095 = vpop.xlane.xlu0 %2094
      %2096 = vadd.xlane.f32.xlu0 %v1696
      %v2097 = vpop.xlane.xlu0 %2096
      %2098 = vadd.xlane.f32.xlu0 %v1697
      %v2099 = vpop.xlane.xlu0 %2098
      %2100 = vadd.xlane.f32.xlu0 %v1698
      %v2101 = vpop.xlane.xlu0 %2100
      %2102 = vadd.xlane.f32.xlu0 %v1699
      %v2103 = vpop.xlane.xlu0 %2102
      %2104 = vadd.xlane.f32.xlu0 %v1700
      %v2105 = vpop.xlane.xlu0 %2104
      %2106 = vadd.xlane.f32.xlu0 %v1701
      %v2107 = vpop.xlane.xlu0 %2106
      %2108 = vadd.xlane.f32.xlu0 %v1702
      %v2109 = vpop.xlane.xlu0 %2108
      %2110 = vadd.xlane.f32.xlu0 %v1703
      %v2111 = vpop.xlane.xlu0 %2110
      %2112 = vadd.xlane.f32.xlu0 %v1704
      %v2113 = vpop.xlane.xlu0 %2112
      %2114 = vadd.xlane.f32.xlu0 %v1705
      %v2115 = vpop.xlane.xlu0 %2114
      %2116 = vadd.xlane.f32.xlu0 %v1706
      %v2117 = vpop.xlane.xlu0 %2116
      %2118 = vadd.xlane.f32.xlu0 %v1707
      %v2119 = vpop.xlane.xlu0 %2118
      %2120 = vadd.xlane.f32.xlu0 %v1708
      %v2121 = vpop.xlane.xlu0 %2120
      %2122 = vadd.xlane.f32.xlu0 %v1709
      %v2123 = vpop.xlane.xlu0 %2122
      %2124 = vadd.xlane.f32.xlu0 %v1710
      %v2125 = vpop.xlane.xlu0 %2124
      %2126 = vadd.xlane.f32.xlu0 %v1711
      %v2127 = vpop.xlane.xlu0 %2126
      %2128 = vadd.xlane.f32.xlu0 %v1712
      %v2129 = vpop.xlane.xlu0 %2128
      %2130 = vadd.xlane.f32.xlu0 %v1713
      %v2131 = vpop.xlane.xlu0 %2130
      %2132 = vadd.xlane.f32.xlu0 %v1714
      %v2133 = vpop.xlane.xlu0 %2132
      %2134 = vadd.xlane.f32.xlu0 %v1715
      %v2135 = vpop.xlane.xlu0 %2134
      %2136 = vadd.xlane.f32.xlu0 %v1716
      %v2137 = vpop.xlane.xlu0 %2136
      %2138 = vadd.xlane.f32.xlu0 %v1717
      %v2139 = vpop.xlane.xlu0 %2138
      %2140 = vadd.xlane.f32.xlu0 %v1718
      %v2141 = vpop.xlane.xlu0 %2140
      %2142 = vadd.xlane.f32.xlu0 %v1719
      %v2143 = vpop.xlane.xlu0 %2142
      %2144 = vadd.xlane.f32.xlu0 %v1720
      %v2145 = vpop.xlane.xlu0 %2144
      %2146 = vadd.xlane.f32.xlu0 %v1721
      %v2147 = vpop.xlane.xlu0 %2146
      %2148 = vadd.xlane.f32.xlu0 %v1722
      %v2149 = vpop.xlane.xlu0 %2148
      %2150 = vadd.xlane.f32.xlu0 %v1723
      %v2151 = vpop.xlane.xlu0 %2150
      %2152 = vadd.xlane.f32.xlu0 %v1724
      %v2153 = vpop.xlane.xlu0 %2152
      %2154 = vadd.xlane.f32.xlu0 %v1725
      %v2155 = vpop.xlane.xlu0 %2154
      %2156 = vadd.xlane.f32.xlu0 %v1726
      %v2157 = vpop.xlane.xlu0 %2156
      %2158 = vadd.xlane.f32.xlu0 %v1727
      %v2159 = vpop.xlane.xlu0 %2158
      %2160 = vadd.xlane.f32.xlu0 %v1728
      %v2161 = vpop.xlane.xlu0 %2160
      %2162 = vadd.xlane.f32.xlu0 %v1729
      %v2163 = vpop.xlane.xlu0 %2162
      %2164 = vadd.xlane.f32.xlu0 %v1730
      %v2165 = vpop.xlane.xlu0 %2164
      %2166 = vadd.xlane.f32.xlu0 %v1731
      %v2167 = vpop.xlane.xlu0 %2166
      %2168 = vadd.xlane.f32.xlu0 %v1732
      %v2169 = vpop.xlane.xlu0 %2168
      %2170 = vadd.xlane.f32.xlu0 %v1733
      %v2171 = vpop.xlane.xlu0 %2170
      %2172 = vadd.xlane.f32.xlu0 %v1734
      %v2173 = vpop.xlane.xlu0 %2172
      %2174 = vadd.xlane.f32.xlu0 %v1735
      %v2175 = vpop.xlane.xlu0 %2174
      %2176 = vadd.xlane.f32.xlu0 %v1736
      %v2177 = vpop.xlane.xlu0 %2176
      %2178 = vadd.xlane.f32.xlu0 %v1737
      %v2179 = vpop.xlane.xlu0 %2178
      %2180 = vadd.xlane.f32.xlu0 %v1738
      %v2181 = vpop.xlane.xlu0 %2180
      %2182 = vadd.xlane.f32.xlu0 %v1739
      %v2183 = vpop.xlane.xlu0 %2182
      %2184 = vadd.xlane.f32.xlu0 %v1740
      %v2185 = vpop.xlane.xlu0 %2184
      %2186 = vadd.xlane.f32.xlu0 %v1741
      %v2187 = vpop.xlane.xlu0 %2186
      %2188 = vadd.xlane.f32.xlu0 %v1742
      %v2189 = vpop.xlane.xlu0 %2188
      %2190 = vadd.xlane.f32.xlu0 %v1743
      %v2191 = vpop.xlane.xlu0 %2190
      %2192 = vadd.xlane.f32.xlu0 %v1744
      %v2193 = vpop.xlane.xlu0 %2192
      %2194 = vadd.xlane.f32.xlu0 %v1745
      %v2195 = vpop.xlane.xlu0 %2194
      %2196 = vadd.xlane.f32.xlu0 %v1746
      %v2197 = vpop.xlane.xlu0 %2196
      %2198 = vadd.xlane.f32.xlu0 %v1747
      %v2199 = vpop.xlane.xlu0 %2198
      %2200 = vadd.xlane.f32.xlu0 %v1748
      %v2201 = vpop.xlane.xlu0 %2200
      %2202 = vadd.xlane.f32.xlu0 %v1749
      %v2203 = vpop.xlane.xlu0 %2202
      %2204 = vadd.xlane.f32.xlu0 %v1750
      %v2205 = vpop.xlane.xlu0 %2204
      %2206 = vadd.xlane.f32.xlu0 %v1751
      %v2207 = vpop.xlane.xlu0 %2206
      %2208 = vadd.xlane.f32.xlu0 %v1752
      %v2209 = vpop.xlane.xlu0 %2208
      %2210 = vadd.xlane.f32.xlu0 %v1753
      %v2211 = vpop.xlane.xlu0 %2210
      %2212 = vadd.xlane.f32.xlu0 %v1754
      %v2213 = vpop.xlane.xlu0 %2212
      %2214 = vadd.xlane.f32.xlu0 %v1755
      %v2215 = vpop.xlane.xlu0 %2214
      %2216 = vadd.xlane.f32.xlu0 %v1756
      %v2217 = vpop.xlane.xlu0 %2216
      %2218 = vadd.xlane.f32.xlu0 %v1757
      %v2219 = vpop.xlane.xlu0 %2218
      %2220 = vadd.xlane.f32.xlu0 %v1758
      %v2221 = vpop.xlane.xlu0 %2220
      %2222 = vadd.xlane.f32.xlu0 %v1759
      %v2223 = vpop.xlane.xlu0 %2222
      %2224 = vadd.xlane.f32.xlu0 %v1760
      %v2225 = vpop.xlane.xlu0 %2224
      %2226 = vadd.xlane.f32.xlu0 %v1761
      %v2227 = vpop.xlane.xlu0 %2226
      %2228 = vadd.xlane.f32.xlu0 %v1762
      %v2229 = vpop.xlane.xlu0 %2228
      %2230 = vadd.xlane.f32.xlu0 %v1763
      %v2231 = vpop.xlane.xlu0 %2230
      %2232 = vadd.xlane.f32.xlu0 %v1764
      %v2233 = vpop.xlane.xlu0 %2232
      %2234 = vadd.xlane.f32.xlu0 %v1765
      %v2235 = vpop.xlane.xlu0 %2234
      %2236 = vadd.xlane.f32.xlu0 %v1766
      %v2237 = vpop.xlane.xlu0 %2236
      %2238 = vadd.xlane.f32.xlu0 %v1767
      %v2239 = vpop.xlane.xlu0 %2238
      %2240 = vadd.xlane.f32.xlu0 %v1768
      %v2241 = vpop.xlane.xlu0 %2240
      %2242 = vadd.xlane.f32.xlu0 %v1769
      %v2243 = vpop.xlane.xlu0 %2242
      %2244 = vadd.xlane.f32.xlu0 %v1770
      %v2245 = vpop.xlane.xlu0 %2244
      %2246 = vadd.xlane.f32.xlu0 %v1771
      %v2247 = vpop.xlane.xlu0 %2246
      %2248 = vadd.xlane.f32.xlu0 %v1772
      %v2249 = vpop.xlane.xlu0 %2248
      %2250 = vadd.xlane.f32.xlu0 %v1773
      %v2251 = vpop.xlane.xlu0 %2250
      %2252 = vadd.xlane.f32.xlu0 %v1774
      %v2253 = vpop.xlane.xlu0 %2252
      %2254 = vadd.xlane.f32.xlu0 %v1775
      %v2255 = vpop.xlane.xlu0 %2254
      %2256 = vadd.xlane.f32.xlu0 %v1776
      %v2257 = vpop.xlane.xlu0 %2256
      %2258 = vadd.xlane.f32.xlu0 %v1777
      %v2259 = vpop.xlane.xlu0 %2258
      %2260 = vadd.xlane.f32.xlu0 %v1778
      %v2261 = vpop.xlane.xlu0 %2260
      %2262 = vadd.xlane.f32.xlu0 %v1779
      %v2263 = vpop.xlane.xlu0 %2262
      %2264 = vadd.xlane.f32.xlu0 %v1780
      %v2265 = vpop.xlane.xlu0 %2264
      %2266 = vadd.xlane.f32.xlu0 %v1781
      %v2267 = vpop.xlane.xlu0 %2266
      %2268 = vadd.xlane.f32.xlu0 %v1782
      %v2269 = vpop.xlane.xlu0 %2268
      %2270 = vadd.xlane.f32.xlu0 %v1783
      %v2271 = vpop.xlane.xlu0 %2270
      %2272 = vadd.xlane.f32.xlu0 %v1784
      %v2273 = vpop.xlane.xlu0 %2272
      %2274 = vadd.xlane.f32.xlu0 %v1785
      %v2275 = vpop.xlane.xlu0 %2274
      %2276 = vadd.xlane.f32.xlu0 %v1786
      %v2277 = vpop.xlane.xlu0 %2276
      %2278 = vadd.xlane.f32.xlu0 %v1787
      %v2279 = vpop.xlane.xlu0 %2278
      %2280 = vadd.xlane.f32.xlu0 %v1788
      %v2281 = vpop.xlane.xlu0 %2280
      %2282 = vadd.xlane.f32.xlu0 %v1789
      %v2283 = vpop.xlane.xlu0 %2282
      %2284 = vadd.xlane.f32.xlu0 %v1790
      %v2285 = vpop.xlane.xlu0 %2284
      %2286 = vadd.xlane.f32.xlu0 %v1791
      %v2287 = vpop.xlane.xlu0 %2286
      %2288 = vadd.xlane.f32.xlu0 %v1792
      %v2289 = vpop.xlane.xlu0 %2288
      %2290 = vadd.xlane.f32.xlu0 %v1793
      %v2291 = vpop.xlane.xlu0 %2290
      %2292 = vadd.xlane.f32.xlu0 %v1794
      %v2293 = vpop.xlane.xlu0 %2292
      %2294 = vadd.xlane.f32.xlu0 %v1795
      %v2295 = vpop.xlane.xlu0 %2294
      %2296 = vadd.xlane.f32.xlu0 %v1796
      %v2297 = vpop.xlane.xlu0 %2296
      %2298 = vadd.xlane.f32.xlu0 %v1797
      %v2299 = vpop.xlane.xlu0 %2298
      %2300 = vadd.xlane.f32.xlu0 %v1798
      %v2301 = vpop.xlane.xlu0 %2300
      %2302 = vadd.xlane.f32.xlu0 %v1799
      %v2303 = vpop.xlane.xlu0 %2302
      %2304 = vadd.xlane.f32.xlu0 %v1800
      %v2305 = vpop.xlane.xlu0 %2304
      %2306 = vadd.xlane.f32.xlu0 %v1801
      %v2307 = vpop.xlane.xlu0 %2306
      %2308 = vadd.xlane.f32.xlu0 %v1802
      %v2309 = vpop.xlane.xlu0 %2308
      %2310 = vadd.xlane.f32.xlu0 %v1803
      %v2311 = vpop.xlane.xlu0 %2310
      %2312 = vadd.xlane.f32.xlu0 %v1804
      %v2313 = vpop.xlane.xlu0 %2312
      %2314 = vadd.xlane.f32.xlu0 %v1805
      %v2315 = vpop.xlane.xlu0 %2314
      %2316 = vadd.xlane.f32.xlu0 %v1806
      %v2317 = vpop.xlane.xlu0 %2316
      %2318 = vadd.xlane.f32.xlu0 %v1807
      %v2319 = vpop.xlane.xlu0 %2318
      %v2320 = vrsqrt.pop %v1809
      %v2321 = vmul.f32 %v1809, %v2320
      %vm2322 = vcmp.eq.f32.partialorder %v1809, inf
      %v2323 = vsel %vm2322, %v1809, %v2321
      %vm2324 = vcmp.eq.f32.partialorder %v1809, 0.0
      %v2325 = vand.u32 %v1809, 2147483648
      %v2326 = vsel %vm2324, %v2325, %v2323
      %v2327 = vrsqrt.pop %v1811
      %v2328 = vmul.f32 %v1811, %v2327
      %vm2329 = vcmp.eq.f32.partialorder %v1811, inf
      %v2330 = vsel %vm2329, %v1811, %v2328
      %vm2331 = vcmp.eq.f32.partialorder %v1811, 0.0
      %v2332 = vand.u32 %v1811, 2147483648
      %v2333 = vsel %vm2331, %v2332, %v2330
      %v2334 = vrsqrt.pop %v1813
      %v2335 = vmul.f32 %v1813, %v2334
      %vm2336 = vcmp.eq.f32.partialorder %v1813, inf
      %v2337 = vsel %vm2336, %v1813, %v2335
      %vm2338 = vcmp.eq.f32.partialorder %v1813, 0.0
      %v2339 = vand.u32 %v1813, 2147483648
      %v2340 = vsel %vm2338, %v2339, %v2337
      %v2341 = vrsqrt.pop %v1815
      %v2342 = vmul.f32 %v1815, %v2341
      %vm2343 = vcmp.eq.f32.partialorder %v1815, inf
      %v2344 = vsel %vm2343, %v1815, %v2342
      %vm2345 = vcmp.eq.f32.partialorder %v1815, 0.0
      %v2346 = vand.u32 %v1815, 2147483648
      %v2347 = vsel %vm2345, %v2346, %v2344
      %v2348 = vrsqrt.pop %v1817
      %v2349 = vmul.f32 %v1817, %v2348
      %vm2350 = vcmp.eq.f32.partialorder %v1817, inf
      %v2351 = vsel %vm2350, %v1817, %v2349
      %vm2352 = vcmp.eq.f32.partialorder %v1817, 0.0
      %v2353 = vand.u32 %v1817, 2147483648
      %v2354 = vsel %vm2352, %v2353, %v2351
      %v2355 = vrsqrt.pop %v1819
      %v2356 = vmul.f32 %v1819, %v2355
      %vm2357 = vcmp.eq.f32.partialorder %v1819, inf
      %v2358 = vsel %vm2357, %v1819, %v2356
      %vm2359 = vcmp.eq.f32.partialorder %v1819, 0.0
      %v2360 = vand.u32 %v1819, 2147483648
      %v2361 = vsel %vm2359, %v2360, %v2358
      %v2362 = vrsqrt.pop %v1821
      %v2363 = vmul.f32 %v1821, %v2362
      %vm2364 = vcmp.eq.f32.partialorder %v1821, inf
      %v2365 = vsel %vm2364, %v1821, %v2363
      %vm2366 = vcmp.eq.f32.partialorder %v1821, 0.0
      %v2367 = vand.u32 %v1821, 2147483648
      %v2368 = vsel %vm2366, %v2367, %v2365
      %v2369 = vrsqrt.pop %v1823
      %v2370 = vmul.f32 %v1823, %v2369
      %vm2371 = vcmp.eq.f32.partialorder %v1823, inf
      %v2372 = vsel %vm2371, %v1823, %v2370
      %vm2373 = vcmp.eq.f32.partialorder %v1823, 0.0
      %v2374 = vand.u32 %v1823, 2147483648
      %v2375 = vsel %vm2373, %v2374, %v2372
      %v2376 = vrsqrt.pop %v1825
      %v2377 = vmul.f32 %v1825, %v2376
      %vm2378 = vcmp.eq.f32.partialorder %v1825, inf
      %v2379 = vsel %vm2378, %v1825, %v2377
      %vm2380 = vcmp.eq.f32.partialorder %v1825, 0.0
      %v2381 = vand.u32 %v1825, 2147483648
      %v2382 = vsel %vm2380, %v2381, %v2379
      %v2383 = vrsqrt.pop %v1827
      %v2384 = vmul.f32 %v1827, %v2383
      %vm2385 = vcmp.eq.f32.partialorder %v1827, inf
      %v2386 = vsel %vm2385, %v1827, %v2384
      %vm2387 = vcmp.eq.f32.partialorder %v1827, 0.0
      %v2388 = vand.u32 %v1827, 2147483648
      %v2389 = vsel %vm2387, %v2388, %v2386
      %v2390 = vrsqrt.pop %v1829
      %v2391 = vmul.f32 %v1829, %v2390
      %vm2392 = vcmp.eq.f32.partialorder %v1829, inf
      %v2393 = vsel %vm2392, %v1829, %v2391
      %vm2394 = vcmp.eq.f32.partialorder %v1829, 0.0
      %v2395 = vand.u32 %v1829, 2147483648
      %v2396 = vsel %vm2394, %v2395, %v2393
      %v2397 = vrsqrt.pop %v1831
      %v2398 = vmul.f32 %v1831, %v2397
      %vm2399 = vcmp.eq.f32.partialorder %v1831, inf
      %v2400 = vsel %vm2399, %v1831, %v2398
      %vm2401 = vcmp.eq.f32.partialorder %v1831, 0.0
      %v2402 = vand.u32 %v1831, 2147483648
      %v2403 = vsel %vm2401, %v2402, %v2400
      %v2404 = vrsqrt.pop %v1833
      %v2405 = vmul.f32 %v1833, %v2404
      %vm2406 = vcmp.eq.f32.partialorder %v1833, inf
      %v2407 = vsel %vm2406, %v1833, %v2405
      %vm2408 = vcmp.eq.f32.partialorder %v1833, 0.0
      %v2409 = vand.u32 %v1833, 2147483648
      %v2410 = vsel %vm2408, %v2409, %v2407
      %v2411 = vrsqrt.pop %v1835
      %v2412 = vmul.f32 %v1835, %v2411
      %vm2413 = vcmp.eq.f32.partialorder %v1835, inf
      %v2414 = vsel %vm2413, %v1835, %v2412
      %vm2415 = vcmp.eq.f32.partialorder %v1835, 0.0
      %v2416 = vand.u32 %v1835, 2147483648
      %v2417 = vsel %vm2415, %v2416, %v2414
      %v2418 = vrsqrt.pop %v1837
      %v2419 = vmul.f32 %v1837, %v2418
      %vm2420 = vcmp.eq.f32.partialorder %v1837, inf
      %v2421 = vsel %vm2420, %v1837, %v2419
      %vm2422 = vcmp.eq.f32.partialorder %v1837, 0.0
      %v2423 = vand.u32 %v1837, 2147483648
      %v2424 = vsel %vm2422, %v2423, %v2421
      %v2425 = vrsqrt.pop %v1839
      %v2426 = vmul.f32 %v1839, %v2425
      %vm2427 = vcmp.eq.f32.partialorder %v1839, inf
      %v2428 = vsel %vm2427, %v1839, %v2426
      %vm2429 = vcmp.eq.f32.partialorder %v1839, 0.0
      %v2430 = vand.u32 %v1839, 2147483648
      %v2431 = vsel %vm2429, %v2430, %v2428
      %v2432 = vrsqrt.pop %v1841
      %v2433 = vmul.f32 %v1841, %v2432
      %vm2434 = vcmp.eq.f32.partialorder %v1841, inf
      %v2435 = vsel %vm2434, %v1841, %v2433
      %vm2436 = vcmp.eq.f32.partialorder %v1841, 0.0
      %v2437 = vand.u32 %v1841, 2147483648
      %v2438 = vsel %vm2436, %v2437, %v2435
      %v2439 = vrsqrt.pop %v1843
      %v2440 = vmul.f32 %v1843, %v2439
      %vm2441 = vcmp.eq.f32.partialorder %v1843, inf
      %v2442 = vsel %vm2441, %v1843, %v2440
      %vm2443 = vcmp.eq.f32.partialorder %v1843, 0.0
      %v2444 = vand.u32 %v1843, 2147483648
      %v2445 = vsel %vm2443, %v2444, %v2442
      %v2446 = vrsqrt.pop %v1845
      %v2447 = vmul.f32 %v1845, %v2446
      %vm2448 = vcmp.eq.f32.partialorder %v1845, inf
      %v2449 = vsel %vm2448, %v1845, %v2447
      %vm2450 = vcmp.eq.f32.partialorder %v1845, 0.0
      %v2451 = vand.u32 %v1845, 2147483648
      %v2452 = vsel %vm2450, %v2451, %v2449
      %v2453 = vrsqrt.pop %v1847
      %v2454 = vmul.f32 %v1847, %v2453
      %vm2455 = vcmp.eq.f32.partialorder %v1847, inf
      %v2456 = vsel %vm2455, %v1847, %v2454
      %vm2457 = vcmp.eq.f32.partialorder %v1847, 0.0
      %v2458 = vand.u32 %v1847, 2147483648
      %v2459 = vsel %vm2457, %v2458, %v2456
      %v2460 = vrsqrt.pop %v1849
      %v2461 = vmul.f32 %v1849, %v2460
      %vm2462 = vcmp.eq.f32.partialorder %v1849, inf
      %v2463 = vsel %vm2462, %v1849, %v2461
      %vm2464 = vcmp.eq.f32.partialorder %v1849, 0.0
      %v2465 = vand.u32 %v1849, 2147483648
      %v2466 = vsel %vm2464, %v2465, %v2463
      %v2467 = vrsqrt.pop %v1851
      %v2468 = vmul.f32 %v1851, %v2467
      %vm2469 = vcmp.eq.f32.partialorder %v1851, inf
      %v2470 = vsel %vm2469, %v1851, %v2468
      %vm2471 = vcmp.eq.f32.partialorder %v1851, 0.0
      %v2472 = vand.u32 %v1851, 2147483648
      %v2473 = vsel %vm2471, %v2472, %v2470
      %v2474 = vrsqrt.pop %v1853
      %v2475 = vmul.f32 %v1853, %v2474
      %vm2476 = vcmp.eq.f32.partialorder %v1853, inf
      %v2477 = vsel %vm2476, %v1853, %v2475
      %vm2478 = vcmp.eq.f32.partialorder %v1853, 0.0
      %v2479 = vand.u32 %v1853, 2147483648
      %v2480 = vsel %vm2478, %v2479, %v2477
      %v2481 = vrsqrt.pop %v1855
      %v2482 = vmul.f32 %v1855, %v2481
      %vm2483 = vcmp.eq.f32.partialorder %v1855, inf
      %v2484 = vsel %vm2483, %v1855, %v2482
      %vm2485 = vcmp.eq.f32.partialorder %v1855, 0.0
      %v2486 = vand.u32 %v1855, 2147483648
      %v2487 = vsel %vm2485, %v2486, %v2484
      %v2488 = vrsqrt.pop %v1857
      %v2489 = vmul.f32 %v1857, %v2488
      %vm2490 = vcmp.eq.f32.partialorder %v1857, inf
      %v2491 = vsel %vm2490, %v1857, %v2489
      %vm2492 = vcmp.eq.f32.partialorder %v1857, 0.0
      %v2493 = vand.u32 %v1857, 2147483648
      %v2494 = vsel %vm2492, %v2493, %v2491
      %v2495 = vrsqrt.pop %v1859
      %v2496 = vmul.f32 %v1859, %v2495
      %vm2497 = vcmp.eq.f32.partialorder %v1859, inf
      %v2498 = vsel %vm2497, %v1859, %v2496
      %vm2499 = vcmp.eq.f32.partialorder %v1859, 0.0
      %v2500 = vand.u32 %v1859, 2147483648
      %v2501 = vsel %vm2499, %v2500, %v2498
      %v2502 = vrsqrt.pop %v1861
      %v2503 = vmul.f32 %v1861, %v2502
      %vm2504 = vcmp.eq.f32.partialorder %v1861, inf
      %v2505 = vsel %vm2504, %v1861, %v2503
      %vm2506 = vcmp.eq.f32.partialorder %v1861, 0.0
      %v2507 = vand.u32 %v1861, 2147483648
      %v2508 = vsel %vm2506, %v2507, %v2505
      %v2509 = vrsqrt.pop %v1863
      %v2510 = vmul.f32 %v1863, %v2509
      %vm2511 = vcmp.eq.f32.partialorder %v1863, inf
      %v2512 = vsel %vm2511, %v1863, %v2510
      %vm2513 = vcmp.eq.f32.partialorder %v1863, 0.0
      %v2514 = vand.u32 %v1863, 2147483648
      %v2515 = vsel %vm2513, %v2514, %v2512
      %v2516 = vrsqrt.pop %v1865
      %v2517 = vmul.f32 %v1865, %v2516
      %vm2518 = vcmp.eq.f32.partialorder %v1865, inf
      %v2519 = vsel %vm2518, %v1865, %v2517
      %vm2520 = vcmp.eq.f32.partialorder %v1865, 0.0
      %v2521 = vand.u32 %v1865, 2147483648
      %v2522 = vsel %vm2520, %v2521, %v2519
      %v2523 = vrsqrt.pop %v1867
      %v2524 = vmul.f32 %v1867, %v2523
      %vm2525 = vcmp.eq.f32.partialorder %v1867, inf
      %v2526 = vsel %vm2525, %v1867, %v2524
      %vm2527 = vcmp.eq.f32.partialorder %v1867, 0.0
      %v2528 = vand.u32 %v1867, 2147483648
      %v2529 = vsel %vm2527, %v2528, %v2526
      %v2530 = vrsqrt.pop %v1869
      %v2531 = vmul.f32 %v1869, %v2530
      %vm2532 = vcmp.eq.f32.partialorder %v1869, inf
      %v2533 = vsel %vm2532, %v1869, %v2531
      %vm2534 = vcmp.eq.f32.partialorder %v1869, 0.0
      %v2535 = vand.u32 %v1869, 2147483648
      %v2536 = vsel %vm2534, %v2535, %v2533
      %v2537 = vrsqrt.pop %v1871
      %v2538 = vmul.f32 %v1871, %v2537
      %vm2539 = vcmp.eq.f32.partialorder %v1871, inf
      %v2540 = vsel %vm2539, %v1871, %v2538
      %vm2541 = vcmp.eq.f32.partialorder %v1871, 0.0
      %v2542 = vand.u32 %v1871, 2147483648
      %v2543 = vsel %vm2541, %v2542, %v2540
      %v2544 = vrsqrt.pop %v1873
      %v2545 = vmul.f32 %v1873, %v2544
      %vm2546 = vcmp.eq.f32.partialorder %v1873, inf
      %v2547 = vsel %vm2546, %v1873, %v2545
      %vm2548 = vcmp.eq.f32.partialorder %v1873, 0.0
      %v2549 = vand.u32 %v1873, 2147483648
      %v2550 = vsel %vm2548, %v2549, %v2547
      %v2551 = vrsqrt.pop %v1875
      %v2552 = vmul.f32 %v1875, %v2551
      %vm2553 = vcmp.eq.f32.partialorder %v1875, inf
      %v2554 = vsel %vm2553, %v1875, %v2552
      %vm2555 = vcmp.eq.f32.partialorder %v1875, 0.0
      %v2556 = vand.u32 %v1875, 2147483648
      %v2557 = vsel %vm2555, %v2556, %v2554
      %v2558 = vrsqrt.pop %v1877
      %v2559 = vmul.f32 %v1877, %v2558
      %vm2560 = vcmp.eq.f32.partialorder %v1877, inf
      %v2561 = vsel %vm2560, %v1877, %v2559
      %vm2562 = vcmp.eq.f32.partialorder %v1877, 0.0
      %v2563 = vand.u32 %v1877, 2147483648
      %v2564 = vsel %vm2562, %v2563, %v2561
      %v2565 = vrsqrt.pop %v1879
      %v2566 = vmul.f32 %v1879, %v2565
      %vm2567 = vcmp.eq.f32.partialorder %v1879, inf
      %v2568 = vsel %vm2567, %v1879, %v2566
      %vm2569 = vcmp.eq.f32.partialorder %v1879, 0.0
      %v2570 = vand.u32 %v1879, 2147483648
      %v2571 = vsel %vm2569, %v2570, %v2568
      %v2572 = vrsqrt.pop %v1881
      %v2573 = vmul.f32 %v1881, %v2572
      %vm2574 = vcmp.eq.f32.partialorder %v1881, inf
      %v2575 = vsel %vm2574, %v1881, %v2573
      %vm2576 = vcmp.eq.f32.partialorder %v1881, 0.0
      %v2577 = vand.u32 %v1881, 2147483648
      %v2578 = vsel %vm2576, %v2577, %v2575
      %v2579 = vrsqrt.pop %v1883
      %v2580 = vmul.f32 %v1883, %v2579
      %vm2581 = vcmp.eq.f32.partialorder %v1883, inf
      %v2582 = vsel %vm2581, %v1883, %v2580
      %vm2583 = vcmp.eq.f32.partialorder %v1883, 0.0
      %v2584 = vand.u32 %v1883, 2147483648
      %v2585 = vsel %vm2583, %v2584, %v2582
      %v2586 = vrsqrt.pop %v1885
      %v2587 = vmul.f32 %v1885, %v2586
      %vm2588 = vcmp.eq.f32.partialorder %v1885, inf
      %v2589 = vsel %vm2588, %v1885, %v2587
      %vm2590 = vcmp.eq.f32.partialorder %v1885, 0.0
      %v2591 = vand.u32 %v1885, 2147483648
      %v2592 = vsel %vm2590, %v2591, %v2589
      %v2593 = vrsqrt.pop %v1887
      %v2594 = vmul.f32 %v1887, %v2593
      %vm2595 = vcmp.eq.f32.partialorder %v1887, inf
      %v2596 = vsel %vm2595, %v1887, %v2594
      %vm2597 = vcmp.eq.f32.partialorder %v1887, 0.0
      %v2598 = vand.u32 %v1887, 2147483648
      %v2599 = vsel %vm2597, %v2598, %v2596
      %v2600 = vrsqrt.pop %v1889
      %v2601 = vmul.f32 %v1889, %v2600
      %vm2602 = vcmp.eq.f32.partialorder %v1889, inf
      %v2603 = vsel %vm2602, %v1889, %v2601
      %vm2604 = vcmp.eq.f32.partialorder %v1889, 0.0
      %v2605 = vand.u32 %v1889, 2147483648
      %v2606 = vsel %vm2604, %v2605, %v2603
      %v2607 = vrsqrt.pop %v1891
      %v2608 = vmul.f32 %v1891, %v2607
      %vm2609 = vcmp.eq.f32.partialorder %v1891, inf
      %v2610 = vsel %vm2609, %v1891, %v2608
      %vm2611 = vcmp.eq.f32.partialorder %v1891, 0.0
      %v2612 = vand.u32 %v1891, 2147483648
      %v2613 = vsel %vm2611, %v2612, %v2610
      %v2614 = vrsqrt.pop %v1893
      %v2615 = vmul.f32 %v1893, %v2614
      %vm2616 = vcmp.eq.f32.partialorder %v1893, inf
      %v2617 = vsel %vm2616, %v1893, %v2615
      %vm2618 = vcmp.eq.f32.partialorder %v1893, 0.0
      %v2619 = vand.u32 %v1893, 2147483648
      %v2620 = vsel %vm2618, %v2619, %v2617
      %v2621 = vrsqrt.pop %v1895
      %v2622 = vmul.f32 %v1895, %v2621
      %vm2623 = vcmp.eq.f32.partialorder %v1895, inf
      %v2624 = vsel %vm2623, %v1895, %v2622
      %vm2625 = vcmp.eq.f32.partialorder %v1895, 0.0
      %v2626 = vand.u32 %v1895, 2147483648
      %v2627 = vsel %vm2625, %v2626, %v2624
      %v2628 = vrsqrt.pop %v1897
      %v2629 = vmul.f32 %v1897, %v2628
      %vm2630 = vcmp.eq.f32.partialorder %v1897, inf
      %v2631 = vsel %vm2630, %v1897, %v2629
      %vm2632 = vcmp.eq.f32.partialorder %v1897, 0.0
      %v2633 = vand.u32 %v1897, 2147483648
      %v2634 = vsel %vm2632, %v2633, %v2631
      %v2635 = vrsqrt.pop %v1899
      %v2636 = vmul.f32 %v1899, %v2635
      %vm2637 = vcmp.eq.f32.partialorder %v1899, inf
      %v2638 = vsel %vm2637, %v1899, %v2636
      %vm2639 = vcmp.eq.f32.partialorder %v1899, 0.0
      %v2640 = vand.u32 %v1899, 2147483648
      %v2641 = vsel %vm2639, %v2640, %v2638
      %v2642 = vrsqrt.pop %v1901
      %v2643 = vmul.f32 %v1901, %v2642
      %vm2644 = vcmp.eq.f32.partialorder %v1901, inf
      %v2645 = vsel %vm2644, %v1901, %v2643
      %vm2646 = vcmp.eq.f32.partialorder %v1901, 0.0
      %v2647 = vand.u32 %v1901, 2147483648
      %v2648 = vsel %vm2646, %v2647, %v2645
      %v2649 = vrsqrt.pop %v1903
      %v2650 = vmul.f32 %v1903, %v2649
      %vm2651 = vcmp.eq.f32.partialorder %v1903, inf
      %v2652 = vsel %vm2651, %v1903, %v2650
      %vm2653 = vcmp.eq.f32.partialorder %v1903, 0.0
      %v2654 = vand.u32 %v1903, 2147483648
      %v2655 = vsel %vm2653, %v2654, %v2652
      %v2656 = vrsqrt.pop %v1905
      %v2657 = vmul.f32 %v1905, %v2656
      %vm2658 = vcmp.eq.f32.partialorder %v1905, inf
      %v2659 = vsel %vm2658, %v1905, %v2657
      %vm2660 = vcmp.eq.f32.partialorder %v1905, 0.0
      %v2661 = vand.u32 %v1905, 2147483648
      %v2662 = vsel %vm2660, %v2661, %v2659
      %v2663 = vrsqrt.pop %v1907
      %v2664 = vmul.f32 %v1907, %v2663
      %vm2665 = vcmp.eq.f32.partialorder %v1907, inf
      %v2666 = vsel %vm2665, %v1907, %v2664
      %vm2667 = vcmp.eq.f32.partialorder %v1907, 0.0
      %v2668 = vand.u32 %v1907, 2147483648
      %v2669 = vsel %vm2667, %v2668, %v2666
      %v2670 = vrsqrt.pop %v1909
      %v2671 = vmul.f32 %v1909, %v2670
      %vm2672 = vcmp.eq.f32.partialorder %v1909, inf
      %v2673 = vsel %vm2672, %v1909, %v2671
      %vm2674 = vcmp.eq.f32.partialorder %v1909, 0.0
      %v2675 = vand.u32 %v1909, 2147483648
      %v2676 = vsel %vm2674, %v2675, %v2673
      %v2677 = vrsqrt.pop %v1911
      %v2678 = vmul.f32 %v1911, %v2677
      %vm2679 = vcmp.eq.f32.partialorder %v1911, inf
      %v2680 = vsel %vm2679, %v1911, %v2678
      %vm2681 = vcmp.eq.f32.partialorder %v1911, 0.0
      %v2682 = vand.u32 %v1911, 2147483648
      %v2683 = vsel %vm2681, %v2682, %v2680
      %v2684 = vrsqrt.pop %v1913
      %v2685 = vmul.f32 %v1913, %v2684
      %vm2686 = vcmp.eq.f32.partialorder %v1913, inf
      %v2687 = vsel %vm2686, %v1913, %v2685
      %vm2688 = vcmp.eq.f32.partialorder %v1913, 0.0
      %v2689 = vand.u32 %v1913, 2147483648
      %v2690 = vsel %vm2688, %v2689, %v2687
      %v2691 = vrsqrt.pop %v1915
      %v2692 = vmul.f32 %v1915, %v2691
      %vm2693 = vcmp.eq.f32.partialorder %v1915, inf
      %v2694 = vsel %vm2693, %v1915, %v2692
      %vm2695 = vcmp.eq.f32.partialorder %v1915, 0.0
      %v2696 = vand.u32 %v1915, 2147483648
      %v2697 = vsel %vm2695, %v2696, %v2694
      %v2698 = vrsqrt.pop %v1917
      %v2699 = vmul.f32 %v1917, %v2698
      %vm2700 = vcmp.eq.f32.partialorder %v1917, inf
      %v2701 = vsel %vm2700, %v1917, %v2699
      %vm2702 = vcmp.eq.f32.partialorder %v1917, 0.0
      %v2703 = vand.u32 %v1917, 2147483648
      %v2704 = vsel %vm2702, %v2703, %v2701
      %v2705 = vrsqrt.pop %v1919
      %v2706 = vmul.f32 %v1919, %v2705
      %vm2707 = vcmp.eq.f32.partialorder %v1919, inf
      %v2708 = vsel %vm2707, %v1919, %v2706
      %vm2709 = vcmp.eq.f32.partialorder %v1919, 0.0
      %v2710 = vand.u32 %v1919, 2147483648
      %v2711 = vsel %vm2709, %v2710, %v2708
      %v2712 = vrsqrt.pop %v1921
      %v2713 = vmul.f32 %v1921, %v2712
      %vm2714 = vcmp.eq.f32.partialorder %v1921, inf
      %v2715 = vsel %vm2714, %v1921, %v2713
      %vm2716 = vcmp.eq.f32.partialorder %v1921, 0.0
      %v2717 = vand.u32 %v1921, 2147483648
      %v2718 = vsel %vm2716, %v2717, %v2715
      %v2719 = vrsqrt.pop %v1923
      %v2720 = vmul.f32 %v1923, %v2719
      %vm2721 = vcmp.eq.f32.partialorder %v1923, inf
      %v2722 = vsel %vm2721, %v1923, %v2720
      %vm2723 = vcmp.eq.f32.partialorder %v1923, 0.0
      %v2724 = vand.u32 %v1923, 2147483648
      %v2725 = vsel %vm2723, %v2724, %v2722
      %v2726 = vrsqrt.pop %v1925
      %v2727 = vmul.f32 %v1925, %v2726
      %vm2728 = vcmp.eq.f32.partialorder %v1925, inf
      %v2729 = vsel %vm2728, %v1925, %v2727
      %vm2730 = vcmp.eq.f32.partialorder %v1925, 0.0
      %v2731 = vand.u32 %v1925, 2147483648
      %v2732 = vsel %vm2730, %v2731, %v2729
      %v2733 = vrsqrt.pop %v1927
      %v2734 = vmul.f32 %v1927, %v2733
      %vm2735 = vcmp.eq.f32.partialorder %v1927, inf
      %v2736 = vsel %vm2735, %v1927, %v2734
      %vm2737 = vcmp.eq.f32.partialorder %v1927, 0.0
      %v2738 = vand.u32 %v1927, 2147483648
      %v2739 = vsel %vm2737, %v2738, %v2736
      %v2740 = vrsqrt.pop %v1929
      %v2741 = vmul.f32 %v1929, %v2740
      %vm2742 = vcmp.eq.f32.partialorder %v1929, inf
      %v2743 = vsel %vm2742, %v1929, %v2741
      %vm2744 = vcmp.eq.f32.partialorder %v1929, 0.0
      %v2745 = vand.u32 %v1929, 2147483648
      %v2746 = vsel %vm2744, %v2745, %v2743
      %v2747 = vrsqrt.pop %v1931
      %v2748 = vmul.f32 %v1931, %v2747
      %vm2749 = vcmp.eq.f32.partialorder %v1931, inf
      %v2750 = vsel %vm2749, %v1931, %v2748
      %vm2751 = vcmp.eq.f32.partialorder %v1931, 0.0
      %v2752 = vand.u32 %v1931, 2147483648
      %v2753 = vsel %vm2751, %v2752, %v2750
      %v2754 = vrsqrt.pop %v1933
      %v2755 = vmul.f32 %v1933, %v2754
      %vm2756 = vcmp.eq.f32.partialorder %v1933, inf
      %v2757 = vsel %vm2756, %v1933, %v2755
      %vm2758 = vcmp.eq.f32.partialorder %v1933, 0.0
      %v2759 = vand.u32 %v1933, 2147483648
      %v2760 = vsel %vm2758, %v2759, %v2757
      %v2761 = vrsqrt.pop %v1935
      %v2762 = vmul.f32 %v1935, %v2761
      %vm2763 = vcmp.eq.f32.partialorder %v1935, inf
      %v2764 = vsel %vm2763, %v1935, %v2762
      %vm2765 = vcmp.eq.f32.partialorder %v1935, 0.0
      %v2766 = vand.u32 %v1935, 2147483648
      %v2767 = vsel %vm2765, %v2766, %v2764
      %v2768 = vrsqrt.pop %v1937
      %v2769 = vmul.f32 %v1937, %v2768
      %vm2770 = vcmp.eq.f32.partialorder %v1937, inf
      %v2771 = vsel %vm2770, %v1937, %v2769
      %vm2772 = vcmp.eq.f32.partialorder %v1937, 0.0
      %v2773 = vand.u32 %v1937, 2147483648
      %v2774 = vsel %vm2772, %v2773, %v2771
      %v2775 = vrsqrt.pop %v1939
      %v2776 = vmul.f32 %v1939, %v2775
      %vm2777 = vcmp.eq.f32.partialorder %v1939, inf
      %v2778 = vsel %vm2777, %v1939, %v2776
      %vm2779 = vcmp.eq.f32.partialorder %v1939, 0.0
      %v2780 = vand.u32 %v1939, 2147483648
      %v2781 = vsel %vm2779, %v2780, %v2778
      %v2782 = vrsqrt.pop %v1941
      %v2783 = vmul.f32 %v1941, %v2782
      %vm2784 = vcmp.eq.f32.partialorder %v1941, inf
      %v2785 = vsel %vm2784, %v1941, %v2783
      %vm2786 = vcmp.eq.f32.partialorder %v1941, 0.0
      %v2787 = vand.u32 %v1941, 2147483648
      %v2788 = vsel %vm2786, %v2787, %v2785
      %v2789 = vrsqrt.pop %v1943
      %v2790 = vmul.f32 %v1943, %v2789
      %vm2791 = vcmp.eq.f32.partialorder %v1943, inf
      %v2792 = vsel %vm2791, %v1943, %v2790
      %vm2793 = vcmp.eq.f32.partialorder %v1943, 0.0
      %v2794 = vand.u32 %v1943, 2147483648
      %v2795 = vsel %vm2793, %v2794, %v2792
      %v2796 = vrsqrt.pop %v1945
      %v2797 = vmul.f32 %v1945, %v2796
      %vm2798 = vcmp.eq.f32.partialorder %v1945, inf
      %v2799 = vsel %vm2798, %v1945, %v2797
      %vm2800 = vcmp.eq.f32.partialorder %v1945, 0.0
      %v2801 = vand.u32 %v1945, 2147483648
      %v2802 = vsel %vm2800, %v2801, %v2799
      %v2803 = vrsqrt.pop %v1947
      %v2804 = vmul.f32 %v1947, %v2803
      %vm2805 = vcmp.eq.f32.partialorder %v1947, inf
      %v2806 = vsel %vm2805, %v1947, %v2804
      %vm2807 = vcmp.eq.f32.partialorder %v1947, 0.0
      %v2808 = vand.u32 %v1947, 2147483648
      %v2809 = vsel %vm2807, %v2808, %v2806
      %v2810 = vrsqrt.pop %v1949
      %v2811 = vmul.f32 %v1949, %v2810
      %vm2812 = vcmp.eq.f32.partialorder %v1949, inf
      %v2813 = vsel %vm2812, %v1949, %v2811
      %vm2814 = vcmp.eq.f32.partialorder %v1949, 0.0
      %v2815 = vand.u32 %v1949, 2147483648
      %v2816 = vsel %vm2814, %v2815, %v2813
      %v2817 = vrsqrt.pop %v1951
      %v2818 = vmul.f32 %v1951, %v2817
      %vm2819 = vcmp.eq.f32.partialorder %v1951, inf
      %v2820 = vsel %vm2819, %v1951, %v2818
      %vm2821 = vcmp.eq.f32.partialorder %v1951, 0.0
      %v2822 = vand.u32 %v1951, 2147483648
      %v2823 = vsel %vm2821, %v2822, %v2820
      %v2824 = vrsqrt.pop %v1953
      %v2825 = vmul.f32 %v1953, %v2824
      %vm2826 = vcmp.eq.f32.partialorder %v1953, inf
      %v2827 = vsel %vm2826, %v1953, %v2825
      %vm2828 = vcmp.eq.f32.partialorder %v1953, 0.0
      %v2829 = vand.u32 %v1953, 2147483648
      %v2830 = vsel %vm2828, %v2829, %v2827
      %v2831 = vrsqrt.pop %v1955
      %v2832 = vmul.f32 %v1955, %v2831
      %vm2833 = vcmp.eq.f32.partialorder %v1955, inf
      %v2834 = vsel %vm2833, %v1955, %v2832
      %vm2835 = vcmp.eq.f32.partialorder %v1955, 0.0
      %v2836 = vand.u32 %v1955, 2147483648
      %v2837 = vsel %vm2835, %v2836, %v2834
      %v2838 = vrsqrt.pop %v1957
      %v2839 = vmul.f32 %v1957, %v2838
      %vm2840 = vcmp.eq.f32.partialorder %v1957, inf
      %v2841 = vsel %vm2840, %v1957, %v2839
      %vm2842 = vcmp.eq.f32.partialorder %v1957, 0.0
      %v2843 = vand.u32 %v1957, 2147483648
      %v2844 = vsel %vm2842, %v2843, %v2841
      %v2845 = vrsqrt.pop %v1959
      %v2846 = vmul.f32 %v1959, %v2845
      %vm2847 = vcmp.eq.f32.partialorder %v1959, inf
      %v2848 = vsel %vm2847, %v1959, %v2846
      %vm2849 = vcmp.eq.f32.partialorder %v1959, 0.0
      %v2850 = vand.u32 %v1959, 2147483648
      %v2851 = vsel %vm2849, %v2850, %v2848
      %v2852 = vrsqrt.pop %v1961
      %v2853 = vmul.f32 %v1961, %v2852
      %vm2854 = vcmp.eq.f32.partialorder %v1961, inf
      %v2855 = vsel %vm2854, %v1961, %v2853
      %vm2856 = vcmp.eq.f32.partialorder %v1961, 0.0
      %v2857 = vand.u32 %v1961, 2147483648
      %v2858 = vsel %vm2856, %v2857, %v2855
      %v2859 = vrsqrt.pop %v1963
      %v2860 = vmul.f32 %v1963, %v2859
      %vm2861 = vcmp.eq.f32.partialorder %v1963, inf
      %v2862 = vsel %vm2861, %v1963, %v2860
      %vm2863 = vcmp.eq.f32.partialorder %v1963, 0.0
      %v2864 = vand.u32 %v1963, 2147483648
      %v2865 = vsel %vm2863, %v2864, %v2862
      %v2866 = vrsqrt.pop %v1965
      %v2867 = vmul.f32 %v1965, %v2866
      %vm2868 = vcmp.eq.f32.partialorder %v1965, inf
      %v2869 = vsel %vm2868, %v1965, %v2867
      %vm2870 = vcmp.eq.f32.partialorder %v1965, 0.0
      %v2871 = vand.u32 %v1965, 2147483648
      %v2872 = vsel %vm2870, %v2871, %v2869
      %v2873 = vrsqrt.pop %v1967
      %v2874 = vmul.f32 %v1967, %v2873
      %vm2875 = vcmp.eq.f32.partialorder %v1967, inf
      %v2876 = vsel %vm2875, %v1967, %v2874
      %vm2877 = vcmp.eq.f32.partialorder %v1967, 0.0
      %v2878 = vand.u32 %v1967, 2147483648
      %v2879 = vsel %vm2877, %v2878, %v2876
      %v2880 = vrsqrt.pop %v1969
      %v2881 = vmul.f32 %v1969, %v2880
      %vm2882 = vcmp.eq.f32.partialorder %v1969, inf
      %v2883 = vsel %vm2882, %v1969, %v2881
      %vm2884 = vcmp.eq.f32.partialorder %v1969, 0.0
      %v2885 = vand.u32 %v1969, 2147483648
      %v2886 = vsel %vm2884, %v2885, %v2883
      %v2887 = vrsqrt.pop %v1971
      %v2888 = vmul.f32 %v1971, %v2887
      %vm2889 = vcmp.eq.f32.partialorder %v1971, inf
      %v2890 = vsel %vm2889, %v1971, %v2888
      %vm2891 = vcmp.eq.f32.partialorder %v1971, 0.0
      %v2892 = vand.u32 %v1971, 2147483648
      %v2893 = vsel %vm2891, %v2892, %v2890
      %v2894 = vrsqrt.pop %v1973
      %v2895 = vmul.f32 %v1973, %v2894
      %vm2896 = vcmp.eq.f32.partialorder %v1973, inf
      %v2897 = vsel %vm2896, %v1973, %v2895
      %vm2898 = vcmp.eq.f32.partialorder %v1973, 0.0
      %v2899 = vand.u32 %v1973, 2147483648
      %v2900 = vsel %vm2898, %v2899, %v2897
      %v2901 = vrsqrt.pop %v1975
      %v2902 = vmul.f32 %v1975, %v2901
      %vm2903 = vcmp.eq.f32.partialorder %v1975, inf
      %v2904 = vsel %vm2903, %v1975, %v2902
      %vm2905 = vcmp.eq.f32.partialorder %v1975, 0.0
      %v2906 = vand.u32 %v1975, 2147483648
      %v2907 = vsel %vm2905, %v2906, %v2904
      %v2908 = vrsqrt.pop %v1977
      %v2909 = vmul.f32 %v1977, %v2908
      %vm2910 = vcmp.eq.f32.partialorder %v1977, inf
      %v2911 = vsel %vm2910, %v1977, %v2909
      %vm2912 = vcmp.eq.f32.partialorder %v1977, 0.0
      %v2913 = vand.u32 %v1977, 2147483648
      %v2914 = vsel %vm2912, %v2913, %v2911
      %v2915 = vrsqrt.pop %v1979
      %v2916 = vmul.f32 %v1979, %v2915
      %vm2917 = vcmp.eq.f32.partialorder %v1979, inf
      %v2918 = vsel %vm2917, %v1979, %v2916
      %vm2919 = vcmp.eq.f32.partialorder %v1979, 0.0
      %v2920 = vand.u32 %v1979, 2147483648
      %v2921 = vsel %vm2919, %v2920, %v2918
      %v2922 = vrsqrt.pop %v1981
      %v2923 = vmul.f32 %v1981, %v2922
      %vm2924 = vcmp.eq.f32.partialorder %v1981, inf
      %v2925 = vsel %vm2924, %v1981, %v2923
      %vm2926 = vcmp.eq.f32.partialorder %v1981, 0.0
      %v2927 = vand.u32 %v1981, 2147483648
      %v2928 = vsel %vm2926, %v2927, %v2925
      %v2929 = vrsqrt.pop %v1983
      %v2930 = vmul.f32 %v1983, %v2929
      %vm2931 = vcmp.eq.f32.partialorder %v1983, inf
      %v2932 = vsel %vm2931, %v1983, %v2930
      %vm2933 = vcmp.eq.f32.partialorder %v1983, 0.0
      %v2934 = vand.u32 %v1983, 2147483648
      %v2935 = vsel %vm2933, %v2934, %v2932
      %v2936 = vrsqrt.pop %v1985
      %v2937 = vmul.f32 %v1985, %v2936
      %vm2938 = vcmp.eq.f32.partialorder %v1985, inf
      %v2939 = vsel %vm2938, %v1985, %v2937
      %vm2940 = vcmp.eq.f32.partialorder %v1985, 0.0
      %v2941 = vand.u32 %v1985, 2147483648
      %v2942 = vsel %vm2940, %v2941, %v2939
      %v2943 = vrsqrt.pop %v1987
      %v2944 = vmul.f32 %v1987, %v2943
      %vm2945 = vcmp.eq.f32.partialorder %v1987, inf
      %v2946 = vsel %vm2945, %v1987, %v2944
      %vm2947 = vcmp.eq.f32.partialorder %v1987, 0.0
      %v2948 = vand.u32 %v1987, 2147483648
      %v2949 = vsel %vm2947, %v2948, %v2946
      %v2950 = vrsqrt.pop %v1989
      %v2951 = vmul.f32 %v1989, %v2950
      %vm2952 = vcmp.eq.f32.partialorder %v1989, inf
      %v2953 = vsel %vm2952, %v1989, %v2951
      %vm2954 = vcmp.eq.f32.partialorder %v1989, 0.0
      %v2955 = vand.u32 %v1989, 2147483648
      %v2956 = vsel %vm2954, %v2955, %v2953
      %v2957 = vrsqrt.pop %v1991
      %v2958 = vmul.f32 %v1991, %v2957
      %vm2959 = vcmp.eq.f32.partialorder %v1991, inf
      %v2960 = vsel %vm2959, %v1991, %v2958
      %vm2961 = vcmp.eq.f32.partialorder %v1991, 0.0
      %v2962 = vand.u32 %v1991, 2147483648
      %v2963 = vsel %vm2961, %v2962, %v2960
      %v2964 = vrsqrt.pop %v1993
      %v2965 = vmul.f32 %v1993, %v2964
      %vm2966 = vcmp.eq.f32.partialorder %v1993, inf
      %v2967 = vsel %vm2966, %v1993, %v2965
      %vm2968 = vcmp.eq.f32.partialorder %v1993, 0.0
      %v2969 = vand.u32 %v1993, 2147483648
      %v2970 = vsel %vm2968, %v2969, %v2967
      %v2971 = vrsqrt.pop %v1995
      %v2972 = vmul.f32 %v1995, %v2971
      %vm2973 = vcmp.eq.f32.partialorder %v1995, inf
      %v2974 = vsel %vm2973, %v1995, %v2972
      %vm2975 = vcmp.eq.f32.partialorder %v1995, 0.0
      %v2976 = vand.u32 %v1995, 2147483648
      %v2977 = vsel %vm2975, %v2976, %v2974
      %v2978 = vrsqrt.pop %v1997
      %v2979 = vmul.f32 %v1997, %v2978
      %vm2980 = vcmp.eq.f32.partialorder %v1997, inf
      %v2981 = vsel %vm2980, %v1997, %v2979
      %vm2982 = vcmp.eq.f32.partialorder %v1997, 0.0
      %v2983 = vand.u32 %v1997, 2147483648
      %v2984 = vsel %vm2982, %v2983, %v2981
      %v2985 = vrsqrt.pop %v1999
      %v2986 = vmul.f32 %v1999, %v2985
      %vm2987 = vcmp.eq.f32.partialorder %v1999, inf
      %v2988 = vsel %vm2987, %v1999, %v2986
      %vm2989 = vcmp.eq.f32.partialorder %v1999, 0.0
      %v2990 = vand.u32 %v1999, 2147483648
      %v2991 = vsel %vm2989, %v2990, %v2988
      %v2992 = vrsqrt.pop %v2001
      %v2993 = vmul.f32 %v2001, %v2992
      %vm2994 = vcmp.eq.f32.partialorder %v2001, inf
      %v2995 = vsel %vm2994, %v2001, %v2993
      %vm2996 = vcmp.eq.f32.partialorder %v2001, 0.0
      %v2997 = vand.u32 %v2001, 2147483648
      %v2998 = vsel %vm2996, %v2997, %v2995
      %v2999 = vrsqrt.pop %v2003
      %v3000 = vmul.f32 %v2003, %v2999
      %vm3001 = vcmp.eq.f32.partialorder %v2003, inf
      %v3002 = vsel %vm3001, %v2003, %v3000
      %vm3003 = vcmp.eq.f32.partialorder %v2003, 0.0
      %v3004 = vand.u32 %v2003, 2147483648
      %v3005 = vsel %vm3003, %v3004, %v3002
      %v3006 = vrsqrt.pop %v2005
      %v3007 = vmul.f32 %v2005, %v3006
      %vm3008 = vcmp.eq.f32.partialorder %v2005, inf
      %v3009 = vsel %vm3008, %v2005, %v3007
      %vm3010 = vcmp.eq.f32.partialorder %v2005, 0.0
      %v3011 = vand.u32 %v2005, 2147483648
      %v3012 = vsel %vm3010, %v3011, %v3009
      %v3013 = vrsqrt.pop %v2007
      %v3014 = vmul.f32 %v2007, %v3013
      %vm3015 = vcmp.eq.f32.partialorder %v2007, inf
      %v3016 = vsel %vm3015, %v2007, %v3014
      %vm3017 = vcmp.eq.f32.partialorder %v2007, 0.0
      %v3018 = vand.u32 %v2007, 2147483648
      %v3019 = vsel %vm3017, %v3018, %v3016
      %v3020 = vrsqrt.pop %v2009
      %v3021 = vmul.f32 %v2009, %v3020
      %vm3022 = vcmp.eq.f32.partialorder %v2009, inf
      %v3023 = vsel %vm3022, %v2009, %v3021
      %vm3024 = vcmp.eq.f32.partialorder %v2009, 0.0
      %v3025 = vand.u32 %v2009, 2147483648
      %v3026 = vsel %vm3024, %v3025, %v3023
      %v3027 = vrsqrt.pop %v2011
      %v3028 = vmul.f32 %v2011, %v3027
      %vm3029 = vcmp.eq.f32.partialorder %v2011, inf
      %v3030 = vsel %vm3029, %v2011, %v3028
      %vm3031 = vcmp.eq.f32.partialorder %v2011, 0.0
      %v3032 = vand.u32 %v2011, 2147483648
      %v3033 = vsel %vm3031, %v3032, %v3030
      %v3034 = vrsqrt.pop %v2013
      %v3035 = vmul.f32 %v2013, %v3034
      %vm3036 = vcmp.eq.f32.partialorder %v2013, inf
      %v3037 = vsel %vm3036, %v2013, %v3035
      %vm3038 = vcmp.eq.f32.partialorder %v2013, 0.0
      %v3039 = vand.u32 %v2013, 2147483648
      %v3040 = vsel %vm3038, %v3039, %v3037
      %v3041 = vrsqrt.pop %v2015
      %v3042 = vmul.f32 %v2015, %v3041
      %vm3043 = vcmp.eq.f32.partialorder %v2015, inf
      %v3044 = vsel %vm3043, %v2015, %v3042
      %vm3045 = vcmp.eq.f32.partialorder %v2015, 0.0
      %v3046 = vand.u32 %v2015, 2147483648
      %v3047 = vsel %vm3045, %v3046, %v3044
      %v3048 = vrsqrt.pop %v2017
      %v3049 = vmul.f32 %v2017, %v3048
      %vm3050 = vcmp.eq.f32.partialorder %v2017, inf
      %v3051 = vsel %vm3050, %v2017, %v3049
      %vm3052 = vcmp.eq.f32.partialorder %v2017, 0.0
      %v3053 = vand.u32 %v2017, 2147483648
      %v3054 = vsel %vm3052, %v3053, %v3051
      %v3055 = vrsqrt.pop %v2019
      %v3056 = vmul.f32 %v2019, %v3055
      %vm3057 = vcmp.eq.f32.partialorder %v2019, inf
      %v3058 = vsel %vm3057, %v2019, %v3056
      %vm3059 = vcmp.eq.f32.partialorder %v2019, 0.0
      %v3060 = vand.u32 %v2019, 2147483648
      %v3061 = vsel %vm3059, %v3060, %v3058
      %v3062 = vrsqrt.pop %v2021
      %v3063 = vmul.f32 %v2021, %v3062
      %vm3064 = vcmp.eq.f32.partialorder %v2021, inf
      %v3065 = vsel %vm3064, %v2021, %v3063
      %vm3066 = vcmp.eq.f32.partialorder %v2021, 0.0
      %v3067 = vand.u32 %v2021, 2147483648
      %v3068 = vsel %vm3066, %v3067, %v3065
      %v3069 = vrsqrt.pop %v2023
      %v3070 = vmul.f32 %v2023, %v3069
      %vm3071 = vcmp.eq.f32.partialorder %v2023, inf
      %v3072 = vsel %vm3071, %v2023, %v3070
      %vm3073 = vcmp.eq.f32.partialorder %v2023, 0.0
      %v3074 = vand.u32 %v2023, 2147483648
      %v3075 = vsel %vm3073, %v3074, %v3072
      %v3076 = vrsqrt.pop %v2025
      %v3077 = vmul.f32 %v2025, %v3076
      %vm3078 = vcmp.eq.f32.partialorder %v2025, inf
      %v3079 = vsel %vm3078, %v2025, %v3077
      %vm3080 = vcmp.eq.f32.partialorder %v2025, 0.0
      %v3081 = vand.u32 %v2025, 2147483648
      %v3082 = vsel %vm3080, %v3081, %v3079
      %v3083 = vrsqrt.pop %v2027
      %v3084 = vmul.f32 %v2027, %v3083
      %vm3085 = vcmp.eq.f32.partialorder %v2027, inf
      %v3086 = vsel %vm3085, %v2027, %v3084
      %vm3087 = vcmp.eq.f32.partialorder %v2027, 0.0
      %v3088 = vand.u32 %v2027, 2147483648
      %v3089 = vsel %vm3087, %v3088, %v3086
      %v3090 = vrsqrt.pop %v2029
      %v3091 = vmul.f32 %v2029, %v3090
      %vm3092 = vcmp.eq.f32.partialorder %v2029, inf
      %v3093 = vsel %vm3092, %v2029, %v3091
      %vm3094 = vcmp.eq.f32.partialorder %v2029, 0.0
      %v3095 = vand.u32 %v2029, 2147483648
      %v3096 = vsel %vm3094, %v3095, %v3093
      %v3097 = vrsqrt.pop %v2031
      %v3098 = vmul.f32 %v2031, %v3097
      %vm3099 = vcmp.eq.f32.partialorder %v2031, inf
      %v3100 = vsel %vm3099, %v2031, %v3098
      %vm3101 = vcmp.eq.f32.partialorder %v2031, 0.0
      %v3102 = vand.u32 %v2031, 2147483648
      %v3103 = vsel %vm3101, %v3102, %v3100
      %v3104 = vrsqrt.pop %v2033
      %v3105 = vmul.f32 %v2033, %v3104
      %vm3106 = vcmp.eq.f32.partialorder %v2033, inf
      %v3107 = vsel %vm3106, %v2033, %v3105
      %vm3108 = vcmp.eq.f32.partialorder %v2033, 0.0
      %v3109 = vand.u32 %v2033, 2147483648
      %v3110 = vsel %vm3108, %v3109, %v3107
      %v3111 = vrsqrt.pop %v2035
      %v3112 = vmul.f32 %v2035, %v3111
      %vm3113 = vcmp.eq.f32.partialorder %v2035, inf
      %v3114 = vsel %vm3113, %v2035, %v3112
      %vm3115 = vcmp.eq.f32.partialorder %v2035, 0.0
      %v3116 = vand.u32 %v2035, 2147483648
      %v3117 = vsel %vm3115, %v3116, %v3114
      %v3118 = vrsqrt.pop %v2037
      %v3119 = vmul.f32 %v2037, %v3118
      %vm3120 = vcmp.eq.f32.partialorder %v2037, inf
      %v3121 = vsel %vm3120, %v2037, %v3119
      %vm3122 = vcmp.eq.f32.partialorder %v2037, 0.0
      %v3123 = vand.u32 %v2037, 2147483648
      %v3124 = vsel %vm3122, %v3123, %v3121
      %v3125 = vrsqrt.pop %v2039
      %v3126 = vmul.f32 %v2039, %v3125
      %vm3127 = vcmp.eq.f32.partialorder %v2039, inf
      %v3128 = vsel %vm3127, %v2039, %v3126
      %vm3129 = vcmp.eq.f32.partialorder %v2039, 0.0
      %v3130 = vand.u32 %v2039, 2147483648
      %v3131 = vsel %vm3129, %v3130, %v3128
      %v3132 = vrsqrt.pop %v2041
      %v3133 = vmul.f32 %v2041, %v3132
      %vm3134 = vcmp.eq.f32.partialorder %v2041, inf
      %v3135 = vsel %vm3134, %v2041, %v3133
      %vm3136 = vcmp.eq.f32.partialorder %v2041, 0.0
      %v3137 = vand.u32 %v2041, 2147483648
      %v3138 = vsel %vm3136, %v3137, %v3135
      %v3139 = vrsqrt.pop %v2043
      %v3140 = vmul.f32 %v2043, %v3139
      %vm3141 = vcmp.eq.f32.partialorder %v2043, inf
      %v3142 = vsel %vm3141, %v2043, %v3140
      %vm3143 = vcmp.eq.f32.partialorder %v2043, 0.0
      %v3144 = vand.u32 %v2043, 2147483648
      %v3145 = vsel %vm3143, %v3144, %v3142
      %v3146 = vrsqrt.pop %v2045
      %v3147 = vmul.f32 %v2045, %v3146
      %vm3148 = vcmp.eq.f32.partialorder %v2045, inf
      %v3149 = vsel %vm3148, %v2045, %v3147
      %vm3150 = vcmp.eq.f32.partialorder %v2045, 0.0
      %v3151 = vand.u32 %v2045, 2147483648
      %v3152 = vsel %vm3150, %v3151, %v3149
      %v3153 = vrsqrt.pop %v2047
      %v3154 = vmul.f32 %v2047, %v3153
      %vm3155 = vcmp.eq.f32.partialorder %v2047, inf
      %v3156 = vsel %vm3155, %v2047, %v3154
      %vm3157 = vcmp.eq.f32.partialorder %v2047, 0.0
      %v3158 = vand.u32 %v2047, 2147483648
      %v3159 = vsel %vm3157, %v3158, %v3156
      %v3160 = vrsqrt.pop %v2049
      %v3161 = vmul.f32 %v2049, %v3160
      %vm3162 = vcmp.eq.f32.partialorder %v2049, inf
      %v3163 = vsel %vm3162, %v2049, %v3161
      %vm3164 = vcmp.eq.f32.partialorder %v2049, 0.0
      %v3165 = vand.u32 %v2049, 2147483648
      %v3166 = vsel %vm3164, %v3165, %v3163
      %v3167 = vrsqrt.pop %v2051
      %v3168 = vmul.f32 %v2051, %v3167
      %vm3169 = vcmp.eq.f32.partialorder %v2051, inf
      %v3170 = vsel %vm3169, %v2051, %v3168
      %vm3171 = vcmp.eq.f32.partialorder %v2051, 0.0
      %v3172 = vand.u32 %v2051, 2147483648
      %v3173 = vsel %vm3171, %v3172, %v3170
      %v3174 = vrsqrt.pop %v2053
      %v3175 = vmul.f32 %v2053, %v3174
      %vm3176 = vcmp.eq.f32.partialorder %v2053, inf
      %v3177 = vsel %vm3176, %v2053, %v3175
      %vm3178 = vcmp.eq.f32.partialorder %v2053, 0.0
      %v3179 = vand.u32 %v2053, 2147483648
      %v3180 = vsel %vm3178, %v3179, %v3177
      %v3181 = vrsqrt.pop %v2055
      %v3182 = vmul.f32 %v2055, %v3181
      %vm3183 = vcmp.eq.f32.partialorder %v2055, inf
      %v3184 = vsel %vm3183, %v2055, %v3182
      %vm3185 = vcmp.eq.f32.partialorder %v2055, 0.0
      %v3186 = vand.u32 %v2055, 2147483648
      %v3187 = vsel %vm3185, %v3186, %v3184
      %v3188 = vrsqrt.pop %v2057
      %v3189 = vmul.f32 %v2057, %v3188
      %vm3190 = vcmp.eq.f32.partialorder %v2057, inf
      %v3191 = vsel %vm3190, %v2057, %v3189
      %vm3192 = vcmp.eq.f32.partialorder %v2057, 0.0
      %v3193 = vand.u32 %v2057, 2147483648
      %v3194 = vsel %vm3192, %v3193, %v3191
      %v3195 = vrsqrt.pop %v2059
      %v3196 = vmul.f32 %v2059, %v3195
      %vm3197 = vcmp.eq.f32.partialorder %v2059, inf
      %v3198 = vsel %vm3197, %v2059, %v3196
      %vm3199 = vcmp.eq.f32.partialorder %v2059, 0.0
      %v3200 = vand.u32 %v2059, 2147483648
      %v3201 = vsel %vm3199, %v3200, %v3198
      %v3202 = vrsqrt.pop %v2061
      %v3203 = vmul.f32 %v2061, %v3202
      %vm3204 = vcmp.eq.f32.partialorder %v2061, inf
      %v3205 = vsel %vm3204, %v2061, %v3203
      %vm3206 = vcmp.eq.f32.partialorder %v2061, 0.0
      %v3207 = vand.u32 %v2061, 2147483648
      %v3208 = vsel %vm3206, %v3207, %v3205
      %v3209 = vrsqrt.pop %v2063
      %v3210 = vmul.f32 %v2063, %v3209
      %vm3211 = vcmp.eq.f32.partialorder %v2063, inf
      %v3212 = vsel %vm3211, %v2063, %v3210
      %vm3213 = vcmp.eq.f32.partialorder %v2063, 0.0
      %v3214 = vand.u32 %v2063, 2147483648
      %v3215 = vsel %vm3213, %v3214, %v3212
      %v3216 = vrsqrt.pop %v2065
      %v3217 = vmul.f32 %v2065, %v3216
      %vm3218 = vcmp.eq.f32.partialorder %v2065, inf
      %v3219 = vsel %vm3218, %v2065, %v3217
      %vm3220 = vcmp.eq.f32.partialorder %v2065, 0.0
      %v3221 = vand.u32 %v2065, 2147483648
      %v3222 = vsel %vm3220, %v3221, %v3219
      %v3223 = vrsqrt.pop %v2067
      %v3224 = vmul.f32 %v2067, %v3223
      %vm3225 = vcmp.eq.f32.partialorder %v2067, inf
      %v3226 = vsel %vm3225, %v2067, %v3224
      %vm3227 = vcmp.eq.f32.partialorder %v2067, 0.0
      %v3228 = vand.u32 %v2067, 2147483648
      %v3229 = vsel %vm3227, %v3228, %v3226
      %v3230 = vrsqrt.pop %v2069
      %v3231 = vmul.f32 %v2069, %v3230
      %vm3232 = vcmp.eq.f32.partialorder %v2069, inf
      %v3233 = vsel %vm3232, %v2069, %v3231
      %vm3234 = vcmp.eq.f32.partialorder %v2069, 0.0
      %v3235 = vand.u32 %v2069, 2147483648
      %v3236 = vsel %vm3234, %v3235, %v3233
      %v3237 = vrsqrt.pop %v2071
      %v3238 = vmul.f32 %v2071, %v3237
      %vm3239 = vcmp.eq.f32.partialorder %v2071, inf
      %v3240 = vsel %vm3239, %v2071, %v3238
      %vm3241 = vcmp.eq.f32.partialorder %v2071, 0.0
      %v3242 = vand.u32 %v2071, 2147483648
      %v3243 = vsel %vm3241, %v3242, %v3240
      %v3244 = vrsqrt.pop %v2073
      %v3245 = vmul.f32 %v2073, %v3244
      %vm3246 = vcmp.eq.f32.partialorder %v2073, inf
      %v3247 = vsel %vm3246, %v2073, %v3245
      %vm3248 = vcmp.eq.f32.partialorder %v2073, 0.0
      %v3249 = vand.u32 %v2073, 2147483648
      %v3250 = vsel %vm3248, %v3249, %v3247
      %v3251 = vrsqrt.pop %v2075
      %v3252 = vmul.f32 %v2075, %v3251
      %vm3253 = vcmp.eq.f32.partialorder %v2075, inf
      %v3254 = vsel %vm3253, %v2075, %v3252
      %vm3255 = vcmp.eq.f32.partialorder %v2075, 0.0
      %v3256 = vand.u32 %v2075, 2147483648
      %v3257 = vsel %vm3255, %v3256, %v3254
      %v3258 = vrsqrt.pop %v2077
      %v3259 = vmul.f32 %v2077, %v3258
      %vm3260 = vcmp.eq.f32.partialorder %v2077, inf
      %v3261 = vsel %vm3260, %v2077, %v3259
      %vm3262 = vcmp.eq.f32.partialorder %v2077, 0.0
      %v3263 = vand.u32 %v2077, 2147483648
      %v3264 = vsel %vm3262, %v3263, %v3261
      %v3265 = vrsqrt.pop %v2079
      %v3266 = vmul.f32 %v2079, %v3265
      %vm3267 = vcmp.eq.f32.partialorder %v2079, inf
      %v3268 = vsel %vm3267, %v2079, %v3266
      %vm3269 = vcmp.eq.f32.partialorder %v2079, 0.0
      %v3270 = vand.u32 %v2079, 2147483648
      %v3271 = vsel %vm3269, %v3270, %v3268
      %v3272 = vrsqrt.pop %v2081
      %v3273 = vmul.f32 %v2081, %v3272
      %vm3274 = vcmp.eq.f32.partialorder %v2081, inf
      %v3275 = vsel %vm3274, %v2081, %v3273
      %vm3276 = vcmp.eq.f32.partialorder %v2081, 0.0
      %v3277 = vand.u32 %v2081, 2147483648
      %v3278 = vsel %vm3276, %v3277, %v3275
      %v3279 = vrsqrt.pop %v2083
      %v3280 = vmul.f32 %v2083, %v3279
      %vm3281 = vcmp.eq.f32.partialorder %v2083, inf
      %v3282 = vsel %vm3281, %v2083, %v3280
      %vm3283 = vcmp.eq.f32.partialorder %v2083, 0.0
      %v3284 = vand.u32 %v2083, 2147483648
      %v3285 = vsel %vm3283, %v3284, %v3282
      %v3286 = vrsqrt.pop %v2085
      %v3287 = vmul.f32 %v2085, %v3286
      %vm3288 = vcmp.eq.f32.partialorder %v2085, inf
      %v3289 = vsel %vm3288, %v2085, %v3287
      %vm3290 = vcmp.eq.f32.partialorder %v2085, 0.0
      %v3291 = vand.u32 %v2085, 2147483648
      %v3292 = vsel %vm3290, %v3291, %v3289
      %v3293 = vrsqrt.pop %v2087
      %v3294 = vmul.f32 %v2087, %v3293
      %vm3295 = vcmp.eq.f32.partialorder %v2087, inf
      %v3296 = vsel %vm3295, %v2087, %v3294
      %vm3297 = vcmp.eq.f32.partialorder %v2087, 0.0
      %v3298 = vand.u32 %v2087, 2147483648
      %v3299 = vsel %vm3297, %v3298, %v3296
      %v3300 = vrsqrt.pop %v2089
      %v3301 = vmul.f32 %v2089, %v3300
      %vm3302 = vcmp.eq.f32.partialorder %v2089, inf
      %v3303 = vsel %vm3302, %v2089, %v3301
      %vm3304 = vcmp.eq.f32.partialorder %v2089, 0.0
      %v3305 = vand.u32 %v2089, 2147483648
      %v3306 = vsel %vm3304, %v3305, %v3303
      %v3307 = vrsqrt.pop %v2091
      %v3308 = vmul.f32 %v2091, %v3307
      %vm3309 = vcmp.eq.f32.partialorder %v2091, inf
      %v3310 = vsel %vm3309, %v2091, %v3308
      %vm3311 = vcmp.eq.f32.partialorder %v2091, 0.0
      %v3312 = vand.u32 %v2091, 2147483648
      %v3313 = vsel %vm3311, %v3312, %v3310
      %v3314 = vrsqrt.pop %v2093
      %v3315 = vmul.f32 %v2093, %v3314
      %vm3316 = vcmp.eq.f32.partialorder %v2093, inf
      %v3317 = vsel %vm3316, %v2093, %v3315
      %vm3318 = vcmp.eq.f32.partialorder %v2093, 0.0
      %v3319 = vand.u32 %v2093, 2147483648
      %v3320 = vsel %vm3318, %v3319, %v3317
      %v3321 = vrsqrt.pop %v2095
      %v3322 = vmul.f32 %v2095, %v3321
      %vm3323 = vcmp.eq.f32.partialorder %v2095, inf
      %v3324 = vsel %vm3323, %v2095, %v3322
      %vm3325 = vcmp.eq.f32.partialorder %v2095, 0.0
      %v3326 = vand.u32 %v2095, 2147483648
      %v3327 = vsel %vm3325, %v3326, %v3324
      %v3328 = vrsqrt.pop %v2097
      %v3329 = vmul.f32 %v2097, %v3328
      %vm3330 = vcmp.eq.f32.partialorder %v2097, inf
      %v3331 = vsel %vm3330, %v2097, %v3329
      %vm3332 = vcmp.eq.f32.partialorder %v2097, 0.0
      %v3333 = vand.u32 %v2097, 2147483648
      %v3334 = vsel %vm3332, %v3333, %v3331
      %v3335 = vrsqrt.pop %v2099
      %v3336 = vmul.f32 %v2099, %v3335
      %vm3337 = vcmp.eq.f32.partialorder %v2099, inf
      %v3338 = vsel %vm3337, %v2099, %v3336
      %vm3339 = vcmp.eq.f32.partialorder %v2099, 0.0
      %v3340 = vand.u32 %v2099, 2147483648
      %v3341 = vsel %vm3339, %v3340, %v3338
      %v3342 = vrsqrt.pop %v2101
      %v3343 = vmul.f32 %v2101, %v3342
      %vm3344 = vcmp.eq.f32.partialorder %v2101, inf
      %v3345 = vsel %vm3344, %v2101, %v3343
      %vm3346 = vcmp.eq.f32.partialorder %v2101, 0.0
      %v3347 = vand.u32 %v2101, 2147483648
      %v3348 = vsel %vm3346, %v3347, %v3345
      %v3349 = vrsqrt.pop %v2103
      %v3350 = vmul.f32 %v2103, %v3349
      %vm3351 = vcmp.eq.f32.partialorder %v2103, inf
      %v3352 = vsel %vm3351, %v2103, %v3350
      %vm3353 = vcmp.eq.f32.partialorder %v2103, 0.0
      %v3354 = vand.u32 %v2103, 2147483648
      %v3355 = vsel %vm3353, %v3354, %v3352
      %v3356 = vrsqrt.pop %v2105
      %v3357 = vmul.f32 %v2105, %v3356
      %vm3358 = vcmp.eq.f32.partialorder %v2105, inf
      %v3359 = vsel %vm3358, %v2105, %v3357
      %vm3360 = vcmp.eq.f32.partialorder %v2105, 0.0
      %v3361 = vand.u32 %v2105, 2147483648
      %v3362 = vsel %vm3360, %v3361, %v3359
      %v3363 = vrsqrt.pop %v2107
      %v3364 = vmul.f32 %v2107, %v3363
      %vm3365 = vcmp.eq.f32.partialorder %v2107, inf
      %v3366 = vsel %vm3365, %v2107, %v3364
      %vm3367 = vcmp.eq.f32.partialorder %v2107, 0.0
      %v3368 = vand.u32 %v2107, 2147483648
      %v3369 = vsel %vm3367, %v3368, %v3366
      %v3370 = vrsqrt.pop %v2109
      %v3371 = vmul.f32 %v2109, %v3370
      %vm3372 = vcmp.eq.f32.partialorder %v2109, inf
      %v3373 = vsel %vm3372, %v2109, %v3371
      %vm3374 = vcmp.eq.f32.partialorder %v2109, 0.0
      %v3375 = vand.u32 %v2109, 2147483648
      %v3376 = vsel %vm3374, %v3375, %v3373
      %v3377 = vrsqrt.pop %v2111
      %v3378 = vmul.f32 %v2111, %v3377
      %vm3379 = vcmp.eq.f32.partialorder %v2111, inf
      %v3380 = vsel %vm3379, %v2111, %v3378
      %vm3381 = vcmp.eq.f32.partialorder %v2111, 0.0
      %v3382 = vand.u32 %v2111, 2147483648
      %v3383 = vsel %vm3381, %v3382, %v3380
      %v3384 = vrsqrt.pop %v2113
      %v3385 = vmul.f32 %v2113, %v3384
      %vm3386 = vcmp.eq.f32.partialorder %v2113, inf
      %v3387 = vsel %vm3386, %v2113, %v3385
      %vm3388 = vcmp.eq.f32.partialorder %v2113, 0.0
      %v3389 = vand.u32 %v2113, 2147483648
      %v3390 = vsel %vm3388, %v3389, %v3387
      %v3391 = vrsqrt.pop %v2115
      %v3392 = vmul.f32 %v2115, %v3391
      %vm3393 = vcmp.eq.f32.partialorder %v2115, inf
      %v3394 = vsel %vm3393, %v2115, %v3392
      %vm3395 = vcmp.eq.f32.partialorder %v2115, 0.0
      %v3396 = vand.u32 %v2115, 2147483648
      %v3397 = vsel %vm3395, %v3396, %v3394
      %v3398 = vrsqrt.pop %v2117
      %v3399 = vmul.f32 %v2117, %v3398
      %vm3400 = vcmp.eq.f32.partialorder %v2117, inf
      %v3401 = vsel %vm3400, %v2117, %v3399
      %vm3402 = vcmp.eq.f32.partialorder %v2117, 0.0
      %v3403 = vand.u32 %v2117, 2147483648
      %v3404 = vsel %vm3402, %v3403, %v3401
      %v3405 = vrsqrt.pop %v2119
      %v3406 = vmul.f32 %v2119, %v3405
      %vm3407 = vcmp.eq.f32.partialorder %v2119, inf
      %v3408 = vsel %vm3407, %v2119, %v3406
      %vm3409 = vcmp.eq.f32.partialorder %v2119, 0.0
      %v3410 = vand.u32 %v2119, 2147483648
      %v3411 = vsel %vm3409, %v3410, %v3408
      %v3412 = vrsqrt.pop %v2121
      %v3413 = vmul.f32 %v2121, %v3412
      %vm3414 = vcmp.eq.f32.partialorder %v2121, inf
      %v3415 = vsel %vm3414, %v2121, %v3413
      %vm3416 = vcmp.eq.f32.partialorder %v2121, 0.0
      %v3417 = vand.u32 %v2121, 2147483648
      %v3418 = vsel %vm3416, %v3417, %v3415
      %v3419 = vrsqrt.pop %v2123
      %v3420 = vmul.f32 %v2123, %v3419
      %vm3421 = vcmp.eq.f32.partialorder %v2123, inf
      %v3422 = vsel %vm3421, %v2123, %v3420
      %vm3423 = vcmp.eq.f32.partialorder %v2123, 0.0
      %v3424 = vand.u32 %v2123, 2147483648
      %v3425 = vsel %vm3423, %v3424, %v3422
      %v3426 = vrsqrt.pop %v2125
      %v3427 = vmul.f32 %v2125, %v3426
      %vm3428 = vcmp.eq.f32.partialorder %v2125, inf
      %v3429 = vsel %vm3428, %v2125, %v3427
      %vm3430 = vcmp.eq.f32.partialorder %v2125, 0.0
      %v3431 = vand.u32 %v2125, 2147483648
      %v3432 = vsel %vm3430, %v3431, %v3429
      %v3433 = vrsqrt.pop %v2127
      %v3434 = vmul.f32 %v2127, %v3433
      %vm3435 = vcmp.eq.f32.partialorder %v2127, inf
      %v3436 = vsel %vm3435, %v2127, %v3434
      %vm3437 = vcmp.eq.f32.partialorder %v2127, 0.0
      %v3438 = vand.u32 %v2127, 2147483648
      %v3439 = vsel %vm3437, %v3438, %v3436
      %v3440 = vrsqrt.pop %v2129
      %v3441 = vmul.f32 %v2129, %v3440
      %vm3442 = vcmp.eq.f32.partialorder %v2129, inf
      %v3443 = vsel %vm3442, %v2129, %v3441
      %vm3444 = vcmp.eq.f32.partialorder %v2129, 0.0
      %v3445 = vand.u32 %v2129, 2147483648
      %v3446 = vsel %vm3444, %v3445, %v3443
      %v3447 = vrsqrt.pop %v2131
      %v3448 = vmul.f32 %v2131, %v3447
      %vm3449 = vcmp.eq.f32.partialorder %v2131, inf
      %v3450 = vsel %vm3449, %v2131, %v3448
      %vm3451 = vcmp.eq.f32.partialorder %v2131, 0.0
      %v3452 = vand.u32 %v2131, 2147483648
      %v3453 = vsel %vm3451, %v3452, %v3450
      %v3454 = vrsqrt.pop %v2133
      %v3455 = vmul.f32 %v2133, %v3454
      %vm3456 = vcmp.eq.f32.partialorder %v2133, inf
      %v3457 = vsel %vm3456, %v2133, %v3455
      %vm3458 = vcmp.eq.f32.partialorder %v2133, 0.0
      %v3459 = vand.u32 %v2133, 2147483648
      %v3460 = vsel %vm3458, %v3459, %v3457
      %v3461 = vrsqrt.pop %v2135
      %v3462 = vmul.f32 %v2135, %v3461
      %vm3463 = vcmp.eq.f32.partialorder %v2135, inf
      %v3464 = vsel %vm3463, %v2135, %v3462
      %vm3465 = vcmp.eq.f32.partialorder %v2135, 0.0
      %v3466 = vand.u32 %v2135, 2147483648
      %v3467 = vsel %vm3465, %v3466, %v3464
      %v3468 = vrsqrt.pop %v2137
      %v3469 = vmul.f32 %v2137, %v3468
      %vm3470 = vcmp.eq.f32.partialorder %v2137, inf
      %v3471 = vsel %vm3470, %v2137, %v3469
      %vm3472 = vcmp.eq.f32.partialorder %v2137, 0.0
      %v3473 = vand.u32 %v2137, 2147483648
      %v3474 = vsel %vm3472, %v3473, %v3471
      %v3475 = vrsqrt.pop %v2139
      %v3476 = vmul.f32 %v2139, %v3475
      %vm3477 = vcmp.eq.f32.partialorder %v2139, inf
      %v3478 = vsel %vm3477, %v2139, %v3476
      %vm3479 = vcmp.eq.f32.partialorder %v2139, 0.0
      %v3480 = vand.u32 %v2139, 2147483648
      %v3481 = vsel %vm3479, %v3480, %v3478
      %v3482 = vrsqrt.pop %v2141
      %v3483 = vmul.f32 %v2141, %v3482
      %vm3484 = vcmp.eq.f32.partialorder %v2141, inf
      %v3485 = vsel %vm3484, %v2141, %v3483
      %vm3486 = vcmp.eq.f32.partialorder %v2141, 0.0
      %v3487 = vand.u32 %v2141, 2147483648
      %v3488 = vsel %vm3486, %v3487, %v3485
      %v3489 = vrsqrt.pop %v2143
      %v3490 = vmul.f32 %v2143, %v3489
      %vm3491 = vcmp.eq.f32.partialorder %v2143, inf
      %v3492 = vsel %vm3491, %v2143, %v3490
      %vm3493 = vcmp.eq.f32.partialorder %v2143, 0.0
      %v3494 = vand.u32 %v2143, 2147483648
      %v3495 = vsel %vm3493, %v3494, %v3492
      %v3496 = vrsqrt.pop %v2145
      %v3497 = vmul.f32 %v2145, %v3496
      %vm3498 = vcmp.eq.f32.partialorder %v2145, inf
      %v3499 = vsel %vm3498, %v2145, %v3497
      %vm3500 = vcmp.eq.f32.partialorder %v2145, 0.0
      %v3501 = vand.u32 %v2145, 2147483648
      %v3502 = vsel %vm3500, %v3501, %v3499
      %v3503 = vrsqrt.pop %v2147
      %v3504 = vmul.f32 %v2147, %v3503
      %vm3505 = vcmp.eq.f32.partialorder %v2147, inf
      %v3506 = vsel %vm3505, %v2147, %v3504
      %vm3507 = vcmp.eq.f32.partialorder %v2147, 0.0
      %v3508 = vand.u32 %v2147, 2147483648
      %v3509 = vsel %vm3507, %v3508, %v3506
      %v3510 = vrsqrt.pop %v2149
      %v3511 = vmul.f32 %v2149, %v3510
      %vm3512 = vcmp.eq.f32.partialorder %v2149, inf
      %v3513 = vsel %vm3512, %v2149, %v3511
      %vm3514 = vcmp.eq.f32.partialorder %v2149, 0.0
      %v3515 = vand.u32 %v2149, 2147483648
      %v3516 = vsel %vm3514, %v3515, %v3513
      %v3517 = vrsqrt.pop %v2151
      %v3518 = vmul.f32 %v2151, %v3517
      %vm3519 = vcmp.eq.f32.partialorder %v2151, inf
      %v3520 = vsel %vm3519, %v2151, %v3518
      %vm3521 = vcmp.eq.f32.partialorder %v2151, 0.0
      %v3522 = vand.u32 %v2151, 2147483648
      %v3523 = vsel %vm3521, %v3522, %v3520
      %v3524 = vrsqrt.pop %v2153
      %v3525 = vmul.f32 %v2153, %v3524
      %vm3526 = vcmp.eq.f32.partialorder %v2153, inf
      %v3527 = vsel %vm3526, %v2153, %v3525
      %vm3528 = vcmp.eq.f32.partialorder %v2153, 0.0
      %v3529 = vand.u32 %v2153, 2147483648
      %v3530 = vsel %vm3528, %v3529, %v3527
      %v3531 = vrsqrt.pop %v2155
      %v3532 = vmul.f32 %v2155, %v3531
      %vm3533 = vcmp.eq.f32.partialorder %v2155, inf
      %v3534 = vsel %vm3533, %v2155, %v3532
      %vm3535 = vcmp.eq.f32.partialorder %v2155, 0.0
      %v3536 = vand.u32 %v2155, 2147483648
      %v3537 = vsel %vm3535, %v3536, %v3534
      %v3538 = vrsqrt.pop %v2157
      %v3539 = vmul.f32 %v2157, %v3538
      %vm3540 = vcmp.eq.f32.partialorder %v2157, inf
      %v3541 = vsel %vm3540, %v2157, %v3539
      %vm3542 = vcmp.eq.f32.partialorder %v2157, 0.0
      %v3543 = vand.u32 %v2157, 2147483648
      %v3544 = vsel %vm3542, %v3543, %v3541
      %v3545 = vrsqrt.pop %v2159
      %v3546 = vmul.f32 %v2159, %v3545
      %vm3547 = vcmp.eq.f32.partialorder %v2159, inf
      %v3548 = vsel %vm3547, %v2159, %v3546
      %vm3549 = vcmp.eq.f32.partialorder %v2159, 0.0
      %v3550 = vand.u32 %v2159, 2147483648
      %v3551 = vsel %vm3549, %v3550, %v3548
      %v3552 = vrsqrt.pop %v2161
      %v3553 = vmul.f32 %v2161, %v3552
      %vm3554 = vcmp.eq.f32.partialorder %v2161, inf
      %v3555 = vsel %vm3554, %v2161, %v3553
      %vm3556 = vcmp.eq.f32.partialorder %v2161, 0.0
      %v3557 = vand.u32 %v2161, 2147483648
      %v3558 = vsel %vm3556, %v3557, %v3555
      %v3559 = vrsqrt.pop %v2163
      %v3560 = vmul.f32 %v2163, %v3559
      %vm3561 = vcmp.eq.f32.partialorder %v2163, inf
      %v3562 = vsel %vm3561, %v2163, %v3560
      %vm3563 = vcmp.eq.f32.partialorder %v2163, 0.0
      %v3564 = vand.u32 %v2163, 2147483648
      %v3565 = vsel %vm3563, %v3564, %v3562
      %v3566 = vrsqrt.pop %v2165
      %v3567 = vmul.f32 %v2165, %v3566
      %vm3568 = vcmp.eq.f32.partialorder %v2165, inf
      %v3569 = vsel %vm3568, %v2165, %v3567
      %vm3570 = vcmp.eq.f32.partialorder %v2165, 0.0
      %v3571 = vand.u32 %v2165, 2147483648
      %v3572 = vsel %vm3570, %v3571, %v3569
      %v3573 = vrsqrt.pop %v2167
      %v3574 = vmul.f32 %v2167, %v3573
      %vm3575 = vcmp.eq.f32.partialorder %v2167, inf
      %v3576 = vsel %vm3575, %v2167, %v3574
      %vm3577 = vcmp.eq.f32.partialorder %v2167, 0.0
      %v3578 = vand.u32 %v2167, 2147483648
      %v3579 = vsel %vm3577, %v3578, %v3576
      %v3580 = vrsqrt.pop %v2169
      %v3581 = vmul.f32 %v2169, %v3580
      %vm3582 = vcmp.eq.f32.partialorder %v2169, inf
      %v3583 = vsel %vm3582, %v2169, %v3581
      %vm3584 = vcmp.eq.f32.partialorder %v2169, 0.0
      %v3585 = vand.u32 %v2169, 2147483648
      %v3586 = vsel %vm3584, %v3585, %v3583
      %v3587 = vrsqrt.pop %v2171
      %v3588 = vmul.f32 %v2171, %v3587
      %vm3589 = vcmp.eq.f32.partialorder %v2171, inf
      %v3590 = vsel %vm3589, %v2171, %v3588
      %vm3591 = vcmp.eq.f32.partialorder %v2171, 0.0
      %v3592 = vand.u32 %v2171, 2147483648
      %v3593 = vsel %vm3591, %v3592, %v3590
      %v3594 = vrsqrt.pop %v2173
      %v3595 = vmul.f32 %v2173, %v3594
      %vm3596 = vcmp.eq.f32.partialorder %v2173, inf
      %v3597 = vsel %vm3596, %v2173, %v3595
      %vm3598 = vcmp.eq.f32.partialorder %v2173, 0.0
      %v3599 = vand.u32 %v2173, 2147483648
      %v3600 = vsel %vm3598, %v3599, %v3597
      %v3601 = vrsqrt.pop %v2175
      %v3602 = vmul.f32 %v2175, %v3601
      %vm3603 = vcmp.eq.f32.partialorder %v2175, inf
      %v3604 = vsel %vm3603, %v2175, %v3602
      %vm3605 = vcmp.eq.f32.partialorder %v2175, 0.0
      %v3606 = vand.u32 %v2175, 2147483648
      %v3607 = vsel %vm3605, %v3606, %v3604
      %v3608 = vrsqrt.pop %v2177
      %v3609 = vmul.f32 %v2177, %v3608
      %vm3610 = vcmp.eq.f32.partialorder %v2177, inf
      %v3611 = vsel %vm3610, %v2177, %v3609
      %vm3612 = vcmp.eq.f32.partialorder %v2177, 0.0
      %v3613 = vand.u32 %v2177, 2147483648
      %v3614 = vsel %vm3612, %v3613, %v3611
      %v3615 = vrsqrt.pop %v2179
      %v3616 = vmul.f32 %v2179, %v3615
      %vm3617 = vcmp.eq.f32.partialorder %v2179, inf
      %v3618 = vsel %vm3617, %v2179, %v3616
      %vm3619 = vcmp.eq.f32.partialorder %v2179, 0.0
      %v3620 = vand.u32 %v2179, 2147483648
      %v3621 = vsel %vm3619, %v3620, %v3618
      %v3622 = vrsqrt.pop %v2181
      %v3623 = vmul.f32 %v2181, %v3622
      %vm3624 = vcmp.eq.f32.partialorder %v2181, inf
      %v3625 = vsel %vm3624, %v2181, %v3623
      %vm3626 = vcmp.eq.f32.partialorder %v2181, 0.0
      %v3627 = vand.u32 %v2181, 2147483648
      %v3628 = vsel %vm3626, %v3627, %v3625
      %v3629 = vrsqrt.pop %v2183
      %v3630 = vmul.f32 %v2183, %v3629
      %vm3631 = vcmp.eq.f32.partialorder %v2183, inf
      %v3632 = vsel %vm3631, %v2183, %v3630
      %vm3633 = vcmp.eq.f32.partialorder %v2183, 0.0
      %v3634 = vand.u32 %v2183, 2147483648
      %v3635 = vsel %vm3633, %v3634, %v3632
      %v3636 = vrsqrt.pop %v2185
      %v3637 = vmul.f32 %v2185, %v3636
      %vm3638 = vcmp.eq.f32.partialorder %v2185, inf
      %v3639 = vsel %vm3638, %v2185, %v3637
      %vm3640 = vcmp.eq.f32.partialorder %v2185, 0.0
      %v3641 = vand.u32 %v2185, 2147483648
      %v3642 = vsel %vm3640, %v3641, %v3639
      %v3643 = vrsqrt.pop %v2187
      %v3644 = vmul.f32 %v2187, %v3643
      %vm3645 = vcmp.eq.f32.partialorder %v2187, inf
      %v3646 = vsel %vm3645, %v2187, %v3644
      %vm3647 = vcmp.eq.f32.partialorder %v2187, 0.0
      %v3648 = vand.u32 %v2187, 2147483648
      %v3649 = vsel %vm3647, %v3648, %v3646
      %v3650 = vrsqrt.pop %v2189
      %v3651 = vmul.f32 %v2189, %v3650
      %vm3652 = vcmp.eq.f32.partialorder %v2189, inf
      %v3653 = vsel %vm3652, %v2189, %v3651
      %vm3654 = vcmp.eq.f32.partialorder %v2189, 0.0
      %v3655 = vand.u32 %v2189, 2147483648
      %v3656 = vsel %vm3654, %v3655, %v3653
      %v3657 = vrsqrt.pop %v2191
      %v3658 = vmul.f32 %v2191, %v3657
      %vm3659 = vcmp.eq.f32.partialorder %v2191, inf
      %v3660 = vsel %vm3659, %v2191, %v3658
      %vm3661 = vcmp.eq.f32.partialorder %v2191, 0.0
      %v3662 = vand.u32 %v2191, 2147483648
      %v3663 = vsel %vm3661, %v3662, %v3660
      %v3664 = vrsqrt.pop %v2193
      %v3665 = vmul.f32 %v2193, %v3664
      %vm3666 = vcmp.eq.f32.partialorder %v2193, inf
      %v3667 = vsel %vm3666, %v2193, %v3665
      %vm3668 = vcmp.eq.f32.partialorder %v2193, 0.0
      %v3669 = vand.u32 %v2193, 2147483648
      %v3670 = vsel %vm3668, %v3669, %v3667
      %v3671 = vrsqrt.pop %v2195
      %v3672 = vmul.f32 %v2195, %v3671
      %vm3673 = vcmp.eq.f32.partialorder %v2195, inf
      %v3674 = vsel %vm3673, %v2195, %v3672
      %vm3675 = vcmp.eq.f32.partialorder %v2195, 0.0
      %v3676 = vand.u32 %v2195, 2147483648
      %v3677 = vsel %vm3675, %v3676, %v3674
      %v3678 = vrsqrt.pop %v2197
      %v3679 = vmul.f32 %v2197, %v3678
      %vm3680 = vcmp.eq.f32.partialorder %v2197, inf
      %v3681 = vsel %vm3680, %v2197, %v3679
      %vm3682 = vcmp.eq.f32.partialorder %v2197, 0.0
      %v3683 = vand.u32 %v2197, 2147483648
      %v3684 = vsel %vm3682, %v3683, %v3681
      %v3685 = vrsqrt.pop %v2199
      %v3686 = vmul.f32 %v2199, %v3685
      %vm3687 = vcmp.eq.f32.partialorder %v2199, inf
      %v3688 = vsel %vm3687, %v2199, %v3686
      %vm3689 = vcmp.eq.f32.partialorder %v2199, 0.0
      %v3690 = vand.u32 %v2199, 2147483648
      %v3691 = vsel %vm3689, %v3690, %v3688
      %v3692 = vrsqrt.pop %v2201
      %v3693 = vmul.f32 %v2201, %v3692
      %vm3694 = vcmp.eq.f32.partialorder %v2201, inf
      %v3695 = vsel %vm3694, %v2201, %v3693
      %vm3696 = vcmp.eq.f32.partialorder %v2201, 0.0
      %v3697 = vand.u32 %v2201, 2147483648
      %v3698 = vsel %vm3696, %v3697, %v3695
      %v3699 = vrsqrt.pop %v2203
      %v3700 = vmul.f32 %v2203, %v3699
      %vm3701 = vcmp.eq.f32.partialorder %v2203, inf
      %v3702 = vsel %vm3701, %v2203, %v3700
      %vm3703 = vcmp.eq.f32.partialorder %v2203, 0.0
      %v3704 = vand.u32 %v2203, 2147483648
      %v3705 = vsel %vm3703, %v3704, %v3702
      %v3706 = vrsqrt.pop %v2205
      %v3707 = vmul.f32 %v2205, %v3706
      %vm3708 = vcmp.eq.f32.partialorder %v2205, inf
      %v3709 = vsel %vm3708, %v2205, %v3707
      %vm3710 = vcmp.eq.f32.partialorder %v2205, 0.0
      %v3711 = vand.u32 %v2205, 2147483648
      %v3712 = vsel %vm3710, %v3711, %v3709
      %v3713 = vrsqrt.pop %v2207
      %v3714 = vmul.f32 %v2207, %v3713
      %vm3715 = vcmp.eq.f32.partialorder %v2207, inf
      %v3716 = vsel %vm3715, %v2207, %v3714
      %vm3717 = vcmp.eq.f32.partialorder %v2207, 0.0
      %v3718 = vand.u32 %v2207, 2147483648
      %v3719 = vsel %vm3717, %v3718, %v3716
      %v3720 = vrsqrt.pop %v2209
      %v3721 = vmul.f32 %v2209, %v3720
      %vm3722 = vcmp.eq.f32.partialorder %v2209, inf
      %v3723 = vsel %vm3722, %v2209, %v3721
      %vm3724 = vcmp.eq.f32.partialorder %v2209, 0.0
      %v3725 = vand.u32 %v2209, 2147483648
      %v3726 = vsel %vm3724, %v3725, %v3723
      %v3727 = vrsqrt.pop %v2211
      %v3728 = vmul.f32 %v2211, %v3727
      %vm3729 = vcmp.eq.f32.partialorder %v2211, inf
      %v3730 = vsel %vm3729, %v2211, %v3728
      %vm3731 = vcmp.eq.f32.partialorder %v2211, 0.0
      %v3732 = vand.u32 %v2211, 2147483648
      %v3733 = vsel %vm3731, %v3732, %v3730
      %v3734 = vrsqrt.pop %v2213
      %v3735 = vmul.f32 %v2213, %v3734
      %vm3736 = vcmp.eq.f32.partialorder %v2213, inf
      %v3737 = vsel %vm3736, %v2213, %v3735
      %vm3738 = vcmp.eq.f32.partialorder %v2213, 0.0
      %v3739 = vand.u32 %v2213, 2147483648
      %v3740 = vsel %vm3738, %v3739, %v3737
      %v3741 = vrsqrt.pop %v2215
      %v3742 = vmul.f32 %v2215, %v3741
      %vm3743 = vcmp.eq.f32.partialorder %v2215, inf
      %v3744 = vsel %vm3743, %v2215, %v3742
      %vm3745 = vcmp.eq.f32.partialorder %v2215, 0.0
      %v3746 = vand.u32 %v2215, 2147483648
      %v3747 = vsel %vm3745, %v3746, %v3744
      %v3748 = vrsqrt.pop %v2217
      %v3749 = vmul.f32 %v2217, %v3748
      %vm3750 = vcmp.eq.f32.partialorder %v2217, inf
      %v3751 = vsel %vm3750, %v2217, %v3749
      %vm3752 = vcmp.eq.f32.partialorder %v2217, 0.0
      %v3753 = vand.u32 %v2217, 2147483648
      %v3754 = vsel %vm3752, %v3753, %v3751
      %v3755 = vrsqrt.pop %v2219
      %v3756 = vmul.f32 %v2219, %v3755
      %vm3757 = vcmp.eq.f32.partialorder %v2219, inf
      %v3758 = vsel %vm3757, %v2219, %v3756
      %vm3759 = vcmp.eq.f32.partialorder %v2219, 0.0
      %v3760 = vand.u32 %v2219, 2147483648
      %v3761 = vsel %vm3759, %v3760, %v3758
      %v3762 = vrsqrt.pop %v2221
      %v3763 = vmul.f32 %v2221, %v3762
      %vm3764 = vcmp.eq.f32.partialorder %v2221, inf
      %v3765 = vsel %vm3764, %v2221, %v3763
      %vm3766 = vcmp.eq.f32.partialorder %v2221, 0.0
      %v3767 = vand.u32 %v2221, 2147483648
      %v3768 = vsel %vm3766, %v3767, %v3765
      %v3769 = vrsqrt.pop %v2223
      %v3770 = vmul.f32 %v2223, %v3769
      %vm3771 = vcmp.eq.f32.partialorder %v2223, inf
      %v3772 = vsel %vm3771, %v2223, %v3770
      %vm3773 = vcmp.eq.f32.partialorder %v2223, 0.0
      %v3774 = vand.u32 %v2223, 2147483648
      %v3775 = vsel %vm3773, %v3774, %v3772
      %v3776 = vrsqrt.pop %v2225
      %v3777 = vmul.f32 %v2225, %v3776
      %vm3778 = vcmp.eq.f32.partialorder %v2225, inf
      %v3779 = vsel %vm3778, %v2225, %v3777
      %vm3780 = vcmp.eq.f32.partialorder %v2225, 0.0
      %v3781 = vand.u32 %v2225, 2147483648
      %v3782 = vsel %vm3780, %v3781, %v3779
      %v3783 = vrsqrt.pop %v2227
      %v3784 = vmul.f32 %v2227, %v3783
      %vm3785 = vcmp.eq.f32.partialorder %v2227, inf
      %v3786 = vsel %vm3785, %v2227, %v3784
      %vm3787 = vcmp.eq.f32.partialorder %v2227, 0.0
      %v3788 = vand.u32 %v2227, 2147483648
      %v3789 = vsel %vm3787, %v3788, %v3786
      %v3790 = vrsqrt.pop %v2229
      %v3791 = vmul.f32 %v2229, %v3790
      %vm3792 = vcmp.eq.f32.partialorder %v2229, inf
      %v3793 = vsel %vm3792, %v2229, %v3791
      %vm3794 = vcmp.eq.f32.partialorder %v2229, 0.0
      %v3795 = vand.u32 %v2229, 2147483648
      %v3796 = vsel %vm3794, %v3795, %v3793
      %v3797 = vrsqrt.pop %v2231
      %v3798 = vmul.f32 %v2231, %v3797
      %vm3799 = vcmp.eq.f32.partialorder %v2231, inf
      %v3800 = vsel %vm3799, %v2231, %v3798
      %vm3801 = vcmp.eq.f32.partialorder %v2231, 0.0
      %v3802 = vand.u32 %v2231, 2147483648
      %v3803 = vsel %vm3801, %v3802, %v3800
      %v3804 = vrsqrt.pop %v2233
      %v3805 = vmul.f32 %v2233, %v3804
      %vm3806 = vcmp.eq.f32.partialorder %v2233, inf
      %v3807 = vsel %vm3806, %v2233, %v3805
      %vm3808 = vcmp.eq.f32.partialorder %v2233, 0.0
      %v3809 = vand.u32 %v2233, 2147483648
      %v3810 = vsel %vm3808, %v3809, %v3807
      %v3811 = vrsqrt.pop %v2235
      %v3812 = vmul.f32 %v2235, %v3811
      %vm3813 = vcmp.eq.f32.partialorder %v2235, inf
      %v3814 = vsel %vm3813, %v2235, %v3812
      %vm3815 = vcmp.eq.f32.partialorder %v2235, 0.0
      %v3816 = vand.u32 %v2235, 2147483648
      %v3817 = vsel %vm3815, %v3816, %v3814
      %v3818 = vrsqrt.pop %v2237
      %v3819 = vmul.f32 %v2237, %v3818
      %vm3820 = vcmp.eq.f32.partialorder %v2237, inf
      %v3821 = vsel %vm3820, %v2237, %v3819
      %vm3822 = vcmp.eq.f32.partialorder %v2237, 0.0
      %v3823 = vand.u32 %v2237, 2147483648
      %v3824 = vsel %vm3822, %v3823, %v3821
      %v3825 = vrsqrt.pop %v2239
      %v3826 = vmul.f32 %v2239, %v3825
      %vm3827 = vcmp.eq.f32.partialorder %v2239, inf
      %v3828 = vsel %vm3827, %v2239, %v3826
      %vm3829 = vcmp.eq.f32.partialorder %v2239, 0.0
      %v3830 = vand.u32 %v2239, 2147483648
      %v3831 = vsel %vm3829, %v3830, %v3828
      %v3832 = vrsqrt.pop %v2241
      %v3833 = vmul.f32 %v2241, %v3832
      %vm3834 = vcmp.eq.f32.partialorder %v2241, inf
      %v3835 = vsel %vm3834, %v2241, %v3833
      %vm3836 = vcmp.eq.f32.partialorder %v2241, 0.0
      %v3837 = vand.u32 %v2241, 2147483648
      %v3838 = vsel %vm3836, %v3837, %v3835
      %v3839 = vrsqrt.pop %v2243
      %v3840 = vmul.f32 %v2243, %v3839
      %vm3841 = vcmp.eq.f32.partialorder %v2243, inf
      %v3842 = vsel %vm3841, %v2243, %v3840
      %vm3843 = vcmp.eq.f32.partialorder %v2243, 0.0
      %v3844 = vand.u32 %v2243, 2147483648
      %v3845 = vsel %vm3843, %v3844, %v3842
      %v3846 = vrsqrt.pop %v2245
      %v3847 = vmul.f32 %v2245, %v3846
      %vm3848 = vcmp.eq.f32.partialorder %v2245, inf
      %v3849 = vsel %vm3848, %v2245, %v3847
      %vm3850 = vcmp.eq.f32.partialorder %v2245, 0.0
      %v3851 = vand.u32 %v2245, 2147483648
      %v3852 = vsel %vm3850, %v3851, %v3849
      %v3853 = vrsqrt.pop %v2247
      %v3854 = vmul.f32 %v2247, %v3853
      %vm3855 = vcmp.eq.f32.partialorder %v2247, inf
      %v3856 = vsel %vm3855, %v2247, %v3854
      %vm3857 = vcmp.eq.f32.partialorder %v2247, 0.0
      %v3858 = vand.u32 %v2247, 2147483648
      %v3859 = vsel %vm3857, %v3858, %v3856
      %v3860 = vrsqrt.pop %v2249
      %v3861 = vmul.f32 %v2249, %v3860
      %vm3862 = vcmp.eq.f32.partialorder %v2249, inf
      %v3863 = vsel %vm3862, %v2249, %v3861
      %vm3864 = vcmp.eq.f32.partialorder %v2249, 0.0
      %v3865 = vand.u32 %v2249, 2147483648
      %v3866 = vsel %vm3864, %v3865, %v3863
      %v3867 = vrsqrt.pop %v2251
      %v3868 = vmul.f32 %v2251, %v3867
      %vm3869 = vcmp.eq.f32.partialorder %v2251, inf
      %v3870 = vsel %vm3869, %v2251, %v3868
      %vm3871 = vcmp.eq.f32.partialorder %v2251, 0.0
      %v3872 = vand.u32 %v2251, 2147483648
      %v3873 = vsel %vm3871, %v3872, %v3870
      %v3874 = vrsqrt.pop %v2253
      %v3875 = vmul.f32 %v2253, %v3874
      %vm3876 = vcmp.eq.f32.partialorder %v2253, inf
      %v3877 = vsel %vm3876, %v2253, %v3875
      %vm3878 = vcmp.eq.f32.partialorder %v2253, 0.0
      %v3879 = vand.u32 %v2253, 2147483648
      %v3880 = vsel %vm3878, %v3879, %v3877
      %v3881 = vrsqrt.pop %v2255
      %v3882 = vmul.f32 %v2255, %v3881
      %vm3883 = vcmp.eq.f32.partialorder %v2255, inf
      %v3884 = vsel %vm3883, %v2255, %v3882
      %vm3885 = vcmp.eq.f32.partialorder %v2255, 0.0
      %v3886 = vand.u32 %v2255, 2147483648
      %v3887 = vsel %vm3885, %v3886, %v3884
      %v3888 = vrsqrt.pop %v2257
      %v3889 = vmul.f32 %v2257, %v3888
      %vm3890 = vcmp.eq.f32.partialorder %v2257, inf
      %v3891 = vsel %vm3890, %v2257, %v3889
      %vm3892 = vcmp.eq.f32.partialorder %v2257, 0.0
      %v3893 = vand.u32 %v2257, 2147483648
      %v3894 = vsel %vm3892, %v3893, %v3891
      %v3895 = vrsqrt.pop %v2259
      %v3896 = vmul.f32 %v2259, %v3895
      %vm3897 = vcmp.eq.f32.partialorder %v2259, inf
      %v3898 = vsel %vm3897, %v2259, %v3896
      %vm3899 = vcmp.eq.f32.partialorder %v2259, 0.0
      %v3900 = vand.u32 %v2259, 2147483648
      %v3901 = vsel %vm3899, %v3900, %v3898
      %v3902 = vrsqrt.pop %v2261
      %v3903 = vmul.f32 %v2261, %v3902
      %vm3904 = vcmp.eq.f32.partialorder %v2261, inf
      %v3905 = vsel %vm3904, %v2261, %v3903
      %vm3906 = vcmp.eq.f32.partialorder %v2261, 0.0
      %v3907 = vand.u32 %v2261, 2147483648
      %v3908 = vsel %vm3906, %v3907, %v3905
      %v3909 = vrsqrt.pop %v2263
      %v3910 = vmul.f32 %v2263, %v3909
      %vm3911 = vcmp.eq.f32.partialorder %v2263, inf
      %v3912 = vsel %vm3911, %v2263, %v3910
      %vm3913 = vcmp.eq.f32.partialorder %v2263, 0.0
      %v3914 = vand.u32 %v2263, 2147483648
      %v3915 = vsel %vm3913, %v3914, %v3912
      %v3916 = vrsqrt.pop %v2265
      %v3917 = vmul.f32 %v2265, %v3916
      %vm3918 = vcmp.eq.f32.partialorder %v2265, inf
      %v3919 = vsel %vm3918, %v2265, %v3917
      %vm3920 = vcmp.eq.f32.partialorder %v2265, 0.0
      %v3921 = vand.u32 %v2265, 2147483648
      %v3922 = vsel %vm3920, %v3921, %v3919
      %v3923 = vrsqrt.pop %v2267
      %v3924 = vmul.f32 %v2267, %v3923
      %vm3925 = vcmp.eq.f32.partialorder %v2267, inf
      %v3926 = vsel %vm3925, %v2267, %v3924
      %vm3927 = vcmp.eq.f32.partialorder %v2267, 0.0
      %v3928 = vand.u32 %v2267, 2147483648
      %v3929 = vsel %vm3927, %v3928, %v3926
      %v3930 = vrsqrt.pop %v2269
      %v3931 = vmul.f32 %v2269, %v3930
      %vm3932 = vcmp.eq.f32.partialorder %v2269, inf
      %v3933 = vsel %vm3932, %v2269, %v3931
      %vm3934 = vcmp.eq.f32.partialorder %v2269, 0.0
      %v3935 = vand.u32 %v2269, 2147483648
      %v3936 = vsel %vm3934, %v3935, %v3933
      %v3937 = vrsqrt.pop %v2271
      %v3938 = vmul.f32 %v2271, %v3937
      %vm3939 = vcmp.eq.f32.partialorder %v2271, inf
      %v3940 = vsel %vm3939, %v2271, %v3938
      %vm3941 = vcmp.eq.f32.partialorder %v2271, 0.0
      %v3942 = vand.u32 %v2271, 2147483648
      %v3943 = vsel %vm3941, %v3942, %v3940
      %v3944 = vrsqrt.pop %v2273
      %v3945 = vmul.f32 %v2273, %v3944
      %vm3946 = vcmp.eq.f32.partialorder %v2273, inf
      %v3947 = vsel %vm3946, %v2273, %v3945
      %vm3948 = vcmp.eq.f32.partialorder %v2273, 0.0
      %v3949 = vand.u32 %v2273, 2147483648
      %v3950 = vsel %vm3948, %v3949, %v3947
      %v3951 = vrsqrt.pop %v2275
      %v3952 = vmul.f32 %v2275, %v3951
      %vm3953 = vcmp.eq.f32.partialorder %v2275, inf
      %v3954 = vsel %vm3953, %v2275, %v3952
      %vm3955 = vcmp.eq.f32.partialorder %v2275, 0.0
      %v3956 = vand.u32 %v2275, 2147483648
      %v3957 = vsel %vm3955, %v3956, %v3954
      %v3958 = vrsqrt.pop %v2277
      %v3959 = vmul.f32 %v2277, %v3958
      %vm3960 = vcmp.eq.f32.partialorder %v2277, inf
      %v3961 = vsel %vm3960, %v2277, %v3959
      %vm3962 = vcmp.eq.f32.partialorder %v2277, 0.0
      %v3963 = vand.u32 %v2277, 2147483648
      %v3964 = vsel %vm3962, %v3963, %v3961
      %v3965 = vrsqrt.pop %v2279
      %v3966 = vmul.f32 %v2279, %v3965
      %vm3967 = vcmp.eq.f32.partialorder %v2279, inf
      %v3968 = vsel %vm3967, %v2279, %v3966
      %vm3969 = vcmp.eq.f32.partialorder %v2279, 0.0
      %v3970 = vand.u32 %v2279, 2147483648
      %v3971 = vsel %vm3969, %v3970, %v3968
      %v3972 = vrsqrt.pop %v2281
      %v3973 = vmul.f32 %v2281, %v3972
      %vm3974 = vcmp.eq.f32.partialorder %v2281, inf
      %v3975 = vsel %vm3974, %v2281, %v3973
      %vm3976 = vcmp.eq.f32.partialorder %v2281, 0.0
      %v3977 = vand.u32 %v2281, 2147483648
      %v3978 = vsel %vm3976, %v3977, %v3975
      %v3979 = vrsqrt.pop %v2283
      %v3980 = vmul.f32 %v2283, %v3979
      %vm3981 = vcmp.eq.f32.partialorder %v2283, inf
      %v3982 = vsel %vm3981, %v2283, %v3980
      %vm3983 = vcmp.eq.f32.partialorder %v2283, 0.0
      %v3984 = vand.u32 %v2283, 2147483648
      %v3985 = vsel %vm3983, %v3984, %v3982
      %v3986 = vrsqrt.pop %v2285
      %v3987 = vmul.f32 %v2285, %v3986
      %vm3988 = vcmp.eq.f32.partialorder %v2285, inf
      %v3989 = vsel %vm3988, %v2285, %v3987
      %vm3990 = vcmp.eq.f32.partialorder %v2285, 0.0
      %v3991 = vand.u32 %v2285, 2147483648
      %v3992 = vsel %vm3990, %v3991, %v3989
      %v3993 = vrsqrt.pop %v2287
      %v3994 = vmul.f32 %v2287, %v3993
      %vm3995 = vcmp.eq.f32.partialorder %v2287, inf
      %v3996 = vsel %vm3995, %v2287, %v3994
      %vm3997 = vcmp.eq.f32.partialorder %v2287, 0.0
      %v3998 = vand.u32 %v2287, 2147483648
      %v3999 = vsel %vm3997, %v3998, %v3996
      %v4000 = vrsqrt.pop %v2289
      %v4001 = vmul.f32 %v2289, %v4000
      %vm4002 = vcmp.eq.f32.partialorder %v2289, inf
      %v4003 = vsel %vm4002, %v2289, %v4001
      %vm4004 = vcmp.eq.f32.partialorder %v2289, 0.0
      %v4005 = vand.u32 %v2289, 2147483648
      %v4006 = vsel %vm4004, %v4005, %v4003
      %v4007 = vrsqrt.pop %v2291
      %v4008 = vmul.f32 %v2291, %v4007
      %vm4009 = vcmp.eq.f32.partialorder %v2291, inf
      %v4010 = vsel %vm4009, %v2291, %v4008
      %vm4011 = vcmp.eq.f32.partialorder %v2291, 0.0
      %v4012 = vand.u32 %v2291, 2147483648
      %v4013 = vsel %vm4011, %v4012, %v4010
      %v4014 = vrsqrt.pop %v2293
      %v4015 = vmul.f32 %v2293, %v4014
      %vm4016 = vcmp.eq.f32.partialorder %v2293, inf
      %v4017 = vsel %vm4016, %v2293, %v4015
      %vm4018 = vcmp.eq.f32.partialorder %v2293, 0.0
      %v4019 = vand.u32 %v2293, 2147483648
      %v4020 = vsel %vm4018, %v4019, %v4017
      %v4021 = vrsqrt.pop %v2295
      %v4022 = vmul.f32 %v2295, %v4021
      %vm4023 = vcmp.eq.f32.partialorder %v2295, inf
      %v4024 = vsel %vm4023, %v2295, %v4022
      %vm4025 = vcmp.eq.f32.partialorder %v2295, 0.0
      %v4026 = vand.u32 %v2295, 2147483648
      %v4027 = vsel %vm4025, %v4026, %v4024
      %v4028 = vrsqrt.pop %v2297
      %v4029 = vmul.f32 %v2297, %v4028
      %vm4030 = vcmp.eq.f32.partialorder %v2297, inf
      %v4031 = vsel %vm4030, %v2297, %v4029
      %vm4032 = vcmp.eq.f32.partialorder %v2297, 0.0
      %v4033 = vand.u32 %v2297, 2147483648
      %v4034 = vsel %vm4032, %v4033, %v4031
      %v4035 = vrsqrt.pop %v2299
      %v4036 = vmul.f32 %v2299, %v4035
      %vm4037 = vcmp.eq.f32.partialorder %v2299, inf
      %v4038 = vsel %vm4037, %v2299, %v4036
      %vm4039 = vcmp.eq.f32.partialorder %v2299, 0.0
      %v4040 = vand.u32 %v2299, 2147483648
      %v4041 = vsel %vm4039, %v4040, %v4038
      %v4042 = vrsqrt.pop %v2301
      %v4043 = vmul.f32 %v2301, %v4042
      %vm4044 = vcmp.eq.f32.partialorder %v2301, inf
      %v4045 = vsel %vm4044, %v2301, %v4043
      %vm4046 = vcmp.eq.f32.partialorder %v2301, 0.0
      %v4047 = vand.u32 %v2301, 2147483648
      %v4048 = vsel %vm4046, %v4047, %v4045
      %v4049 = vrsqrt.pop %v2303
      %v4050 = vmul.f32 %v2303, %v4049
      %vm4051 = vcmp.eq.f32.partialorder %v2303, inf
      %v4052 = vsel %vm4051, %v2303, %v4050
      %vm4053 = vcmp.eq.f32.partialorder %v2303, 0.0
      %v4054 = vand.u32 %v2303, 2147483648
      %v4055 = vsel %vm4053, %v4054, %v4052
      %v4056 = vrsqrt.pop %v2305
      %v4057 = vmul.f32 %v2305, %v4056
      %vm4058 = vcmp.eq.f32.partialorder %v2305, inf
      %v4059 = vsel %vm4058, %v2305, %v4057
      %vm4060 = vcmp.eq.f32.partialorder %v2305, 0.0
      %v4061 = vand.u32 %v2305, 2147483648
      %v4062 = vsel %vm4060, %v4061, %v4059
      %v4063 = vrsqrt.pop %v2307
      %v4064 = vmul.f32 %v2307, %v4063
      %vm4065 = vcmp.eq.f32.partialorder %v2307, inf
      %v4066 = vsel %vm4065, %v2307, %v4064
      %vm4067 = vcmp.eq.f32.partialorder %v2307, 0.0
      %v4068 = vand.u32 %v2307, 2147483648
      %v4069 = vsel %vm4067, %v4068, %v4066
      %v4070 = vrsqrt.pop %v2309
      %v4071 = vmul.f32 %v2309, %v4070
      %vm4072 = vcmp.eq.f32.partialorder %v2309, inf
      %v4073 = vsel %vm4072, %v2309, %v4071
      %vm4074 = vcmp.eq.f32.partialorder %v2309, 0.0
      %v4075 = vand.u32 %v2309, 2147483648
      %v4076 = vsel %vm4074, %v4075, %v4073
      %v4077 = vrsqrt.pop %v2311
      %v4078 = vmul.f32 %v2311, %v4077
      %vm4079 = vcmp.eq.f32.partialorder %v2311, inf
      %v4080 = vsel %vm4079, %v2311, %v4078
      %vm4081 = vcmp.eq.f32.partialorder %v2311, 0.0
      %v4082 = vand.u32 %v2311, 2147483648
      %v4083 = vsel %vm4081, %v4082, %v4080
      %v4084 = vrsqrt.pop %v2313
      %v4085 = vmul.f32 %v2313, %v4084
      %vm4086 = vcmp.eq.f32.partialorder %v2313, inf
      %v4087 = vsel %vm4086, %v2313, %v4085
      %vm4088 = vcmp.eq.f32.partialorder %v2313, 0.0
      %v4089 = vand.u32 %v2313, 2147483648
      %v4090 = vsel %vm4088, %v4089, %v4087
      %v4091 = vrsqrt.pop %v2315
      %v4092 = vmul.f32 %v2315, %v4091
      %vm4093 = vcmp.eq.f32.partialorder %v2315, inf
      %v4094 = vsel %vm4093, %v2315, %v4092
      %vm4095 = vcmp.eq.f32.partialorder %v2315, 0.0
      %v4096 = vand.u32 %v2315, 2147483648
      %v4097 = vsel %vm4095, %v4096, %v4094
      %v4098 = vrsqrt.pop %v2317
      %v4099 = vmul.f32 %v2317, %v4098
      %vm4100 = vcmp.eq.f32.partialorder %v2317, inf
      %v4101 = vsel %vm4100, %v2317, %v4099
      %vm4102 = vcmp.eq.f32.partialorder %v2317, 0.0
      %v4103 = vand.u32 %v2317, 2147483648
      %v4104 = vsel %vm4102, %v4103, %v4101
      %v4105 = vrsqrt.pop %v2319
      %v4106 = vmul.f32 %v2319, %v4105
      %vm4107 = vcmp.eq.f32.partialorder %v2319, inf
      %v4108 = vsel %vm4107, %v2319, %v4106
      %vm4109 = vcmp.eq.f32.partialorder %v2319, 0.0
      %v4110 = vand.u32 %v2319, 2147483648
      %v4111 = vsel %vm4109, %v4110, %v4108
      %v4112 = vsub.f32 0.0, %v2326
      %v4113 = vsub.f32 0.0, %v2333
      %v4114 = vsub.f32 0.0, %v2340
      %v4115 = vsub.f32 0.0, %v2347
      %v4116 = vsub.f32 0.0, %v2354
      %v4117 = vsub.f32 0.0, %v2361
      %v4118 = vsub.f32 0.0, %v2368
      %v4119 = vsub.f32 0.0, %v2375
      %v4120 = vsub.f32 0.0, %v2382
      %v4121 = vsub.f32 0.0, %v2389
      %v4122 = vsub.f32 0.0, %v2396
      %v4123 = vsub.f32 0.0, %v2403
      %v4124 = vsub.f32 0.0, %v2410
      %v4125 = vsub.f32 0.0, %v2417
      %v4126 = vsub.f32 0.0, %v2424
      %v4127 = vsub.f32 0.0, %v2431
      %v4128 = vsub.f32 0.0, %v2438
      %v4129 = vsub.f32 0.0, %v2445
      %v4130 = vsub.f32 0.0, %v2452
      %v4131 = vsub.f32 0.0, %v2459
      %v4132 = vsub.f32 0.0, %v2466
      %v4133 = vsub.f32 0.0, %v2473
      %v4134 = vsub.f32 0.0, %v2480
      %v4135 = vsub.f32 0.0, %v2487
      %v4136 = vsub.f32 0.0, %v2494
      %v4137 = vsub.f32 0.0, %v2501
      %v4138 = vsub.f32 0.0, %v2508
      %v4139 = vsub.f32 0.0, %v2515
      %v4140 = vsub.f32 0.0, %v2522
      %v4141 = vsub.f32 0.0, %v2529
      %v4142 = vsub.f32 0.0, %v2536
      %v4143 = vsub.f32 0.0, %v2543
      %v4144 = vsub.f32 0.0, %v2550
      %v4145 = vsub.f32 0.0, %v2557
      %v4146 = vsub.f32 0.0, %v2564
      %v4147 = vsub.f32 0.0, %v2571
      %v4148 = vsub.f32 0.0, %v2578
      %v4149 = vsub.f32 0.0, %v2585
      %v4150 = vsub.f32 0.0, %v2592
      %v4151 = vsub.f32 0.0, %v2599
      %v4152 = vsub.f32 0.0, %v2606
      %v4153 = vsub.f32 0.0, %v2613
      %v4154 = vsub.f32 0.0, %v2620
      %v4155 = vsub.f32 0.0, %v2627
      %v4156 = vsub.f32 0.0, %v2634
      %v4157 = vsub.f32 0.0, %v2641
      %v4158 = vsub.f32 0.0, %v2648
      %v4159 = vsub.f32 0.0, %v2655
      %v4160 = vsub.f32 0.0, %v2662
      %v4161 = vsub.f32 0.0, %v2669
      %v4162 = vsub.f32 0.0, %v2676
      %v4163 = vsub.f32 0.0, %v2683
      %v4164 = vsub.f32 0.0, %v2690
      %v4165 = vsub.f32 0.0, %v2697
      %v4166 = vsub.f32 0.0, %v2704
      %v4167 = vsub.f32 0.0, %v2711
      %v4168 = vsub.f32 0.0, %v2718
      %v4169 = vsub.f32 0.0, %v2725
      %v4170 = vsub.f32 0.0, %v2732
      %v4171 = vsub.f32 0.0, %v2739
      %v4172 = vsub.f32 0.0, %v2746
      %v4173 = vsub.f32 0.0, %v2753
      %v4174 = vsub.f32 0.0, %v2760
      %v4175 = vsub.f32 0.0, %v2767
      %v4176 = vsub.f32 0.0, %v2774
      %v4177 = vsub.f32 0.0, %v2781
      %v4178 = vsub.f32 0.0, %v2788
      %v4179 = vsub.f32 0.0, %v2795
      %v4180 = vsub.f32 0.0, %v2802
      %v4181 = vsub.f32 0.0, %v2809
      %v4182 = vsub.f32 0.0, %v2816
      %v4183 = vsub.f32 0.0, %v2823
      %v4184 = vsub.f32 0.0, %v2830
      %v4185 = vsub.f32 0.0, %v2837
      %v4186 = vsub.f32 0.0, %v2844
      %v4187 = vsub.f32 0.0, %v2851
      %v4188 = vsub.f32 0.0, %v2858
      %v4189 = vsub.f32 0.0, %v2865
      %v4190 = vsub.f32 0.0, %v2872
      %v4191 = vsub.f32 0.0, %v2879
      %v4192 = vsub.f32 0.0, %v2886
      %v4193 = vsub.f32 0.0, %v2893
      %v4194 = vsub.f32 0.0, %v2900
      %v4195 = vsub.f32 0.0, %v2907
      %v4196 = vsub.f32 0.0, %v2914
      %v4197 = vsub.f32 0.0, %v2921
      %v4198 = vsub.f32 0.0, %v2928
      %v4199 = vsub.f32 0.0, %v2935
      %v4200 = vsub.f32 0.0, %v2942
      %v4201 = vsub.f32 0.0, %v2949
      %v4202 = vsub.f32 0.0, %v2956
      %v4203 = vsub.f32 0.0, %v2963
      %v4204 = vsub.f32 0.0, %v2970
      %v4205 = vsub.f32 0.0, %v2977
      %v4206 = vsub.f32 0.0, %v2984
      %v4207 = vsub.f32 0.0, %v2991
      %v4208 = vsub.f32 0.0, %v2998
      %v4209 = vsub.f32 0.0, %v3005
      %v4210 = vsub.f32 0.0, %v3012
      %v4211 = vsub.f32 0.0, %v3019
      %v4212 = vsub.f32 0.0, %v3026
      %v4213 = vsub.f32 0.0, %v3033
      %v4214 = vsub.f32 0.0, %v3040
      %v4215 = vsub.f32 0.0, %v3047
      %v4216 = vsub.f32 0.0, %v3054
      %v4217 = vsub.f32 0.0, %v3061
      %v4218 = vsub.f32 0.0, %v3068
      %v4219 = vsub.f32 0.0, %v3075
      %v4220 = vsub.f32 0.0, %v3082
      %v4221 = vsub.f32 0.0, %v3089
      %v4222 = vsub.f32 0.0, %v3096
      %v4223 = vsub.f32 0.0, %v3103
      %v4224 = vsub.f32 0.0, %v3110
      %v4225 = vsub.f32 0.0, %v3117
      %v4226 = vsub.f32 0.0, %v3124
      %v4227 = vsub.f32 0.0, %v3131
      %v4228 = vsub.f32 0.0, %v3138
      %v4229 = vsub.f32 0.0, %v3145
      %v4230 = vsub.f32 0.0, %v3152
      %v4231 = vsub.f32 0.0, %v3159
      %v4232 = vsub.f32 0.0, %v3166
      %v4233 = vsub.f32 0.0, %v3173
      %v4234 = vsub.f32 0.0, %v3180
      %v4235 = vsub.f32 0.0, %v3187
      %v4236 = vsub.f32 0.0, %v3194
      %v4237 = vsub.f32 0.0, %v3201
      %v4238 = vsub.f32 0.0, %v3208
      %v4239 = vsub.f32 0.0, %v3215
      %v4240 = vsub.f32 0.0, %v3222
      %v4241 = vsub.f32 0.0, %v3229
      %v4242 = vsub.f32 0.0, %v3236
      %v4243 = vsub.f32 0.0, %v3243
      %v4244 = vsub.f32 0.0, %v3250
      %v4245 = vsub.f32 0.0, %v3257
      %v4246 = vsub.f32 0.0, %v3264
      %v4247 = vsub.f32 0.0, %v3271
      %v4248 = vsub.f32 0.0, %v3278
      %v4249 = vsub.f32 0.0, %v3285
      %v4250 = vsub.f32 0.0, %v3292
      %v4251 = vsub.f32 0.0, %v3299
      %v4252 = vsub.f32 0.0, %v3306
      %v4253 = vsub.f32 0.0, %v3313
      %v4254 = vsub.f32 0.0, %v3320
      %v4255 = vsub.f32 0.0, %v3327
      %v4256 = vsub.f32 0.0, %v3334
      %v4257 = vsub.f32 0.0, %v3341
      %v4258 = vsub.f32 0.0, %v3348
      %v4259 = vsub.f32 0.0, %v3355
      %v4260 = vsub.f32 0.0, %v3362
      %v4261 = vsub.f32 0.0, %v3369
      %v4262 = vsub.f32 0.0, %v3376
      %v4263 = vsub.f32 0.0, %v3383
      %v4264 = vsub.f32 0.0, %v3390
      %v4265 = vsub.f32 0.0, %v3397
      %v4266 = vsub.f32 0.0, %v3404
      %v4267 = vsub.f32 0.0, %v3411
      %v4268 = vsub.f32 0.0, %v3418
      %v4269 = vsub.f32 0.0, %v3425
      %v4270 = vsub.f32 0.0, %v3432
      %v4271 = vsub.f32 0.0, %v3439
      %v4272 = vsub.f32 0.0, %v3446
      %v4273 = vsub.f32 0.0, %v3453
      %v4274 = vsub.f32 0.0, %v3460
      %v4275 = vsub.f32 0.0, %v3467
      %v4276 = vsub.f32 0.0, %v3474
      %v4277 = vsub.f32 0.0, %v3481
      %v4278 = vsub.f32 0.0, %v3488
      %v4279 = vsub.f32 0.0, %v3495
      %v4280 = vsub.f32 0.0, %v3502
      %v4281 = vsub.f32 0.0, %v3509
      %v4282 = vsub.f32 0.0, %v3516
      %v4283 = vsub.f32 0.0, %v3523
      %v4284 = vsub.f32 0.0, %v3530
      %v4285 = vsub.f32 0.0, %v3537
      %v4286 = vsub.f32 0.0, %v3544
      %v4287 = vsub.f32 0.0, %v3551
      %v4288 = vsub.f32 0.0, %v3558
      %v4289 = vsub.f32 0.0, %v3565
      %v4290 = vsub.f32 0.0, %v3572
      %v4291 = vsub.f32 0.0, %v3579
      %v4292 = vsub.f32 0.0, %v3586
      %v4293 = vsub.f32 0.0, %v3593
      %v4294 = vsub.f32 0.0, %v3600
      %v4295 = vsub.f32 0.0, %v3607
      %v4296 = vsub.f32 0.0, %v3614
      %v4297 = vsub.f32 0.0, %v3621
      %v4298 = vsub.f32 0.0, %v3628
      %v4299 = vsub.f32 0.0, %v3635
      %v4300 = vsub.f32 0.0, %v3642
      %v4301 = vsub.f32 0.0, %v3649
      %v4302 = vsub.f32 0.0, %v3656
      %v4303 = vsub.f32 0.0, %v3663
      %v4304 = vsub.f32 0.0, %v3670
      %v4305 = vsub.f32 0.0, %v3677
      %v4306 = vsub.f32 0.0, %v3684
      %v4307 = vsub.f32 0.0, %v3691
      %v4308 = vsub.f32 0.0, %v3698
      %v4309 = vsub.f32 0.0, %v3705
      %v4310 = vsub.f32 0.0, %v3712
      %v4311 = vsub.f32 0.0, %v3719
      %v4312 = vsub.f32 0.0, %v3726
      %v4313 = vsub.f32 0.0, %v3733
      %v4314 = vsub.f32 0.0, %v3740
      %v4315 = vsub.f32 0.0, %v3747
      %v4316 = vsub.f32 0.0, %v3754
      %v4317 = vsub.f32 0.0, %v3761
      %v4318 = vsub.f32 0.0, %v3768
      %v4319 = vsub.f32 0.0, %v3775
      %v4320 = vsub.f32 0.0, %v3782
      %v4321 = vsub.f32 0.0, %v3789
      %v4322 = vsub.f32 0.0, %v3796
      %v4323 = vsub.f32 0.0, %v3803
      %v4324 = vsub.f32 0.0, %v3810
      %v4325 = vsub.f32 0.0, %v3817
      %v4326 = vsub.f32 0.0, %v3824
      %v4327 = vsub.f32 0.0, %v3831
      %v4328 = vsub.f32 0.0, %v3838
      %v4329 = vsub.f32 0.0, %v3845
      %v4330 = vsub.f32 0.0, %v3852
      %v4331 = vsub.f32 0.0, %v3859
      %v4332 = vsub.f32 0.0, %v3866
      %v4333 = vsub.f32 0.0, %v3873
      %v4334 = vsub.f32 0.0, %v3880
      %v4335 = vsub.f32 0.0, %v3887
      %v4336 = vsub.f32 0.0, %v3894
      %v4337 = vsub.f32 0.0, %v3901
      %v4338 = vsub.f32 0.0, %v3908
      %v4339 = vsub.f32 0.0, %v3915
      %v4340 = vsub.f32 0.0, %v3922
      %v4341 = vsub.f32 0.0, %v3929
      %v4342 = vsub.f32 0.0, %v3936
      %v4343 = vsub.f32 0.0, %v3943
      %v4344 = vsub.f32 0.0, %v3950
      %v4345 = vsub.f32 0.0, %v3957
      %v4346 = vsub.f32 0.0, %v3964
      %v4347 = vsub.f32 0.0, %v3971
      %v4348 = vsub.f32 0.0, %v3978
      %v4349 = vsub.f32 0.0, %v3985
      %v4350 = vsub.f32 0.0, %v3992
      %v4351 = vsub.f32 0.0, %v3999
      %v4352 = vsub.f32 0.0, %v4006
      %v4353 = vsub.f32 0.0, %v4013
      %v4354 = vsub.f32 0.0, %v4020
      %v4355 = vsub.f32 0.0, %v4027
      %v4356 = vsub.f32 0.0, %v4034
      %v4357 = vsub.f32 0.0, %v4041
      %v4358 = vsub.f32 0.0, %v4048
      %v4359 = vsub.f32 0.0, %v4055
      %v4360 = vsub.f32 0.0, %v4062
      %v4361 = vsub.f32 0.0, %v4069
      %v4362 = vsub.f32 0.0, %v4076
      %v4363 = vsub.f32 0.0, %v4083
      %v4364 = vsub.f32 0.0, %v4090
      %v4365 = vsub.f32 0.0, %v4097
      %v4366 = vsub.f32 0.0, %v4104
      %v4367 = vsub.f32 0.0, %v4111
      %v4624 = vlaneseq
      %v4625 = vand.u32 %v4624, 127
      %v4626 = vlaneseq
      %v4627 = vshrl.u32 %v4626, 7
      %v4628 = vsub.s32 %v4625, %v4627
      %v4629 = vrot.slane %v4112, %v4628
      %v4630 = vadd.s32 %v4625, 4294967288
      %v4631 = vlaneseq
      %v4632 = vshrl.u32 %v4631, 7
      %v4633 = vsub.s32 %v4630, %v4632
      %v4634 = vrot.slane %v4113, %v4633
      %vm4635 = vcmask 130112
      %v4636 = vsel %vm4635, %v4634, %v4629
      %v4637 = vadd.s32 %v4625, 4294967280
      %v4638 = vlaneseq
      %v4639 = vshrl.u32 %v4638, 7
      %v4640 = vsub.s32 %v4637, %v4639
      %v4641 = vrot.slane %v4114, %v4640
      %vm4642 = vcmask 195712
      %v4643 = vsel %vm4642, %v4641, %v4636
      %v4644 = vadd.s32 %v4625, 4294967272
      %v4645 = vlaneseq
      %v4646 = vshrl.u32 %v4645, 7
      %v4647 = vsub.s32 %v4644, %v4646
      %v4648 = vrot.slane %v4115, %v4647
      %vm4649 = vcmask 261312
      %v4650 = vsel %vm4649, %v4648, %v4643
      %v4651 = vadd.s32 %v4625, 4294967264
      %v4652 = vlaneseq
      %v4653 = vshrl.u32 %v4652, 7
      %v4654 = vsub.s32 %v4651, %v4653
      %v4655 = vrot.slane %v4116, %v4654
      %vm4656 = vcmask 326912
      %v4657 = vsel %vm4656, %v4655, %v4650
      %v4658 = vadd.s32 %v4625, 4294967256
      %v4659 = vlaneseq
      %v4660 = vshrl.u32 %v4659, 7
      %v4661 = vsub.s32 %v4658, %v4660
      %v4662 = vrot.slane %v4117, %v4661
      %vm4663 = vcmask 392512
      %v4664 = vsel %vm4663, %v4662, %v4657
      %v4665 = vadd.s32 %v4625, 4294967248
      %v4666 = vlaneseq
      %v4667 = vshrl.u32 %v4666, 7
      %v4668 = vsub.s32 %v4665, %v4667
      %v4669 = vrot.slane %v4118, %v4668
      %vm4670 = vcmask 458112
      %v4671 = vsel %vm4670, %v4669, %v4664
      %v4672 = vadd.s32 %v4625, 4294967240
      %v4673 = vlaneseq
      %v4674 = vshrl.u32 %v4673, 7
      %v4675 = vsub.s32 %v4672, %v4674
      %v4676 = vrot.slane %v4119, %v4675
      %vm4677 = vcmask 523712
      %v4678 = vsel %vm4677, %v4676, %v4671
      %v4679 = vadd.s32 %v4625, 4294967232
      %v4680 = vlaneseq
      %v4681 = vshrl.u32 %v4680, 7
      %v4682 = vsub.s32 %v4679, %v4681
      %v4683 = vrot.slane %v4120, %v4682
      %vm4684 = vcmask 589312
      %v4685 = vsel %vm4684, %v4683, %v4678
      %v4686 = vadd.s32 %v4625, 4294967224
      %v4687 = vlaneseq
      %v4688 = vshrl.u32 %v4687, 7
      %v4689 = vsub.s32 %v4686, %v4688
      %v4690 = vrot.slane %v4121, %v4689
      %vm4691 = vcmask 654912
      %v4692 = vsel %vm4691, %v4690, %v4685
      %v4693 = vadd.s32 %v4625, 4294967216
      %v4694 = vlaneseq
      %v4695 = vshrl.u32 %v4694, 7
      %v4696 = vsub.s32 %v4693, %v4695
      %v4697 = vrot.slane %v4122, %v4696
      %vm4698 = vcmask 720512
      %v4699 = vsel %vm4698, %v4697, %v4692
      %v4700 = vadd.s32 %v4625, 4294967208
      %v4701 = vlaneseq
      %v4702 = vshrl.u32 %v4701, 7
      %v4703 = vsub.s32 %v4700, %v4702
      %v4704 = vrot.slane %v4123, %v4703
      %vm4705 = vcmask 786112
      %v4706 = vsel %vm4705, %v4704, %v4699
      %v4707 = vadd.s32 %v4625, 4294967200
      %v4708 = vlaneseq
      %v4709 = vshrl.u32 %v4708, 7
      %v4710 = vsub.s32 %v4707, %v4709
      %v4711 = vrot.slane %v4124, %v4710
      %vm4712 = vcmask 851712
      %v4713 = vsel %vm4712, %v4711, %v4706
      %v4714 = vadd.s32 %v4625, 4294967192
      %v4715 = vlaneseq
      %v4716 = vshrl.u32 %v4715, 7
      %v4717 = vsub.s32 %v4714, %v4716
      %v4718 = vrot.slane %v4125, %v4717
      %vm4719 = vcmask 917312
      %v4720 = vsel %vm4719, %v4718, %v4713
      %v4721 = vadd.s32 %v4625, 4294967184
      %v4722 = vlaneseq
      %v4723 = vshrl.u32 %v4722, 7
      %v4724 = vsub.s32 %v4721, %v4723
      %v4725 = vrot.slane %v4126, %v4724
      %vm4726 = vcmask 982912
      %v4727 = vsel %vm4726, %v4725, %v4720
      %v4728 = vadd.s32 %v4625, 4294967176
      %v4729 = vlaneseq
      %v4730 = vshrl.u32 %v4729, 7
      %v4731 = vsub.s32 %v4728, %v4730
      %v4732 = vrot.slane %v4127, %v4731
      %vm4733 = vcmask 1048512
      %v4734 = vsel %vm4733, %v4732, %v4727
      %v4735 = vlaneseq
      %v4736 = vshrl.u32 %v4735, 7
      %v4737 = vsub.s32 %v4625, %v4736
      %v4738 = vrot.slane %v4128, %v4737
      %v4739 = vlaneseq
      %v4740 = vshrl.u32 %v4739, 7
      %v4741 = vsub.s32 %v4630, %v4740
      %v4742 = vrot.slane %v4129, %v4741
      %v4743 = vsel %vm4635, %v4742, %v4738
      %v4744 = vlaneseq
      %v4745 = vshrl.u32 %v4744, 7
      %v4746 = vsub.s32 %v4637, %v4745
      %v4747 = vrot.slane %v4130, %v4746
      %v4748 = vsel %vm4642, %v4747, %v4743
      %v4749 = vlaneseq
      %v4750 = vshrl.u32 %v4749, 7
      %v4751 = vsub.s32 %v4644, %v4750
      %v4752 = vrot.slane %v4131, %v4751
      %v4753 = vsel %vm4649, %v4752, %v4748
      %v4754 = vlaneseq
      %v4755 = vshrl.u32 %v4754, 7
      %v4756 = vsub.s32 %v4651, %v4755
      %v4757 = vrot.slane %v4132, %v4756
      %v4758 = vsel %vm4656, %v4757, %v4753
      %v4759 = vlaneseq
      %v4760 = vshrl.u32 %v4759, 7
      %v4761 = vsub.s32 %v4658, %v4760
      %v4762 = vrot.slane %v4133, %v4761
      %v4763 = vsel %vm4663, %v4762, %v4758
      %v4764 = vlaneseq
      %v4765 = vshrl.u32 %v4764, 7
      %v4766 = vsub.s32 %v4665, %v4765
      %v4767 = vrot.slane %v4134, %v4766
      %v4768 = vsel %vm4670, %v4767, %v4763
      %v4769 = vlaneseq
      %v4770 = vshrl.u32 %v4769, 7
      %v4771 = vsub.s32 %v4672, %v4770
      %v4772 = vrot.slane %v4135, %v4771
      %v4773 = vsel %vm4677, %v4772, %v4768
      %v4774 = vlaneseq
      %v4775 = vshrl.u32 %v4774, 7
      %v4776 = vsub.s32 %v4679, %v4775
      %v4777 = vrot.slane %v4136, %v4776
      %v4778 = vsel %vm4684, %v4777, %v4773
      %v4779 = vlaneseq
      %v4780 = vshrl.u32 %v4779, 7
      %v4781 = vsub.s32 %v4686, %v4780
      %v4782 = vrot.slane %v4137, %v4781
      %v4783 = vsel %vm4691, %v4782, %v4778
      %v4784 = vlaneseq
      %v4785 = vshrl.u32 %v4784, 7
      %v4786 = vsub.s32 %v4693, %v4785
      %v4787 = vrot.slane %v4138, %v4786
      %v4788 = vsel %vm4698, %v4787, %v4783
      %v4789 = vlaneseq
      %v4790 = vshrl.u32 %v4789, 7
      %v4791 = vsub.s32 %v4700, %v4790
      %v4792 = vrot.slane %v4139, %v4791
      %v4793 = vsel %vm4705, %v4792, %v4788
      %v4794 = vlaneseq
      %v4795 = vshrl.u32 %v4794, 7
      %v4796 = vsub.s32 %v4707, %v4795
      %v4797 = vrot.slane %v4140, %v4796
      %v4798 = vsel %vm4712, %v4797, %v4793
      %v4799 = vlaneseq
      %v4800 = vshrl.u32 %v4799, 7
      %v4801 = vsub.s32 %v4714, %v4800
      %v4802 = vrot.slane %v4141, %v4801
      %v4803 = vsel %vm4719, %v4802, %v4798
      %v4804 = vlaneseq
      %v4805 = vshrl.u32 %v4804, 7
      %v4806 = vsub.s32 %v4721, %v4805
      %v4807 = vrot.slane %v4142, %v4806
      %v4808 = vsel %vm4726, %v4807, %v4803
      %v4809 = vlaneseq
      %v4810 = vshrl.u32 %v4809, 7
      %v4811 = vsub.s32 %v4728, %v4810
      %v4812 = vrot.slane %v4143, %v4811
      %v4813 = vsel %vm4733, %v4812, %v4808
      %v4814 = vlaneseq
      %v4815 = vshrl.u32 %v4814, 7
      %v4816 = vsub.s32 %v4625, %v4815
      %v4817 = vrot.slane %v4144, %v4816
      %v4818 = vlaneseq
      %v4819 = vshrl.u32 %v4818, 7
      %v4820 = vsub.s32 %v4630, %v4819
      %v4821 = vrot.slane %v4145, %v4820
      %v4822 = vsel %vm4635, %v4821, %v4817
      %v4823 = vlaneseq
      %v4824 = vshrl.u32 %v4823, 7
      %v4825 = vsub.s32 %v4637, %v4824
      %v4826 = vrot.slane %v4146, %v4825
      %v4827 = vsel %vm4642, %v4826, %v4822
      %v4828 = vlaneseq
      %v4829 = vshrl.u32 %v4828, 7
      %v4830 = vsub.s32 %v4644, %v4829
      %v4831 = vrot.slane %v4147, %v4830
      %v4832 = vsel %vm4649, %v4831, %v4827
      %v4833 = vlaneseq
      %v4834 = vshrl.u32 %v4833, 7
      %v4835 = vsub.s32 %v4651, %v4834
      %v4836 = vrot.slane %v4148, %v4835
      %v4837 = vsel %vm4656, %v4836, %v4832
      %v4838 = vlaneseq
      %v4839 = vshrl.u32 %v4838, 7
      %v4840 = vsub.s32 %v4658, %v4839
      %v4841 = vrot.slane %v4149, %v4840
      %v4842 = vsel %vm4663, %v4841, %v4837
      %v4843 = vlaneseq
      %v4844 = vshrl.u32 %v4843, 7
      %v4845 = vsub.s32 %v4665, %v4844
      %v4846 = vrot.slane %v4150, %v4845
      %v4847 = vsel %vm4670, %v4846, %v4842
      %v4848 = vlaneseq
      %v4849 = vshrl.u32 %v4848, 7
      %v4850 = vsub.s32 %v4672, %v4849
      %v4851 = vrot.slane %v4151, %v4850
      %v4852 = vsel %vm4677, %v4851, %v4847
      %v4853 = vlaneseq
      %v4854 = vshrl.u32 %v4853, 7
      %v4855 = vsub.s32 %v4679, %v4854
      %v4856 = vrot.slane %v4152, %v4855
      %v4857 = vsel %vm4684, %v4856, %v4852
      %v4858 = vlaneseq
      %v4859 = vshrl.u32 %v4858, 7
      %v4860 = vsub.s32 %v4686, %v4859
      %v4861 = vrot.slane %v4153, %v4860
      %v4862 = vsel %vm4691, %v4861, %v4857
      %v4863 = vlaneseq
      %v4864 = vshrl.u32 %v4863, 7
      %v4865 = vsub.s32 %v4693, %v4864
      %v4866 = vrot.slane %v4154, %v4865
      %v4867 = vsel %vm4698, %v4866, %v4862
      %v4868 = vlaneseq
      %v4869 = vshrl.u32 %v4868, 7
      %v4870 = vsub.s32 %v4700, %v4869
      %v4871 = vrot.slane %v4155, %v4870
      %v4872 = vsel %vm4705, %v4871, %v4867
      %v4873 = vlaneseq
      %v4874 = vshrl.u32 %v4873, 7
      %v4875 = vsub.s32 %v4707, %v4874
      %v4876 = vrot.slane %v4156, %v4875
      %v4877 = vsel %vm4712, %v4876, %v4872
      %v4878 = vlaneseq
      %v4879 = vshrl.u32 %v4878, 7
      %v4880 = vsub.s32 %v4714, %v4879
      %v4881 = vrot.slane %v4157, %v4880
      %v4882 = vsel %vm4719, %v4881, %v4877
      %v4883 = vlaneseq
      %v4884 = vshrl.u32 %v4883, 7
      %v4885 = vsub.s32 %v4721, %v4884
      %v4886 = vrot.slane %v4158, %v4885
      %v4887 = vsel %vm4726, %v4886, %v4882
      %v4888 = vlaneseq
      %v4889 = vshrl.u32 %v4888, 7
      %v4890 = vsub.s32 %v4728, %v4889
      %v4891 = vrot.slane %v4159, %v4890
      %v4892 = vsel %vm4733, %v4891, %v4887
      %v4893 = vlaneseq
      %v4894 = vshrl.u32 %v4893, 7
      %v4895 = vsub.s32 %v4625, %v4894
      %v4896 = vrot.slane %v4160, %v4895
      %v4897 = vlaneseq
      %v4898 = vshrl.u32 %v4897, 7
      %v4899 = vsub.s32 %v4630, %v4898
      %v4900 = vrot.slane %v4161, %v4899
      %v4901 = vsel %vm4635, %v4900, %v4896
      %v4902 = vlaneseq
      %v4903 = vshrl.u32 %v4902, 7
      %v4904 = vsub.s32 %v4637, %v4903
      %v4905 = vrot.slane %v4162, %v4904
      %v4906 = vsel %vm4642, %v4905, %v4901
      %v4907 = vlaneseq
      %v4908 = vshrl.u32 %v4907, 7
      %v4909 = vsub.s32 %v4644, %v4908
      %v4910 = vrot.slane %v4163, %v4909
      %v4911 = vsel %vm4649, %v4910, %v4906
      %v4912 = vlaneseq
      %v4913 = vshrl.u32 %v4912, 7
      %v4914 = vsub.s32 %v4651, %v4913
      %v4915 = vrot.slane %v4164, %v4914
      %v4916 = vsel %vm4656, %v4915, %v4911
      %v4917 = vlaneseq
      %v4918 = vshrl.u32 %v4917, 7
      %v4919 = vsub.s32 %v4658, %v4918
      %v4920 = vrot.slane %v4165, %v4919
      %v4921 = vsel %vm4663, %v4920, %v4916
      %v4922 = vlaneseq
      %v4923 = vshrl.u32 %v4922, 7
      %v4924 = vsub.s32 %v4665, %v4923
      %v4925 = vrot.slane %v4166, %v4924
      %v4926 = vsel %vm4670, %v4925, %v4921
      %v4927 = vlaneseq
      %v4928 = vshrl.u32 %v4927, 7
      %v4929 = vsub.s32 %v4672, %v4928
      %v4930 = vrot.slane %v4167, %v4929
      %v4931 = vsel %vm4677, %v4930, %v4926
      %v4932 = vlaneseq
      %v4933 = vshrl.u32 %v4932, 7
      %v4934 = vsub.s32 %v4679, %v4933
      %v4935 = vrot.slane %v4168, %v4934
      %v4936 = vsel %vm4684, %v4935, %v4931
      %v4937 = vlaneseq
      %v4938 = vshrl.u32 %v4937, 7
      %v4939 = vsub.s32 %v4686, %v4938
      %v4940 = vrot.slane %v4169, %v4939
      %v4941 = vsel %vm4691, %v4940, %v4936
      %v4942 = vlaneseq
      %v4943 = vshrl.u32 %v4942, 7
      %v4944 = vsub.s32 %v4693, %v4943
      %v4945 = vrot.slane %v4170, %v4944
      %v4946 = vsel %vm4698, %v4945, %v4941
      %v4947 = vlaneseq
      %v4948 = vshrl.u32 %v4947, 7
      %v4949 = vsub.s32 %v4700, %v4948
      %v4950 = vrot.slane %v4171, %v4949
      %v4951 = vsel %vm4705, %v4950, %v4946
      %v4952 = vlaneseq
      %v4953 = vshrl.u32 %v4952, 7
      %v4954 = vsub.s32 %v4707, %v4953
      %v4955 = vrot.slane %v4172, %v4954
      %v4956 = vsel %vm4712, %v4955, %v4951
      %v4957 = vlaneseq
      %v4958 = vshrl.u32 %v4957, 7
      %v4959 = vsub.s32 %v4714, %v4958
      %v4960 = vrot.slane %v4173, %v4959
      %v4961 = vsel %vm4719, %v4960, %v4956
      %v4962 = vlaneseq
      %v4963 = vshrl.u32 %v4962, 7
      %v4964 = vsub.s32 %v4721, %v4963
      %v4965 = vrot.slane %v4174, %v4964
      %v4966 = vsel %vm4726, %v4965, %v4961
      %v4967 = vlaneseq
      %v4968 = vshrl.u32 %v4967, 7
      %v4969 = vsub.s32 %v4728, %v4968
      %v4970 = vrot.slane %v4175, %v4969
      %v4971 = vsel %vm4733, %v4970, %v4966
      %v4972 = vlaneseq
      %v4973 = vshrl.u32 %v4972, 7
      %v4974 = vsub.s32 %v4625, %v4973
      %v4975 = vrot.slane %v4176, %v4974
      %v4976 = vlaneseq
      %v4977 = vshrl.u32 %v4976, 7
      %v4978 = vsub.s32 %v4630, %v4977
      %v4979 = vrot.slane %v4177, %v4978
      %v4980 = vsel %vm4635, %v4979, %v4975
      %v4981 = vlaneseq
      %v4982 = vshrl.u32 %v4981, 7
      %v4983 = vsub.s32 %v4637, %v4982
      %v4984 = vrot.slane %v4178, %v4983
      %v4985 = vsel %vm4642, %v4984, %v4980
      %v4986 = vlaneseq
      %v4987 = vshrl.u32 %v4986, 7
      %v4988 = vsub.s32 %v4644, %v4987
      %v4989 = vrot.slane %v4179, %v4988
      %v4990 = vsel %vm4649, %v4989, %v4985
      %v4991 = vlaneseq
      %v4992 = vshrl.u32 %v4991, 7
      %v4993 = vsub.s32 %v4651, %v4992
      %v4994 = vrot.slane %v4180, %v4993
      %v4995 = vsel %vm4656, %v4994, %v4990
      %v4996 = vlaneseq
      %v4997 = vshrl.u32 %v4996, 7
      %v4998 = vsub.s32 %v4658, %v4997
      %v4999 = vrot.slane %v4181, %v4998
      %v5000 = vsel %vm4663, %v4999, %v4995
      %v5001 = vlaneseq
      %v5002 = vshrl.u32 %v5001, 7
      %v5003 = vsub.s32 %v4665, %v5002
      %v5004 = vrot.slane %v4182, %v5003
      %v5005 = vsel %vm4670, %v5004, %v5000
      %v5006 = vlaneseq
      %v5007 = vshrl.u32 %v5006, 7
      %v5008 = vsub.s32 %v4672, %v5007
      %v5009 = vrot.slane %v4183, %v5008
      %v5010 = vsel %vm4677, %v5009, %v5005
      %v5011 = vlaneseq
      %v5012 = vshrl.u32 %v5011, 7
      %v5013 = vsub.s32 %v4679, %v5012
      %v5014 = vrot.slane %v4184, %v5013
      %v5015 = vsel %vm4684, %v5014, %v5010
      %v5016 = vlaneseq
      %v5017 = vshrl.u32 %v5016, 7
      %v5018 = vsub.s32 %v4686, %v5017
      %v5019 = vrot.slane %v4185, %v5018
      %v5020 = vsel %vm4691, %v5019, %v5015
      %v5021 = vlaneseq
      %v5022 = vshrl.u32 %v5021, 7
      %v5023 = vsub.s32 %v4693, %v5022
      %v5024 = vrot.slane %v4186, %v5023
      %v5025 = vsel %vm4698, %v5024, %v5020
      %v5026 = vlaneseq
      %v5027 = vshrl.u32 %v5026, 7
      %v5028 = vsub.s32 %v4700, %v5027
      %v5029 = vrot.slane %v4187, %v5028
      %v5030 = vsel %vm4705, %v5029, %v5025
      %v5031 = vlaneseq
      %v5032 = vshrl.u32 %v5031, 7
      %v5033 = vsub.s32 %v4707, %v5032
      %v5034 = vrot.slane %v4188, %v5033
      %v5035 = vsel %vm4712, %v5034, %v5030
      %v5036 = vlaneseq
      %v5037 = vshrl.u32 %v5036, 7
      %v5038 = vsub.s32 %v4714, %v5037
      %v5039 = vrot.slane %v4189, %v5038
      %v5040 = vsel %vm4719, %v5039, %v5035
      %v5041 = vlaneseq
      %v5042 = vshrl.u32 %v5041, 7
      %v5043 = vsub.s32 %v4721, %v5042
      %v5044 = vrot.slane %v4190, %v5043
      %v5045 = vsel %vm4726, %v5044, %v5040
      %v5046 = vlaneseq
      %v5047 = vshrl.u32 %v5046, 7
      %v5048 = vsub.s32 %v4728, %v5047
      %v5049 = vrot.slane %v4191, %v5048
      %v5050 = vsel %vm4733, %v5049, %v5045
      %v5051 = vlaneseq
      %v5052 = vshrl.u32 %v5051, 7
      %v5053 = vsub.s32 %v4625, %v5052
      %v5054 = vrot.slane %v4192, %v5053
      %v5055 = vlaneseq
      %v5056 = vshrl.u32 %v5055, 7
      %v5057 = vsub.s32 %v4630, %v5056
      %v5058 = vrot.slane %v4193, %v5057
      %v5059 = vsel %vm4635, %v5058, %v5054
      %v5060 = vlaneseq
      %v5061 = vshrl.u32 %v5060, 7
      %v5062 = vsub.s32 %v4637, %v5061
      %v5063 = vrot.slane %v4194, %v5062
      %v5064 = vsel %vm4642, %v5063, %v5059
      %v5065 = vlaneseq
      %v5066 = vshrl.u32 %v5065, 7
      %v5067 = vsub.s32 %v4644, %v5066
      %v5068 = vrot.slane %v4195, %v5067
      %v5069 = vsel %vm4649, %v5068, %v5064
      %v5070 = vlaneseq
      %v5071 = vshrl.u32 %v5070, 7
      %v5072 = vsub.s32 %v4651, %v5071
      %v5073 = vrot.slane %v4196, %v5072
      %v5074 = vsel %vm4656, %v5073, %v5069
      %v5075 = vlaneseq
      %v5076 = vshrl.u32 %v5075, 7
      %v5077 = vsub.s32 %v4658, %v5076
      %v5078 = vrot.slane %v4197, %v5077
      %v5079 = vsel %vm4663, %v5078, %v5074
      %v5080 = vlaneseq
      %v5081 = vshrl.u32 %v5080, 7
      %v5082 = vsub.s32 %v4665, %v5081
      %v5083 = vrot.slane %v4198, %v5082
      %v5084 = vsel %vm4670, %v5083, %v5079
      %v5085 = vlaneseq
      %v5086 = vshrl.u32 %v5085, 7
      %v5087 = vsub.s32 %v4672, %v5086
      %v5088 = vrot.slane %v4199, %v5087
      %v5089 = vsel %vm4677, %v5088, %v5084
      %v5090 = vlaneseq
      %v5091 = vshrl.u32 %v5090, 7
      %v5092 = vsub.s32 %v4679, %v5091
      %v5093 = vrot.slane %v4200, %v5092
      %v5094 = vsel %vm4684, %v5093, %v5089
      %v5095 = vlaneseq
      %v5096 = vshrl.u32 %v5095, 7
      %v5097 = vsub.s32 %v4686, %v5096
      %v5098 = vrot.slane %v4201, %v5097
      %v5099 = vsel %vm4691, %v5098, %v5094
      %v5100 = vlaneseq
      %v5101 = vshrl.u32 %v5100, 7
      %v5102 = vsub.s32 %v4693, %v5101
      %v5103 = vrot.slane %v4202, %v5102
      %v5104 = vsel %vm4698, %v5103, %v5099
      %v5105 = vlaneseq
      %v5106 = vshrl.u32 %v5105, 7
      %v5107 = vsub.s32 %v4700, %v5106
      %v5108 = vrot.slane %v4203, %v5107
      %v5109 = vsel %vm4705, %v5108, %v5104
      %v5110 = vlaneseq
      %v5111 = vshrl.u32 %v5110, 7
      %v5112 = vsub.s32 %v4707, %v5111
      %v5113 = vrot.slane %v4204, %v5112
      %v5114 = vsel %vm4712, %v5113, %v5109
      %v5115 = vlaneseq
      %v5116 = vshrl.u32 %v5115, 7
      %v5117 = vsub.s32 %v4714, %v5116
      %v5118 = vrot.slane %v4205, %v5117
      %v5119 = vsel %vm4719, %v5118, %v5114
      %v5120 = vlaneseq
      %v5121 = vshrl.u32 %v5120, 7
      %v5122 = vsub.s32 %v4721, %v5121
      %v5123 = vrot.slane %v4206, %v5122
      %v5124 = vsel %vm4726, %v5123, %v5119
      %v5125 = vlaneseq
      %v5126 = vshrl.u32 %v5125, 7
      %v5127 = vsub.s32 %v4728, %v5126
      %v5128 = vrot.slane %v4207, %v5127
      %v5129 = vsel %vm4733, %v5128, %v5124
      %v5130 = vlaneseq
      %v5131 = vshrl.u32 %v5130, 7
      %v5132 = vsub.s32 %v4625, %v5131
      %v5133 = vrot.slane %v4208, %v5132
      %v5134 = vlaneseq
      %v5135 = vshrl.u32 %v5134, 7
      %v5136 = vsub.s32 %v4630, %v5135
      %v5137 = vrot.slane %v4209, %v5136
      %v5138 = vsel %vm4635, %v5137, %v5133
      %v5139 = vlaneseq
      %v5140 = vshrl.u32 %v5139, 7
      %v5141 = vsub.s32 %v4637, %v5140
      %v5142 = vrot.slane %v4210, %v5141
      %v5143 = vsel %vm4642, %v5142, %v5138
      %v5144 = vlaneseq
      %v5145 = vshrl.u32 %v5144, 7
      %v5146 = vsub.s32 %v4644, %v5145
      %v5147 = vrot.slane %v4211, %v5146
      %v5148 = vsel %vm4649, %v5147, %v5143
      %v5149 = vlaneseq
      %v5150 = vshrl.u32 %v5149, 7
      %v5151 = vsub.s32 %v4651, %v5150
      %v5152 = vrot.slane %v4212, %v5151
      %v5153 = vsel %vm4656, %v5152, %v5148
      %v5154 = vlaneseq
      %v5155 = vshrl.u32 %v5154, 7
      %v5156 = vsub.s32 %v4658, %v5155
      %v5157 = vrot.slane %v4213, %v5156
      %v5158 = vsel %vm4663, %v5157, %v5153
      %v5159 = vlaneseq
      %v5160 = vshrl.u32 %v5159, 7
      %v5161 = vsub.s32 %v4665, %v5160
      %v5162 = vrot.slane %v4214, %v5161
      %v5163 = vsel %vm4670, %v5162, %v5158
      %v5164 = vlaneseq
      %v5165 = vshrl.u32 %v5164, 7
      %v5166 = vsub.s32 %v4672, %v5165
      %v5167 = vrot.slane %v4215, %v5166
      %v5168 = vsel %vm4677, %v5167, %v5163
      %v5169 = vlaneseq
      %v5170 = vshrl.u32 %v5169, 7
      %v5171 = vsub.s32 %v4679, %v5170
      %v5172 = vrot.slane %v4216, %v5171
      %v5173 = vsel %vm4684, %v5172, %v5168
      %v5174 = vlaneseq
      %v5175 = vshrl.u32 %v5174, 7
      %v5176 = vsub.s32 %v4686, %v5175
      %v5177 = vrot.slane %v4217, %v5176
      %v5178 = vsel %vm4691, %v5177, %v5173
      %v5179 = vlaneseq
      %v5180 = vshrl.u32 %v5179, 7
      %v5181 = vsub.s32 %v4693, %v5180
      %v5182 = vrot.slane %v4218, %v5181
      %v5183 = vsel %vm4698, %v5182, %v5178
      %v5184 = vlaneseq
      %v5185 = vshrl.u32 %v5184, 7
      %v5186 = vsub.s32 %v4700, %v5185
      %v5187 = vrot.slane %v4219, %v5186
      %v5188 = vsel %vm4705, %v5187, %v5183
      %v5189 = vlaneseq
      %v5190 = vshrl.u32 %v5189, 7
      %v5191 = vsub.s32 %v4707, %v5190
      %v5192 = vrot.slane %v4220, %v5191
      %v5193 = vsel %vm4712, %v5192, %v5188
      %v5194 = vlaneseq
      %v5195 = vshrl.u32 %v5194, 7
      %v5196 = vsub.s32 %v4714, %v5195
      %v5197 = vrot.slane %v4221, %v5196
      %v5198 = vsel %vm4719, %v5197, %v5193
      %v5199 = vlaneseq
      %v5200 = vshrl.u32 %v5199, 7
      %v5201 = vsub.s32 %v4721, %v5200
      %v5202 = vrot.slane %v4222, %v5201
      %v5203 = vsel %vm4726, %v5202, %v5198
      %v5204 = vlaneseq
      %v5205 = vshrl.u32 %v5204, 7
      %v5206 = vsub.s32 %v4728, %v5205
      %v5207 = vrot.slane %v4223, %v5206
      %v5208 = vsel %vm4733, %v5207, %v5203
      %v5209 = vlaneseq
      %v5210 = vshrl.u32 %v5209, 7
      %v5211 = vsub.s32 %v4625, %v5210
      %v5212 = vrot.slane %v4224, %v5211
      %v5213 = vlaneseq
      %v5214 = vshrl.u32 %v5213, 7
      %v5215 = vsub.s32 %v4630, %v5214
      %v5216 = vrot.slane %v4225, %v5215
      %v5217 = vsel %vm4635, %v5216, %v5212
      %v5218 = vlaneseq
      %v5219 = vshrl.u32 %v5218, 7
      %v5220 = vsub.s32 %v4637, %v5219
      %v5221 = vrot.slane %v4226, %v5220
      %v5222 = vsel %vm4642, %v5221, %v5217
      %v5223 = vlaneseq
      %v5224 = vshrl.u32 %v5223, 7
      %v5225 = vsub.s32 %v4644, %v5224
      %v5226 = vrot.slane %v4227, %v5225
      %v5227 = vsel %vm4649, %v5226, %v5222
      %v5228 = vlaneseq
      %v5229 = vshrl.u32 %v5228, 7
      %v5230 = vsub.s32 %v4651, %v5229
      %v5231 = vrot.slane %v4228, %v5230
      %v5232 = vsel %vm4656, %v5231, %v5227
      %v5233 = vlaneseq
      %v5234 = vshrl.u32 %v5233, 7
      %v5235 = vsub.s32 %v4658, %v5234
      %v5236 = vrot.slane %v4229, %v5235
      %v5237 = vsel %vm4663, %v5236, %v5232
      %v5238 = vlaneseq
      %v5239 = vshrl.u32 %v5238, 7
      %v5240 = vsub.s32 %v4665, %v5239
      %v5241 = vrot.slane %v4230, %v5240
      %v5242 = vsel %vm4670, %v5241, %v5237
      %v5243 = vlaneseq
      %v5244 = vshrl.u32 %v5243, 7
      %v5245 = vsub.s32 %v4672, %v5244
      %v5246 = vrot.slane %v4231, %v5245
      %v5247 = vsel %vm4677, %v5246, %v5242
      %v5248 = vlaneseq
      %v5249 = vshrl.u32 %v5248, 7
      %v5250 = vsub.s32 %v4679, %v5249
      %v5251 = vrot.slane %v4232, %v5250
      %v5252 = vsel %vm4684, %v5251, %v5247
      %v5253 = vlaneseq
      %v5254 = vshrl.u32 %v5253, 7
      %v5255 = vsub.s32 %v4686, %v5254
      %v5256 = vrot.slane %v4233, %v5255
      %v5257 = vsel %vm4691, %v5256, %v5252
      %v5258 = vlaneseq
      %v5259 = vshrl.u32 %v5258, 7
      %v5260 = vsub.s32 %v4693, %v5259
      %v5261 = vrot.slane %v4234, %v5260
      %v5262 = vsel %vm4698, %v5261, %v5257
      %v5263 = vlaneseq
      %v5264 = vshrl.u32 %v5263, 7
      %v5265 = vsub.s32 %v4700, %v5264
      %v5266 = vrot.slane %v4235, %v5265
      %v5267 = vsel %vm4705, %v5266, %v5262
      %v5268 = vlaneseq
      %v5269 = vshrl.u32 %v5268, 7
      %v5270 = vsub.s32 %v4707, %v5269
      %v5271 = vrot.slane %v4236, %v5270
      %v5272 = vsel %vm4712, %v5271, %v5267
      %v5273 = vlaneseq
      %v5274 = vshrl.u32 %v5273, 7
      %v5275 = vsub.s32 %v4714, %v5274
      %v5276 = vrot.slane %v4237, %v5275
      %v5277 = vsel %vm4719, %v5276, %v5272
      %v5278 = vlaneseq
      %v5279 = vshrl.u32 %v5278, 7
      %v5280 = vsub.s32 %v4721, %v5279
      %v5281 = vrot.slane %v4238, %v5280
      %v5282 = vsel %vm4726, %v5281, %v5277
      %v5283 = vlaneseq
      %v5284 = vshrl.u32 %v5283, 7
      %v5285 = vsub.s32 %v4728, %v5284
      %v5286 = vrot.slane %v4239, %v5285
      %v5287 = vsel %vm4733, %v5286, %v5282
      %v5288 = vlaneseq
      %v5289 = vshrl.u32 %v5288, 7
      %v5290 = vsub.s32 %v4625, %v5289
      %v5291 = vrot.slane %v4240, %v5290
      %v5292 = vlaneseq
      %v5293 = vshrl.u32 %v5292, 7
      %v5294 = vsub.s32 %v4630, %v5293
      %v5295 = vrot.slane %v4241, %v5294
      %v5296 = vsel %vm4635, %v5295, %v5291
      %v5297 = vlaneseq
      %v5298 = vshrl.u32 %v5297, 7
      %v5299 = vsub.s32 %v4637, %v5298
      %v5300 = vrot.slane %v4242, %v5299
      %v5301 = vsel %vm4642, %v5300, %v5296
      %v5302 = vlaneseq
      %v5303 = vshrl.u32 %v5302, 7
      %v5304 = vsub.s32 %v4644, %v5303
      %v5305 = vrot.slane %v4243, %v5304
      %v5306 = vsel %vm4649, %v5305, %v5301
      %v5307 = vlaneseq
      %v5308 = vshrl.u32 %v5307, 7
      %v5309 = vsub.s32 %v4651, %v5308
      %v5310 = vrot.slane %v4244, %v5309
      %v5311 = vsel %vm4656, %v5310, %v5306
      %v5312 = vlaneseq
      %v5313 = vshrl.u32 %v5312, 7
      %v5314 = vsub.s32 %v4658, %v5313
      %v5315 = vrot.slane %v4245, %v5314
      %v5316 = vsel %vm4663, %v5315, %v5311
      %v5317 = vlaneseq
      %v5318 = vshrl.u32 %v5317, 7
      %v5319 = vsub.s32 %v4665, %v5318
      %v5320 = vrot.slane %v4246, %v5319
      %v5321 = vsel %vm4670, %v5320, %v5316
      %v5322 = vlaneseq
      %v5323 = vshrl.u32 %v5322, 7
      %v5324 = vsub.s32 %v4672, %v5323
      %v5325 = vrot.slane %v4247, %v5324
      %v5326 = vsel %vm4677, %v5325, %v5321
      %v5327 = vlaneseq
      %v5328 = vshrl.u32 %v5327, 7
      %v5329 = vsub.s32 %v4679, %v5328
      %v5330 = vrot.slane %v4248, %v5329
      %v5331 = vsel %vm4684, %v5330, %v5326
      %v5332 = vlaneseq
      %v5333 = vshrl.u32 %v5332, 7
      %v5334 = vsub.s32 %v4686, %v5333
      %v5335 = vrot.slane %v4249, %v5334
      %v5336 = vsel %vm4691, %v5335, %v5331
      %v5337 = vlaneseq
      %v5338 = vshrl.u32 %v5337, 7
      %v5339 = vsub.s32 %v4693, %v5338
      %v5340 = vrot.slane %v4250, %v5339
      %v5341 = vsel %vm4698, %v5340, %v5336
      %v5342 = vlaneseq
      %v5343 = vshrl.u32 %v5342, 7
      %v5344 = vsub.s32 %v4700, %v5343
      %v5345 = vrot.slane %v4251, %v5344
      %v5346 = vsel %vm4705, %v5345, %v5341
      %v5347 = vlaneseq
      %v5348 = vshrl.u32 %v5347, 7
      %v5349 = vsub.s32 %v4707, %v5348
      %v5350 = vrot.slane %v4252, %v5349
      %v5351 = vsel %vm4712, %v5350, %v5346
      %v5352 = vlaneseq
      %v5353 = vshrl.u32 %v5352, 7
      %v5354 = vsub.s32 %v4714, %v5353
      %v5355 = vrot.slane %v4253, %v5354
      %v5356 = vsel %vm4719, %v5355, %v5351
      %v5357 = vlaneseq
      %v5358 = vshrl.u32 %v5357, 7
      %v5359 = vsub.s32 %v4721, %v5358
      %v5360 = vrot.slane %v4254, %v5359
      %v5361 = vsel %vm4726, %v5360, %v5356
      %v5362 = vlaneseq
      %v5363 = vshrl.u32 %v5362, 7
      %v5364 = vsub.s32 %v4728, %v5363
      %v5365 = vrot.slane %v4255, %v5364
      %v5366 = vsel %vm4733, %v5365, %v5361
      %v5367 = vlaneseq
      %v5368 = vshrl.u32 %v5367, 7
      %v5369 = vsub.s32 %v4625, %v5368
      %v5370 = vrot.slane %v4256, %v5369
      %v5371 = vlaneseq
      %v5372 = vshrl.u32 %v5371, 7
      %v5373 = vsub.s32 %v4630, %v5372
      %v5374 = vrot.slane %v4257, %v5373
      %v5375 = vsel %vm4635, %v5374, %v5370
      %v5376 = vlaneseq
      %v5377 = vshrl.u32 %v5376, 7
      %v5378 = vsub.s32 %v4637, %v5377
      %v5379 = vrot.slane %v4258, %v5378
      %v5380 = vsel %vm4642, %v5379, %v5375
      %v5381 = vlaneseq
      %v5382 = vshrl.u32 %v5381, 7
      %v5383 = vsub.s32 %v4644, %v5382
      %v5384 = vrot.slane %v4259, %v5383
      %v5385 = vsel %vm4649, %v5384, %v5380
      %v5386 = vlaneseq
      %v5387 = vshrl.u32 %v5386, 7
      %v5388 = vsub.s32 %v4651, %v5387
      %v5389 = vrot.slane %v4260, %v5388
      %v5390 = vsel %vm4656, %v5389, %v5385
      %v5391 = vlaneseq
      %v5392 = vshrl.u32 %v5391, 7
      %v5393 = vsub.s32 %v4658, %v5392
      %v5394 = vrot.slane %v4261, %v5393
      %v5395 = vsel %vm4663, %v5394, %v5390
      %v5396 = vlaneseq
      %v5397 = vshrl.u32 %v5396, 7
      %v5398 = vsub.s32 %v4665, %v5397
      %v5399 = vrot.slane %v4262, %v5398
      %v5400 = vsel %vm4670, %v5399, %v5395
      %v5401 = vlaneseq
      %v5402 = vshrl.u32 %v5401, 7
      %v5403 = vsub.s32 %v4672, %v5402
      %v5404 = vrot.slane %v4263, %v5403
      %v5405 = vsel %vm4677, %v5404, %v5400
      %v5406 = vlaneseq
      %v5407 = vshrl.u32 %v5406, 7
      %v5408 = vsub.s32 %v4679, %v5407
      %v5409 = vrot.slane %v4264, %v5408
      %v5410 = vsel %vm4684, %v5409, %v5405
      %v5411 = vlaneseq
      %v5412 = vshrl.u32 %v5411, 7
      %v5413 = vsub.s32 %v4686, %v5412
      %v5414 = vrot.slane %v4265, %v5413
      %v5415 = vsel %vm4691, %v5414, %v5410
      %v5416 = vlaneseq
      %v5417 = vshrl.u32 %v5416, 7
      %v5418 = vsub.s32 %v4693, %v5417
      %v5419 = vrot.slane %v4266, %v5418
      %v5420 = vsel %vm4698, %v5419, %v5415
      %v5421 = vlaneseq
      %v5422 = vshrl.u32 %v5421, 7
      %v5423 = vsub.s32 %v4700, %v5422
      %v5424 = vrot.slane %v4267, %v5423
      %v5425 = vsel %vm4705, %v5424, %v5420
      %v5426 = vlaneseq
      %v5427 = vshrl.u32 %v5426, 7
      %v5428 = vsub.s32 %v4707, %v5427
      %v5429 = vrot.slane %v4268, %v5428
      %v5430 = vsel %vm4712, %v5429, %v5425
      %v5431 = vlaneseq
      %v5432 = vshrl.u32 %v5431, 7
      %v5433 = vsub.s32 %v4714, %v5432
      %v5434 = vrot.slane %v4269, %v5433
      %v5435 = vsel %vm4719, %v5434, %v5430
      %v5436 = vlaneseq
      %v5437 = vshrl.u32 %v5436, 7
      %v5438 = vsub.s32 %v4721, %v5437
      %v5439 = vrot.slane %v4270, %v5438
      %v5440 = vsel %vm4726, %v5439, %v5435
      %v5441 = vlaneseq
      %v5442 = vshrl.u32 %v5441, 7
      %v5443 = vsub.s32 %v4728, %v5442
      %v5444 = vrot.slane %v4271, %v5443
      %v5445 = vsel %vm4733, %v5444, %v5440
      %v5446 = vlaneseq
      %v5447 = vshrl.u32 %v5446, 7
      %v5448 = vsub.s32 %v4625, %v5447
      %v5449 = vrot.slane %v4272, %v5448
      %v5450 = vlaneseq
      %v5451 = vshrl.u32 %v5450, 7
      %v5452 = vsub.s32 %v4630, %v5451
      %v5453 = vrot.slane %v4273, %v5452
      %v5454 = vsel %vm4635, %v5453, %v5449
      %v5455 = vlaneseq
      %v5456 = vshrl.u32 %v5455, 7
      %v5457 = vsub.s32 %v4637, %v5456
      %v5458 = vrot.slane %v4274, %v5457
      %v5459 = vsel %vm4642, %v5458, %v5454
      %v5460 = vlaneseq
      %v5461 = vshrl.u32 %v5460, 7
      %v5462 = vsub.s32 %v4644, %v5461
      %v5463 = vrot.slane %v4275, %v5462
      %v5464 = vsel %vm4649, %v5463, %v5459
      %v5465 = vlaneseq
      %v5466 = vshrl.u32 %v5465, 7
      %v5467 = vsub.s32 %v4651, %v5466
      %v5468 = vrot.slane %v4276, %v5467
      %v5469 = vsel %vm4656, %v5468, %v5464
      %v5470 = vlaneseq
      %v5471 = vshrl.u32 %v5470, 7
      %v5472 = vsub.s32 %v4658, %v5471
      %v5473 = vrot.slane %v4277, %v5472
      %v5474 = vsel %vm4663, %v5473, %v5469
      %v5475 = vlaneseq
      %v5476 = vshrl.u32 %v5475, 7
      %v5477 = vsub.s32 %v4665, %v5476
      %v5478 = vrot.slane %v4278, %v5477
      %v5479 = vsel %vm4670, %v5478, %v5474
      %v5480 = vlaneseq
      %v5481 = vshrl.u32 %v5480, 7
      %v5482 = vsub.s32 %v4672, %v5481
      %v5483 = vrot.slane %v4279, %v5482
      %v5484 = vsel %vm4677, %v5483, %v5479
      %v5485 = vlaneseq
      %v5486 = vshrl.u32 %v5485, 7
      %v5487 = vsub.s32 %v4679, %v5486
      %v5488 = vrot.slane %v4280, %v5487
      %v5489 = vsel %vm4684, %v5488, %v5484
      %v5490 = vlaneseq
      %v5491 = vshrl.u32 %v5490, 7
      %v5492 = vsub.s32 %v4686, %v5491
      %v5493 = vrot.slane %v4281, %v5492
      %v5494 = vsel %vm4691, %v5493, %v5489
      %v5495 = vlaneseq
      %v5496 = vshrl.u32 %v5495, 7
      %v5497 = vsub.s32 %v4693, %v5496
      %v5498 = vrot.slane %v4282, %v5497
      %v5499 = vsel %vm4698, %v5498, %v5494
      %v5500 = vlaneseq
      %v5501 = vshrl.u32 %v5500, 7
      %v5502 = vsub.s32 %v4700, %v5501
      %v5503 = vrot.slane %v4283, %v5502
      %v5504 = vsel %vm4705, %v5503, %v5499
      %v5505 = vlaneseq
      %v5506 = vshrl.u32 %v5505, 7
      %v5507 = vsub.s32 %v4707, %v5506
      %v5508 = vrot.slane %v4284, %v5507
      %v5509 = vsel %vm4712, %v5508, %v5504
      %v5510 = vlaneseq
      %v5511 = vshrl.u32 %v5510, 7
      %v5512 = vsub.s32 %v4714, %v5511
      %v5513 = vrot.slane %v4285, %v5512
      %v5514 = vsel %vm4719, %v5513, %v5509
      %v5515 = vlaneseq
      %v5516 = vshrl.u32 %v5515, 7
      %v5517 = vsub.s32 %v4721, %v5516
      %v5518 = vrot.slane %v4286, %v5517
      %v5519 = vsel %vm4726, %v5518, %v5514
      %v5520 = vlaneseq
      %v5521 = vshrl.u32 %v5520, 7
      %v5522 = vsub.s32 %v4728, %v5521
      %v5523 = vrot.slane %v4287, %v5522
      %v5524 = vsel %vm4733, %v5523, %v5519
      %v5525 = vlaneseq
      %v5526 = vshrl.u32 %v5525, 7
      %v5527 = vsub.s32 %v4625, %v5526
      %v5528 = vrot.slane %v4288, %v5527
      %v5529 = vlaneseq
      %v5530 = vshrl.u32 %v5529, 7
      %v5531 = vsub.s32 %v4630, %v5530
      %v5532 = vrot.slane %v4289, %v5531
      %v5533 = vsel %vm4635, %v5532, %v5528
      %v5534 = vlaneseq
      %v5535 = vshrl.u32 %v5534, 7
      %v5536 = vsub.s32 %v4637, %v5535
      %v5537 = vrot.slane %v4290, %v5536
      %v5538 = vsel %vm4642, %v5537, %v5533
      %v5539 = vlaneseq
      %v5540 = vshrl.u32 %v5539, 7
      %v5541 = vsub.s32 %v4644, %v5540
      %v5542 = vrot.slane %v4291, %v5541
      %v5543 = vsel %vm4649, %v5542, %v5538
      %v5544 = vlaneseq
      %v5545 = vshrl.u32 %v5544, 7
      %v5546 = vsub.s32 %v4651, %v5545
      %v5547 = vrot.slane %v4292, %v5546
      %v5548 = vsel %vm4656, %v5547, %v5543
      %v5549 = vlaneseq
      %v5550 = vshrl.u32 %v5549, 7
      %v5551 = vsub.s32 %v4658, %v5550
      %v5552 = vrot.slane %v4293, %v5551
      %v5553 = vsel %vm4663, %v5552, %v5548
      %v5554 = vlaneseq
      %v5555 = vshrl.u32 %v5554, 7
      %v5556 = vsub.s32 %v4665, %v5555
      %v5557 = vrot.slane %v4294, %v5556
      %v5558 = vsel %vm4670, %v5557, %v5553
      %v5559 = vlaneseq
      %v5560 = vshrl.u32 %v5559, 7
      %v5561 = vsub.s32 %v4672, %v5560
      %v5562 = vrot.slane %v4295, %v5561
      %v5563 = vsel %vm4677, %v5562, %v5558
      %v5564 = vlaneseq
      %v5565 = vshrl.u32 %v5564, 7
      %v5566 = vsub.s32 %v4679, %v5565
      %v5567 = vrot.slane %v4296, %v5566
      %v5568 = vsel %vm4684, %v5567, %v5563
      %v5569 = vlaneseq
      %v5570 = vshrl.u32 %v5569, 7
      %v5571 = vsub.s32 %v4686, %v5570
      %v5572 = vrot.slane %v4297, %v5571
      %v5573 = vsel %vm4691, %v5572, %v5568
      %v5574 = vlaneseq
      %v5575 = vshrl.u32 %v5574, 7
      %v5576 = vsub.s32 %v4693, %v5575
      %v5577 = vrot.slane %v4298, %v5576
      %v5578 = vsel %vm4698, %v5577, %v5573
      %v5579 = vlaneseq
      %v5580 = vshrl.u32 %v5579, 7
      %v5581 = vsub.s32 %v4700, %v5580
      %v5582 = vrot.slane %v4299, %v5581
      %v5583 = vsel %vm4705, %v5582, %v5578
      %v5584 = vlaneseq
      %v5585 = vshrl.u32 %v5584, 7
      %v5586 = vsub.s32 %v4707, %v5585
      %v5587 = vrot.slane %v4300, %v5586
      %v5588 = vsel %vm4712, %v5587, %v5583
      %v5589 = vlaneseq
      %v5590 = vshrl.u32 %v5589, 7
      %v5591 = vsub.s32 %v4714, %v5590
      %v5592 = vrot.slane %v4301, %v5591
      %v5593 = vsel %vm4719, %v5592, %v5588
      %v5594 = vlaneseq
      %v5595 = vshrl.u32 %v5594, 7
      %v5596 = vsub.s32 %v4721, %v5595
      %v5597 = vrot.slane %v4302, %v5596
      %v5598 = vsel %vm4726, %v5597, %v5593
      %v5599 = vlaneseq
      %v5600 = vshrl.u32 %v5599, 7
      %v5601 = vsub.s32 %v4728, %v5600
      %v5602 = vrot.slane %v4303, %v5601
      %v5603 = vsel %vm4733, %v5602, %v5598
      %v5604 = vlaneseq
      %v5605 = vshrl.u32 %v5604, 7
      %v5606 = vsub.s32 %v4625, %v5605
      %v5607 = vrot.slane %v4304, %v5606
      %v5608 = vlaneseq
      %v5609 = vshrl.u32 %v5608, 7
      %v5610 = vsub.s32 %v4630, %v5609
      %v5611 = vrot.slane %v4305, %v5610
      %v5612 = vsel %vm4635, %v5611, %v5607
      %v5613 = vlaneseq
      %v5614 = vshrl.u32 %v5613, 7
      %v5615 = vsub.s32 %v4637, %v5614
      %v5616 = vrot.slane %v4306, %v5615
      %v5617 = vsel %vm4642, %v5616, %v5612
      %v5618 = vlaneseq
      %v5619 = vshrl.u32 %v5618, 7
      %v5620 = vsub.s32 %v4644, %v5619
      %v5621 = vrot.slane %v4307, %v5620
      %v5622 = vsel %vm4649, %v5621, %v5617
      %v5623 = vlaneseq
      %v5624 = vshrl.u32 %v5623, 7
      %v5625 = vsub.s32 %v4651, %v5624
      %v5626 = vrot.slane %v4308, %v5625
      %v5627 = vsel %vm4656, %v5626, %v5622
      %v5628 = vlaneseq
      %v5629 = vshrl.u32 %v5628, 7
      %v5630 = vsub.s32 %v4658, %v5629
      %v5631 = vrot.slane %v4309, %v5630
      %v5632 = vsel %vm4663, %v5631, %v5627
      %v5633 = vlaneseq
      %v5634 = vshrl.u32 %v5633, 7
      %v5635 = vsub.s32 %v4665, %v5634
      %v5636 = vrot.slane %v4310, %v5635
      %v5637 = vsel %vm4670, %v5636, %v5632
      %v5638 = vlaneseq
      %v5639 = vshrl.u32 %v5638, 7
      %v5640 = vsub.s32 %v4672, %v5639
      %v5641 = vrot.slane %v4311, %v5640
      %v5642 = vsel %vm4677, %v5641, %v5637
      %v5643 = vlaneseq
      %v5644 = vshrl.u32 %v5643, 7
      %v5645 = vsub.s32 %v4679, %v5644
      %v5646 = vrot.slane %v4312, %v5645
      %v5647 = vsel %vm4684, %v5646, %v5642
      %v5648 = vlaneseq
      %v5649 = vshrl.u32 %v5648, 7
      %v5650 = vsub.s32 %v4686, %v5649
      %v5651 = vrot.slane %v4313, %v5650
      %v5652 = vsel %vm4691, %v5651, %v5647
      %v5653 = vlaneseq
      %v5654 = vshrl.u32 %v5653, 7
      %v5655 = vsub.s32 %v4693, %v5654
      %v5656 = vrot.slane %v4314, %v5655
      %v5657 = vsel %vm4698, %v5656, %v5652
      %v5658 = vlaneseq
      %v5659 = vshrl.u32 %v5658, 7
      %v5660 = vsub.s32 %v4700, %v5659
      %v5661 = vrot.slane %v4315, %v5660
      %v5662 = vsel %vm4705, %v5661, %v5657
      %v5663 = vlaneseq
      %v5664 = vshrl.u32 %v5663, 7
      %v5665 = vsub.s32 %v4707, %v5664
      %v5666 = vrot.slane %v4316, %v5665
      %v5667 = vsel %vm4712, %v5666, %v5662
      %v5668 = vlaneseq
      %v5669 = vshrl.u32 %v5668, 7
      %v5670 = vsub.s32 %v4714, %v5669
      %v5671 = vrot.slane %v4317, %v5670
      %v5672 = vsel %vm4719, %v5671, %v5667
      %v5673 = vlaneseq
      %v5674 = vshrl.u32 %v5673, 7
      %v5675 = vsub.s32 %v4721, %v5674
      %v5676 = vrot.slane %v4318, %v5675
      %v5677 = vsel %vm4726, %v5676, %v5672
      %v5678 = vlaneseq
      %v5679 = vshrl.u32 %v5678, 7
      %v5680 = vsub.s32 %v4728, %v5679
      %v5681 = vrot.slane %v4319, %v5680
      %v5682 = vsel %vm4733, %v5681, %v5677
      %v5683 = vlaneseq
      %v5684 = vshrl.u32 %v5683, 7
      %v5685 = vsub.s32 %v4625, %v5684
      %v5686 = vrot.slane %v4320, %v5685
      %v5687 = vlaneseq
      %v5688 = vshrl.u32 %v5687, 7
      %v5689 = vsub.s32 %v4630, %v5688
      %v5690 = vrot.slane %v4321, %v5689
      %v5691 = vsel %vm4635, %v5690, %v5686
      %v5692 = vlaneseq
      %v5693 = vshrl.u32 %v5692, 7
      %v5694 = vsub.s32 %v4637, %v5693
      %v5695 = vrot.slane %v4322, %v5694
      %v5696 = vsel %vm4642, %v5695, %v5691
      %v5697 = vlaneseq
      %v5698 = vshrl.u32 %v5697, 7
      %v5699 = vsub.s32 %v4644, %v5698
      %v5700 = vrot.slane %v4323, %v5699
      %v5701 = vsel %vm4649, %v5700, %v5696
      %v5702 = vlaneseq
      %v5703 = vshrl.u32 %v5702, 7
      %v5704 = vsub.s32 %v4651, %v5703
      %v5705 = vrot.slane %v4324, %v5704
      %v5706 = vsel %vm4656, %v5705, %v5701
      %v5707 = vlaneseq
      %v5708 = vshrl.u32 %v5707, 7
      %v5709 = vsub.s32 %v4658, %v5708
      %v5710 = vrot.slane %v4325, %v5709
      %v5711 = vsel %vm4663, %v5710, %v5706
      %v5712 = vlaneseq
      %v5713 = vshrl.u32 %v5712, 7
      %v5714 = vsub.s32 %v4665, %v5713
      %v5715 = vrot.slane %v4326, %v5714
      %v5716 = vsel %vm4670, %v5715, %v5711
      %v5717 = vlaneseq
      %v5718 = vshrl.u32 %v5717, 7
      %v5719 = vsub.s32 %v4672, %v5718
      %v5720 = vrot.slane %v4327, %v5719
      %v5721 = vsel %vm4677, %v5720, %v5716
      %v5722 = vlaneseq
      %v5723 = vshrl.u32 %v5722, 7
      %v5724 = vsub.s32 %v4679, %v5723
      %v5725 = vrot.slane %v4328, %v5724
      %v5726 = vsel %vm4684, %v5725, %v5721
      %v5727 = vlaneseq
      %v5728 = vshrl.u32 %v5727, 7
      %v5729 = vsub.s32 %v4686, %v5728
      %v5730 = vrot.slane %v4329, %v5729
      %v5731 = vsel %vm4691, %v5730, %v5726
      %v5732 = vlaneseq
      %v5733 = vshrl.u32 %v5732, 7
      %v5734 = vsub.s32 %v4693, %v5733
      %v5735 = vrot.slane %v4330, %v5734
      %v5736 = vsel %vm4698, %v5735, %v5731
      %v5737 = vlaneseq
      %v5738 = vshrl.u32 %v5737, 7
      %v5739 = vsub.s32 %v4700, %v5738
      %v5740 = vrot.slane %v4331, %v5739
      %v5741 = vsel %vm4705, %v5740, %v5736
      %v5742 = vlaneseq
      %v5743 = vshrl.u32 %v5742, 7
      %v5744 = vsub.s32 %v4707, %v5743
      %v5745 = vrot.slane %v4332, %v5744
      %v5746 = vsel %vm4712, %v5745, %v5741
      %v5747 = vlaneseq
      %v5748 = vshrl.u32 %v5747, 7
      %v5749 = vsub.s32 %v4714, %v5748
      %v5750 = vrot.slane %v4333, %v5749
      %v5751 = vsel %vm4719, %v5750, %v5746
      %v5752 = vlaneseq
      %v5753 = vshrl.u32 %v5752, 7
      %v5754 = vsub.s32 %v4721, %v5753
      %v5755 = vrot.slane %v4334, %v5754
      %v5756 = vsel %vm4726, %v5755, %v5751
      %v5757 = vlaneseq
      %v5758 = vshrl.u32 %v5757, 7
      %v5759 = vsub.s32 %v4728, %v5758
      %v5760 = vrot.slane %v4335, %v5759
      %v5761 = vsel %vm4733, %v5760, %v5756
      %v5762 = vlaneseq
      %v5763 = vshrl.u32 %v5762, 7
      %v5764 = vsub.s32 %v4625, %v5763
      %v5765 = vrot.slane %v4336, %v5764
      %v5766 = vlaneseq
      %v5767 = vshrl.u32 %v5766, 7
      %v5768 = vsub.s32 %v4630, %v5767
      %v5769 = vrot.slane %v4337, %v5768
      %v5770 = vsel %vm4635, %v5769, %v5765
      %v5771 = vlaneseq
      %v5772 = vshrl.u32 %v5771, 7
      %v5773 = vsub.s32 %v4637, %v5772
      %v5774 = vrot.slane %v4338, %v5773
      %v5775 = vsel %vm4642, %v5774, %v5770
      %v5776 = vlaneseq
      %v5777 = vshrl.u32 %v5776, 7
      %v5778 = vsub.s32 %v4644, %v5777
      %v5779 = vrot.slane %v4339, %v5778
      %v5780 = vsel %vm4649, %v5779, %v5775
      %v5781 = vlaneseq
      %v5782 = vshrl.u32 %v5781, 7
      %v5783 = vsub.s32 %v4651, %v5782
      %v5784 = vrot.slane %v4340, %v5783
      %v5785 = vsel %vm4656, %v5784, %v5780
      %v5786 = vlaneseq
      %v5787 = vshrl.u32 %v5786, 7
      %v5788 = vsub.s32 %v4658, %v5787
      %v5789 = vrot.slane %v4341, %v5788
      %v5790 = vsel %vm4663, %v5789, %v5785
      %v5791 = vlaneseq
      %v5792 = vshrl.u32 %v5791, 7
      %v5793 = vsub.s32 %v4665, %v5792
      %v5794 = vrot.slane %v4342, %v5793
      %v5795 = vsel %vm4670, %v5794, %v5790
      %v5796 = vlaneseq
      %v5797 = vshrl.u32 %v5796, 7
      %v5798 = vsub.s32 %v4672, %v5797
      %v5799 = vrot.slane %v4343, %v5798
      %v5800 = vsel %vm4677, %v5799, %v5795
      %v5801 = vlaneseq
      %v5802 = vshrl.u32 %v5801, 7
      %v5803 = vsub.s32 %v4679, %v5802
      %v5804 = vrot.slane %v4344, %v5803
      %v5805 = vsel %vm4684, %v5804, %v5800
      %v5806 = vlaneseq
      %v5807 = vshrl.u32 %v5806, 7
      %v5808 = vsub.s32 %v4686, %v5807
      %v5809 = vrot.slane %v4345, %v5808
      %v5810 = vsel %vm4691, %v5809, %v5805
      %v5811 = vlaneseq
      %v5812 = vshrl.u32 %v5811, 7
      %v5813 = vsub.s32 %v4693, %v5812
      %v5814 = vrot.slane %v4346, %v5813
      %v5815 = vsel %vm4698, %v5814, %v5810
      %v5816 = vlaneseq
      %v5817 = vshrl.u32 %v5816, 7
      %v5818 = vsub.s32 %v4700, %v5817
      %v5819 = vrot.slane %v4347, %v5818
      %v5820 = vsel %vm4705, %v5819, %v5815
      %v5821 = vlaneseq
      %v5822 = vshrl.u32 %v5821, 7
      %v5823 = vsub.s32 %v4707, %v5822
      %v5824 = vrot.slane %v4348, %v5823
      %v5825 = vsel %vm4712, %v5824, %v5820
      %v5826 = vlaneseq
      %v5827 = vshrl.u32 %v5826, 7
      %v5828 = vsub.s32 %v4714, %v5827
      %v5829 = vrot.slane %v4349, %v5828
      %v5830 = vsel %vm4719, %v5829, %v5825
      %v5831 = vlaneseq
      %v5832 = vshrl.u32 %v5831, 7
      %v5833 = vsub.s32 %v4721, %v5832
      %v5834 = vrot.slane %v4350, %v5833
      %v5835 = vsel %vm4726, %v5834, %v5830
      %v5836 = vlaneseq
      %v5837 = vshrl.u32 %v5836, 7
      %v5838 = vsub.s32 %v4728, %v5837
      %v5839 = vrot.slane %v4351, %v5838
      %v5840 = vsel %vm4733, %v5839, %v5835
      %v5841 = vlaneseq
      %v5842 = vshrl.u32 %v5841, 7
      %v5843 = vsub.s32 %v4625, %v5842
      %v5844 = vrot.slane %v4352, %v5843
      %v5845 = vlaneseq
      %v5846 = vshrl.u32 %v5845, 7
      %v5847 = vsub.s32 %v4630, %v5846
      %v5848 = vrot.slane %v4353, %v5847
      %v5849 = vsel %vm4635, %v5848, %v5844
      %v5850 = vlaneseq
      %v5851 = vshrl.u32 %v5850, 7
      %v5852 = vsub.s32 %v4637, %v5851
      %v5853 = vrot.slane %v4354, %v5852
      %v5854 = vsel %vm4642, %v5853, %v5849
      %v5855 = vlaneseq
      %v5856 = vshrl.u32 %v5855, 7
      %v5857 = vsub.s32 %v4644, %v5856
      %v5858 = vrot.slane %v4355, %v5857
      %v5859 = vsel %vm4649, %v5858, %v5854
      %v5860 = vlaneseq
      %v5861 = vshrl.u32 %v5860, 7
      %v5862 = vsub.s32 %v4651, %v5861
      %v5863 = vrot.slane %v4356, %v5862
      %v5864 = vsel %vm4656, %v5863, %v5859
      %v5865 = vlaneseq
      %v5866 = vshrl.u32 %v5865, 7
      %v5867 = vsub.s32 %v4658, %v5866
      %v5868 = vrot.slane %v4357, %v5867
      %v5869 = vsel %vm4663, %v5868, %v5864
      %v5870 = vlaneseq
      %v5871 = vshrl.u32 %v5870, 7
      %v5872 = vsub.s32 %v4665, %v5871
      %v5873 = vrot.slane %v4358, %v5872
      %v5874 = vsel %vm4670, %v5873, %v5869
      %v5875 = vlaneseq
      %v5876 = vshrl.u32 %v5875, 7
      %v5877 = vsub.s32 %v4672, %v5876
      %v5878 = vrot.slane %v4359, %v5877
      %v5879 = vsel %vm4677, %v5878, %v5874
      %v5880 = vlaneseq
      %v5881 = vshrl.u32 %v5880, 7
      %v5882 = vsub.s32 %v4679, %v5881
      %v5883 = vrot.slane %v4360, %v5882
      %v5884 = vsel %vm4684, %v5883, %v5879
      %v5885 = vlaneseq
      %v5886 = vshrl.u32 %v5885, 7
      %v5887 = vsub.s32 %v4686, %v5886
      %v5888 = vrot.slane %v4361, %v5887
      %v5889 = vsel %vm4691, %v5888, %v5884
      %v5890 = vlaneseq
      %v5891 = vshrl.u32 %v5890, 7
      %v5892 = vsub.s32 %v4693, %v5891
      %v5893 = vrot.slane %v4362, %v5892
      %v5894 = vsel %vm4698, %v5893, %v5889
      %v5895 = vlaneseq
      %v5896 = vshrl.u32 %v5895, 7
      %v5897 = vsub.s32 %v4700, %v5896
      %v5898 = vrot.slane %v4363, %v5897
      %v5899 = vsel %vm4705, %v5898, %v5894
      %v5900 = vlaneseq
      %v5901 = vshrl.u32 %v5900, 7
      %v5902 = vsub.s32 %v4707, %v5901
      %v5903 = vrot.slane %v4364, %v5902
      %v5904 = vsel %vm4712, %v5903, %v5899
      %v5905 = vlaneseq
      %v5906 = vshrl.u32 %v5905, 7
      %v5907 = vsub.s32 %v4714, %v5906
      %v5908 = vrot.slane %v4365, %v5907
      %v5909 = vsel %vm4719, %v5908, %v5904
      %v5910 = vlaneseq
      %v5911 = vshrl.u32 %v5910, 7
      %v5912 = vsub.s32 %v4721, %v5911
      %v5913 = vrot.slane %v4366, %v5912
      %v5914 = vsel %vm4726, %v5913, %v5909
      %v5915 = vlaneseq
      %v5916 = vshrl.u32 %v5915, 7
      %v5917 = vsub.s32 %v4728, %v5916
      %v5918 = vrot.slane %v4367, %v5917
      %v5919 = vsel %vm4733, %v5918, %v5914
      %vm5920 = vcmask 1041409
      %v5921 = vsel %vm5920, %v4813, %v4734
      %vm5922 = vcmask 1042434
      %v5923 = vsel %vm5922, %v4892, %v5921
      %vm5924 = vcmask 1043459
      %v5925 = vsel %vm5924, %v4971, %v5923
      %vm5926 = vcmask 1044484
      %v5927 = vsel %vm5926, %v5050, %v5925
      %vm5928 = vcmask 1045509
      %v5929 = vsel %vm5928, %v5129, %v5927
      %vm5930 = vcmask 1046534
      %v5931 = vsel %vm5930, %v5208, %v5929
      %vm5932 = vcmask 1047559
      %v5933 = vsel %vm5932, %v5287, %v5931
      %v5934 = vsel %vm5920, %v5445, %v5366
      %v5935 = vsel %vm5922, %v5524, %v5934
      %v5936 = vsel %vm5924, %v5603, %v5935
      %v5937 = vsel %vm5926, %v5682, %v5936
      %v5938 = vsel %vm5928, %v5761, %v5937
      %v5939 = vsel %vm5930, %v5840, %v5938
      %v5940 = vsel %vm5932, %v5919, %v5939
      %5943 = vst [vmem:[#allocation9] sm:$0xff] %v5933
      %5944 = vst [vmem:[#allocation9 + $0x8] sm:$0xff] %v5940
    $region33: #{tpu_custom_call.1} parent=1 // pred_fallthru
      _
    // Predicated region
    $region34: #{tpu_custom_call.1} parent=1 // pred_check
      _
    $region35: #{tpu_custom_call.1} parent=1 // pred_check_branch
      %5946 = sbr.rel (0) target = $region37
    $region36: #{tpu_custom_call.1} parent=1 // pred_region
      %s5948 = ssub.s32 256, 256
      %5949 = vsyncadd [#allocation5], %s5948
      %s5950 = sshll.u32 [#allocation9], 4
      %s5951 = int_to_ptr.vmem [resolvable:$true] %s5950
      %5956 = dma.vmem_to_hbm [thread:$0]  %s5951, 256, %s3, [#allocation5], 128, 128, 8
    $region37: #{tpu_custom_call.1} parent=1 // pred_fallthru
      _
    // Predicated region
    $region38: #{tpu_custom_call.1} parent=1 // pred_check
      _
    $region39: #{tpu_custom_call.1} parent=1 // pred_check_branch
      %5958 = sbr.rel (0) target = $region41
    $region40: #{tpu_custom_call.1} parent=1 // pred_region
      %5959 = dma.done [#allocation5], 256
    $region41: #{tpu_custom_call.1} parent=1 // pred_fallthru
      _
    %5960 = vsyncpa [#allocation4], 1
    %5961 = vsyncpa [#allocation7], 1
    %5962 = vsyncpa [#allocation5], 1

</llo_original>
